<compile_context>
chip_gen: v7x
topology: tpu7x:2x2x1
jax: 0.10.0
libtpu: 0.0.40
codegen_flags: <defaults>
</compile_context>

<pallas_src>
import math
from functools import partial

import numpy as np
import jax
import jax.numpy as jnp
from jax import lax
from jax.experimental import pallas as pl
from jax.experimental.pallas import tpu as pltpu

# ------------------------- model hyper-parameters ---------------------------
D_MODEL = 32
NUM_HEAD = 4
NUM_LAYER = 2
DIM_FF = 64
LN_EPS = 1e-5
_HI = lax.Precision.HIGHEST          # reference only

PARAM_KEYS = (
    "sa_in_w", "sa_in_b", "sa_out_w", "sa_out_b",
    "ca_in_w", "ca_in_b", "ca_out_w", "ca_out_b",
    "lin1_w", "lin1_b", "lin2_w", "lin2_b",
    "ln1_w", "ln1_b", "ln2_w", "ln2_b", "ln3_w", "ln3_b",
)


# --------------------------- shared math ------------------------------------
def _layer_norm(x, w, b):
    mu = jnp.mean(x, axis=-1, keepdims=True)
    var = jnp.mean((x - mu) ** 2, axis=-1, keepdims=True)
    return (x - mu) * lax.rsqrt(var + LN_EPS) * w + b


def _mm(a, w_bf16):
    """MXU matmul: f32 activation x VMEM-resident bf16 weight, f32 accumulate."""
    return jnp.dot(a.astype(jnp.bfloat16), w_bf16,
                   preferred_element_type=jnp.float32)


# ------------------------------ Pallas kernel --------------------------------
def _fused_mha(q, k, v, bias, kmask_t, vmask, block_ones, num_head):
    """All heads + all batch elements in one score slab.

    q: (B*T, D) f32;  k, v: (B*S, D) f32.
    kmask_t: (D, H*B*S) f32, vmask: (H*B*S, D) f32 (head feature masks),
    block_ones: (H*B*S, H*B*S) bf16 (same-head columns, across batch),
    bias: (B*T, H*B*S) f32 additive mask (cross-batch blocks + optional causal).
    """
    # block-structured K^T / V: column/row block (h, b, s) holds head-h slice
    k_bd_t = jnp.concatenate([k.T] * num_head, axis=1) * kmask_t     # (D, H*B*S)
    v_bd = jnp.concatenate([v] * num_head, axis=0) * vmask           # (H*B*S, D)

    s = jnp.dot(q.astype(jnp.bfloat16), k_bd_t.astype(jnp.bfloat16),
                preferred_element_type=jnp.float32) + bias           # (B*T, H*B*S)
    # global per-row max is a valid shift for every head block
    s = s - jnp.max(s, axis=-1, keepdims=True)
    p = jnp.exp(s)                                                   # masked -> 0
    # per-head row sums (summed across batch columns, but those p's are 0)
    denom = jnp.dot(p.astype(jnp.bfloat16), block_ones,
                    preferred_element_type=jnp.float32)
    p = p * pl.reciprocal(denom, approx=True)
    return jnp.dot(p.astype(jnp.bfloat16), v_bd.astype(jnp.bfloat16),
                   preferred_element_type=jnp.float32)               # (B*T, D)


def fused_decoder_kernel(tgt_ref, mem_ref,
                         sbias_ref, skmask_ref, svmask_ref, sones_ref,
                         xbias_ref, xkmask_ref, xvmask_ref, xones_ref,
                         *rest, num_head, num_layer):
    (sa_in_w, sa_in_b, sa_out_w, sa_out_b,
     ca_q_w, ca_q_b, ca_kv_w, ca_kv_b, ca_out_w, ca_out_b,
     l1w, l1b, l2w, l2b,
     ln1w, ln1b, ln2w, ln2b, ln3w, ln3b,
     out_ref) = rest

    x = tgt_ref[...]                     # (B*T, D) f32 — batch fused into rows
    mem = mem_ref[...]                   # (B*S, D) f32
    D = x.shape[-1]

    # host-precomputed attention layout constants (tiny VMEM loads)
    sbias = sbias_ref[...]
    skmask, svmask, sones = skmask_ref[...], svmask_ref[...], sones_ref[...]
    xbias = xbias_ref[...]
    xkmask, xvmask, xones = xkmask_ref[...], xvmask_ref[...], xones_ref[...]

    # layer-invariant: cross-attention K/V projections for ALL layers in one
    # lane-dense matmul, hoisted out of the serial per-layer chain.
    kv_all = _mm(mem, ca_kv_w[...]) + ca_kv_b[...]        # (B*S, L*2D) f32

    # static in-kernel layer loop; all layers' weights are VMEM-resident
    for l in range(num_layer):
        # ---- self-attention (fused QKV; softmax scale pre-folded into Q) ----
        qkv = _mm(x, sa_in_w[l]) + sa_in_b[l]             # (B*T, 3D) f32
        sa = _fused_mha(qkv[:, :D], qkv[:, D:2 * D], qkv[:, 2 * D:],
                        sbias, skmask, svmask, sones, num_head)
        sa = _mm(sa, sa_out_w[l]) + sa_out_b[l]
        x = _layer_norm(x + sa, ln1w[l], ln1b[l])

        # ---- cross-attention (Q from x; K/V pre-projected above) ----
        q = _mm(x, ca_q_w[l]) + ca_q_b[l]
        k = kv_all[:, 2 * D * l: 2 * D * l + D]
        v = kv_all[:, 2 * D * l + D: 2 * D * l + 2 * D]
        ca = _fused_mha(q, k, v, xbias, xkmask, xvmask, xones, num_head)
        ca = _mm(ca, ca_out_w[l]) + ca_out_b[l]
        x = _layer_norm(x + ca, ln2w[l], ln2b[l])

        # ---- feed-forward (relu) ----
        h = jnp.maximum(_mm(x, l1w[l]) + l1b[l], 0.0)
        ff = _mm(h, l2w[l]) + l2b[l]
        x = _layer_norm(x + ff, ln3w[l], ln3b[l])

    out_ref[...] = x                      # single whole-slab store


# ---------------- host-side constant / parameter preparation -----------------
def _attn_consts(batch, seq_q, seq_kv, d_model, num_head, causal):
    """Numpy (compile-time) layout constants for block-diagonal attention.

    Column ordering of the score slab is head-major: j -> (h, b, s).
    """
    hd = d_model // num_head
    ncol = num_head * batch * seq_kv
    j = np.arange(ncol)
    jh = j // (batch * seq_kv)
    jb = (j % (batch * seq_kv)) // seq_kv
    js = j % seq_kv
    d = np.arange(d_model)

    kmask_t = (d[:, None] // hd == jh[None, :]).astype(np.float32)     # (D, ncol)
    vmask = (jh[:, None] == d[None, :] // hd).astype(np.float32)       # (ncol, D)
    # ones across batch within the same head -> denominator never hits zero
    block_ones = (jh[:, None] == jh[None, :]).astype(np.float32)       # (ncol, ncol)

    i = np.arange(batch * seq_q)
    ib, it = i // seq_q, i % seq_q
    valid = ib[:, None] == jb[None, :]
    if causal:
        valid &= js[None, :] <= it[:, None]
    bias = np.where(valid, 0.0, -1e30).astype(np.float32)              # (B*Tq, ncol)

    return (jnp.asarray(bias), jnp.asarray(kmask_t), jnp.asarray(vmask),
            jnp.asarray(block_ones).astype(jnp.bfloat16))


def _prepare_fused_params(layer_params, d_model, num_head):
    """Stack per-layer params (x @ W form), fold QK scale, cast weights to bf16."""
    D = d_model
    scale = 1.0 / math.sqrt(D // num_head)
    bf, f32 = jnp.bfloat16, jnp.float32

    def stk(fn, dt):
        return jnp.stack([fn(p) for p in layer_params]).astype(dt)

    def sa_w(p):   # (D, 3D) with Q columns pre-scaled
        w = p["sa_in_w"].T
        return jnp.concatenate([w[:, :D] * scale, w[:, D:]], axis=1)

    def sa_b(p):   # (1, 3D) with Q slice pre-scaled
        b = p["sa_in_b"]
        return jnp.concatenate([b[:, :D] * scale, b[:, D:]], axis=1)

    return [
        stk(sa_w, bf),                                     # sa_in_w  (L, D, 3D)
        stk(sa_b, f32),                                    # sa_in_b  (L, 1, 3D)
        stk(lambda p: p["sa_out_w"].T, bf),                # sa_out_w (L, D, D)
        stk(lambda p: p["sa_out_b"], f32),                 # sa_out_b (L, 1, D)
        stk(lambda p: p["ca_in_w"][:D].T * scale, bf),     # ca_q_w   (L, D, D)
        stk(lambda p: p["ca_in_b"][:, :D] * scale, f32),   # ca_q_b   (L, 1, D)
        jnp.concatenate([p["ca_in_w"][D:].T for p in layer_params],
                        axis=1).astype(bf),                # ca_kv_w  (D, L*2D)
        jnp.concatenate([p["ca_in_b"][:, D:] for p in layer_params],
                        axis=1).astype(f32),               # ca_kv_b  (1, L*2D)
        stk(lambda p: p["ca_out_w"].T, bf),                # ca_out_w (L, D, D)
        stk(lambda p: p["ca_out_b"], f32),                 # ca_out_b (L, 1, D)
        stk(lambda p: p["lin1_w"].T, bf),                  # lin1_w   (L, D, FF)
        stk(lambda p: p["lin1_b"], f32),                   # lin1_b   (L, 1, FF)
        stk(lambda p: p["lin2_w"].T, bf),                  # lin2_w   (L, FF, D)
        stk(lambda p: p["lin2_b"], f32),                   # lin2_b   (L, 1, D)
        stk(lambda p: p["ln1_w"], f32), stk(lambda p: p["ln1_b"], f32),
        stk(lambda p: p["ln2_w"], f32), stk(lambda p: p["ln2_b"], f32),
        stk(lambda p: p["ln3_w"], f32), stk(lambda p: p["ln3_b"], f32),
    ]


# ------------------------------ wrapper --------------------------------------
def decoder_only_pallas(gt, mem, layer_params, num_head=NUM_HEAD):
    B, T, D = gt.shape
    S = mem.shape[1]
    L = len(layer_params)
    assert D % num_head == 0

    weights = _prepare_fused_params(layer_params, D, num_head)
    self_consts = _attn_consts(B, T, T, D, num_head, causal=True)
    cross_consts = _attn_consts(B, T, S, D, num_head, causal=False)

    args = [gt.reshape(B * T, D), mem.reshape(B * S, D),
            *self_consts, *cross_consts, *weights]

    out_flat = pl.pallas_call(
        partial(fused_decoder_kernel, num_head=num_head, num_layer=L),
        out_shape=jax.ShapeDtypeStruct((B * T, D), jnp.float32),
        # single invocation (no grid): everything resident in VMEM
        in_specs=[pl.BlockSpec(memory_space=pltpu.MemorySpace.VMEM)] * len(args),
        out_specs=pl.BlockSpec(memory_space=pltpu.MemorySpace.VMEM),
    )(*args)
    return out_flat.reshape(B, T, D)


@partial(jax.jit, static_argnames=("num_head",))
def decoder_only_forward(gt, x, layer_params, num_head=NUM_HEAD):
    return decoder_only_pallas(gt, x, layer_params, num_head)


# ------------------------- pure-JAX reference (f32) ---------------------------
def _mha_ref(q_in, kv_in, in_w, in_b, out_w, out_b, mask, num_head):
    d = q_in.shape[-1]
    hd = d // num_head
    scale = 1.0 / math.sqrt(hd)
    qw, kw, vw = in_w[0:d], in_w[d:2 * d], in_w[2 * d:3 * d]
    qb, kb, vb = in_b[0, 0:d], in_b[0, d:2 * d], in_b[0, 2 * d:3 * d]
    q = jnp.dot(q_in, qw.T, precision=_HI) + qb
    k = jnp.dot(kv_in, kw.T, precision=_HI) + kb
    v = jnp.dot(kv_in, vw.T, precision=_HI) + vb
    head_outs = []
    for h in range(num_head):
        qh = q[:, h * hd:(h + 1) * hd]
        kh = k[:, h * hd:(h + 1) * hd]
        vh = v[:, h * hd:(h + 1) * hd]
        s = jnp.dot(qh, kh.T, precision=_HI) * scale
        if mask is not None:
            s = s + mask
        s = s - jnp.max(s, axis=-1, keepdims=True)
        p = jnp.exp(s)
        p = p / jnp.sum(p, axis=-1, keepdims=True)
        head_outs.append(jnp.dot(p, vh, precision=_HI))
    o = jnp.concatenate(head_outs, axis=-1)
    return jnp.dot(o, out_w.T, precision=_HI) + out_b[0]


def _decoder_layer_ref(x, mem, w, num_head):
    (sa_w, sa_b, sa_ow, sa_ob,
     ca_w, ca_b, ca_ow, ca_ob,
     l1w, l1b, l2w, l2b,
     ln1w, ln1b, ln2w, ln2b, ln3w, ln3b) = w
    t = x.shape[0]
    row = lax.broadcasted_iota(jnp.int32, (t, t), 0)
    col = lax.broadcasted_iota(jnp.int32, (t, t), 1)
    causal = jnp.where(col > row, -jnp.inf, 0.0).astype(jnp.float32)
    x = _layer_norm(
        x + _mha_ref(x, x, sa_w, sa_b, sa_ow, sa_ob, causal, num_head), ln1w, ln1b)
    x = _layer_norm(
        x + _mha_ref(x, mem, ca_w, ca_b, ca_ow, ca_ob, None, num_head), ln2w, ln2b)
    h = jnp.maximum(jnp.dot(x, l1w.T, precision=_HI) + l1b[0], 0.0)
    ff = jnp.dot(h, l2w.T, precision=_HI) + l2b[0]
    return _layer_norm(x + ff, ln3w, ln3b)


def decoder_only_ref(gt, x, layer_params, num_head=NUM_HEAD):
    out = gt
    for p in layer_params:
        w = [p[k] for k in PARAM_KEYS]
        out = jax.vmap(
            lambda tx, mx, _w=w: _decoder_layer_ref(tx, mx, _w, num_head))(out, x)
    return out


# ------------------------------ parameter init -------------------------------
def init_layer_params(key, d_model=D_MODEL, dim_ff=DIM_FF):
    shapes = {
        "sa_in_w": (3 * d_model, d_model), "sa_in_b": (1, 3 * d_model),
        "sa_out_w": (d_model, d_model),    "sa_out_b": (1, d_model),
        "ca_in_w": (3 * d_model, d_model), "ca_in_b": (1, 3 * d_model),
        "ca_out_w": (d_model, d_model),    "ca_out_b": (1, d_model),
        "lin1_w": (dim_ff, d_model),       "lin1_b": (1, dim_ff),
        "lin2_w": (d_model, dim_ff),       "lin2_b": (1, d_model),
        "ln1_w": (1, d_model), "ln1_b": (1, d_model),
        "ln2_w": (1, d_model), "ln2_b": (1, d_model),
        "ln3_w": (1, d_model), "ln3_b": (1, d_model),
    }
    params = {}
    for i, name in enumerate(PARAM_KEYS):
        shp = shapes[name]
        if name.startswith("ln"):
            params[name] = (jnp.ones(shp, jnp.float32) if name.endswith("_w")
                            else jnp.zeros(shp, jnp.float32))
        else:
            k = jax.random.fold_in(key, i)
            bound = 1.0 / math.sqrt(shp[-1])
            params[name] = jax.random.uniform(k, shp, jnp.float32, -bound, bound)
    return params


# ----------------------------------- main ------------------------------------
if __name__ == "__main__":
    B, T, S = 2, 8, 8  # batch, target seq len, memory seq len
    key = jax.random.PRNGKey(0)
    kg, kx, kp = jax.random.split(key, 3)

    gt = jax.random.normal(kg, (B, T, D_MODEL), jnp.float32)   # target sequence
    x = jax.random.normal(kx, (B, S, D_MODEL), jnp.float32)    # encoder memory
    layer_params = [init_layer_params(jax.random.fold_in(kp, i))
                    for i in range(NUM_LAYER)]

    out = decoder_only_forward(gt, x, layer_params)
    out = jax.block_until_ready(out)
    assert out.shape == (B, T, D_MODEL), out.shape

    ref = jax.block_until_ready(decoder_only_ref(gt, x, layer_params))
    max_err = float(jnp.max(jnp.abs(out - ref)))
    # Kernel feeds the MXU bf16 operands (f32 accumulate) and uses the approx
    # EUP reciprocal for the softmax denominator; the reference is f32/HIGHEST,
    # so the tolerance is intentionally loose.  Structural bugs produce O(1)
    # errors, so 1e-1 still cleanly separates correct from broken.
    assert max_err < 1e-1, f"mismatch vs reference: {max_err}"

    print("KERNEL_OK")
</pallas_src>

<mosaic_0001>
module attributes {stable_mosaic.version = 11 : i64} {
  func.func @fused_decoder_kernel(%arg0: memref<16x32xf32, #tpu.memory_space<vmem>>, %arg1: memref<16x32xf32, #tpu.memory_space<vmem>>, %arg2: memref<16x64xf32, #tpu.memory_space<vmem>>, %arg3: memref<32x64xf32, #tpu.memory_space<vmem>>, %arg4: memref<64x32xf32, #tpu.memory_space<vmem>>, %arg5: memref<64x64xbf16, #tpu.memory_space<vmem>>, %arg6: memref<16x64xf32, #tpu.memory_space<vmem>>, %arg7: memref<32x64xf32, #tpu.memory_space<vmem>>, %arg8: memref<64x32xf32, #tpu.memory_space<vmem>>, %arg9: memref<64x64xbf16, #tpu.memory_space<vmem>>, %arg10: memref<2x32x96xbf16, #tpu.memory_space<vmem>>, %arg11: memref<2x1x96xf32, #tpu.memory_space<vmem>>, %arg12: memref<2x32x32xbf16, #tpu.memory_space<vmem>>, %arg13: memref<2x1x32xf32, #tpu.memory_space<vmem>>, %arg14: memref<2x32x32xbf16, #tpu.memory_space<vmem>>, %arg15: memref<2x1x32xf32, #tpu.memory_space<vmem>>, %arg16: memref<32x128xbf16, #tpu.memory_space<vmem>>, %arg17: memref<1x128xf32, #tpu.memory_space<vmem>>, %arg18: memref<2x32x32xbf16, #tpu.memory_space<vmem>>, %arg19: memref<2x1x32xf32, #tpu.memory_space<vmem>>, %arg20: memref<2x32x64xbf16, #tpu.memory_space<vmem>>, %arg21: memref<2x1x64xf32, #tpu.memory_space<vmem>>, %arg22: memref<2x64x32xbf16, #tpu.memory_space<vmem>>, %arg23: memref<2x1x32xf32, #tpu.memory_space<vmem>>, %arg24: memref<2x1x32xf32, #tpu.memory_space<vmem>>, %arg25: memref<2x1x32xf32, #tpu.memory_space<vmem>>, %arg26: memref<2x1x32xf32, #tpu.memory_space<vmem>>, %arg27: memref<2x1x32xf32, #tpu.memory_space<vmem>>, %arg28: memref<2x1x32xf32, #tpu.memory_space<vmem>>, %arg29: memref<2x1x32xf32, #tpu.memory_space<vmem>>, %arg30: memref<16x32xf32, #tpu.memory_space<vmem>>) attributes {dimension_semantics = [], scalar_prefetch = 0 : i64, scratch_operands = 0 : i64, tpu.core_type = #tpu.core_type<tc>} {
    %c0 = arith.constant 0 : index
    %c0_0 = arith.constant 0 : index
    %0 = vector.load %arg0[%c0, %c0_0] : memref<16x32xf32, #tpu.memory_space<vmem>>, vector<16x32xf32>
    %c0_1 = arith.constant 0 : index
    %c0_2 = arith.constant 0 : index
    %1 = vector.load %arg1[%c0_1, %c0_2] : memref<16x32xf32, #tpu.memory_space<vmem>>, vector<16x32xf32>
    %c0_3 = arith.constant 0 : index
    %c0_4 = arith.constant 0 : index
    %2 = vector.load %arg2[%c0_3, %c0_4] : memref<16x64xf32, #tpu.memory_space<vmem>>, vector<16x64xf32>
    %c0_5 = arith.constant 0 : index
    %c0_6 = arith.constant 0 : index
    %3 = vector.load %arg3[%c0_5, %c0_6] : memref<32x64xf32, #tpu.memory_space<vmem>>, vector<32x64xf32>
    %c0_7 = arith.constant 0 : index
    %c0_8 = arith.constant 0 : index
    %4 = vector.load %arg4[%c0_7, %c0_8] : memref<64x32xf32, #tpu.memory_space<vmem>>, vector<64x32xf32>
    %c0_9 = arith.constant 0 : index
    %c0_10 = arith.constant 0 : index
    %5 = vector.load %arg5[%c0_9, %c0_10] : memref<64x64xbf16, #tpu.memory_space<vmem>>, vector<64x64xbf16>
    %c0_11 = arith.constant 0 : index
    %c0_12 = arith.constant 0 : index
    %6 = vector.load %arg6[%c0_11, %c0_12] : memref<16x64xf32, #tpu.memory_space<vmem>>, vector<16x64xf32>
    %c0_13 = arith.constant 0 : index
    %c0_14 = arith.constant 0 : index
    %7 = vector.load %arg7[%c0_13, %c0_14] : memref<32x64xf32, #tpu.memory_space<vmem>>, vector<32x64xf32>
    %c0_15 = arith.constant 0 : index
    %c0_16 = arith.constant 0 : index
    %8 = vector.load %arg8[%c0_15, %c0_16] : memref<64x32xf32, #tpu.memory_space<vmem>>, vector<64x32xf32>
    %c0_17 = arith.constant 0 : index
    %c0_18 = arith.constant 0 : index
    %9 = vector.load %arg9[%c0_17, %c0_18] : memref<64x64xbf16, #tpu.memory_space<vmem>>, vector<64x64xbf16>
    %c0_19 = arith.constant 0 : index
    %c0_20 = arith.constant 0 : index
    %10 = vector.load %arg16[%c0_19, %c0_20] : memref<32x128xbf16, #tpu.memory_space<vmem>>, vector<32x128xbf16>
    %11 = arith.truncf %1 : vector<16x32xf32> to vector<16x32xbf16>
    %cst = arith.constant dense<0.000000e+00> : vector<16x128xf32>
    %12 = tpu.matmul %11, %10, %cst {dimension_numbers = #tpu.dot_dimension_numbers<[1], [0], [0], [1], [0, 0, 1, 1], [], []>} : vector<16x32xbf16>, vector<32x128xbf16>, vector<16x128xf32> -> vector<16x128xf32>
    %c0_21 = arith.constant 0 : index
    %c0_22 = arith.constant 0 : index
    %13 = vector.load %arg17[%c0_21, %c0_22] : memref<1x128xf32, #tpu.memory_space<vmem>>, vector<1x128xf32>
    %14 = vector.broadcast %13 : vector<1x128xf32> to vector<16x128xf32>
    %15 = arith.addf %12, %14 : vector<16x128xf32>
    %c0_23 = arith.constant 0 : index
    %c0_24 = arith.constant 0 : index
    %c0_25 = arith.constant 0 : index
    %16 = vector.load %arg10[%c0_23, %c0_24, %c0_25] : memref<2x32x96xbf16, #tpu.memory_space<vmem>>, vector<1x32x96xbf16>
    %17 = vector.shape_cast %16 : vector<1x32x96xbf16> to vector<32x96xbf16>
    %18 = arith.truncf %0 : vector<16x32xf32> to vector<16x32xbf16>
    %cst_26 = arith.constant dense<0.000000e+00> : vector<16x96xf32>
    %19 = tpu.matmul %18, %17, %cst_26 {dimension_numbers = #tpu.dot_dimension_numbers<[1], [0], [0], [1], [0, 0, 1, 1], [], []>} : vector<16x32xbf16>, vector<32x96xbf16>, vector<16x96xf32> -> vector<16x96xf32>
    %c0_27 = arith.constant 0 : index
    %c0_28 = arith.constant 0 : index
    %c0_29 = arith.constant 0 : index
    %20 = vector.load %arg11[%c0_27, %c0_28, %c0_29] : memref<2x1x96xf32, #tpu.memory_space<vmem>>, vector<1x1x96xf32>
    %21 = vector.shape_cast %20 : vector<1x1x96xf32> to vector<1x96xf32>
    %22 = vector.broadcast %21 : vector<1x96xf32> to vector<16x96xf32>
    %23 = arith.addf %19, %22 : vector<16x96xf32>
    %24 = vector.extract_strided_slice %23 {offsets = [0, 0], sizes = [16, 32], strides = [1, 1]} : vector<16x96xf32> to vector<16x32xf32>
    %25 = vector.extract_strided_slice %23 {offsets = [0, 32], sizes = [16, 32], strides = [1, 1]} : vector<16x96xf32> to vector<16x32xf32>
    %26 = vector.extract_strided_slice %23 {offsets = [0, 64], sizes = [16, 32], strides = [1, 1]} : vector<16x96xf32> to vector<16x32xf32>
    %27 = tpu.transpose %25, [1, 0] : vector<16x32xf32> -> vector<32x16xf32>
    %28 = tpu.concatenate %27, %27, %27, %27 in 1 : vector<32x16xf32>, vector<32x16xf32>, vector<32x16xf32>, vector<32x16xf32> -> vector<32x64xf32>
    %29 = arith.mulf %28, %3 : vector<32x64xf32>
    %30 = tpu.concatenate %26, %26, %26, %26 in 0 : vector<16x32xf32>, vector<16x32xf32>, vector<16x32xf32>, vector<16x32xf32> -> vector<64x32xf32>
    %31 = arith.mulf %30, %4 : vector<64x32xf32>
    %32 = arith.truncf %24 : vector<16x32xf32> to vector<16x32xbf16>
    %33 = arith.truncf %29 : vector<32x64xf32> to vector<32x64xbf16>
    %cst_30 = arith.constant dense<0.000000e+00> : vector<16x64xf32>
    %34 = tpu.matmul %32, %33, %cst_30 {dimension_numbers = #tpu.dot_dimension_numbers<[1], [0], [0], [1], [0, 0, 1, 1], [], []>} : vector<16x32xbf16>, vector<32x64xbf16>, vector<16x64xf32> -> vector<16x64xf32>
    %35 = arith.addf %34, %2 : vector<16x64xf32>
    %cst_31 = arith.constant dense<0xFF800000> : vector<16xf32>
    %36 = vector.multi_reduction <maximumf>, %35, %cst_31 [1] : vector<16x64xf32> to vector<16xf32>
    %37 = vector.shape_cast %36 : vector<16xf32> to vector<16x1xf32>
    %38 = vector.broadcast %37 : vector<16x1xf32> to vector<16x64xf32>
    %39 = arith.subf %35, %38 : vector<16x64xf32>
    %40 = math.exp %39 : vector<16x64xf32>
    %41 = arith.truncf %40 : vector<16x64xf32> to vector<16x64xbf16>
    %cst_32 = arith.constant dense<0.000000e+00> : vector<16x64xf32>
    %42 = tpu.matmul %41, %5, %cst_32 {dimension_numbers = #tpu.dot_dimension_numbers<[1], [0], [0], [1], [0, 0, 1, 1], [], []>} : vector<16x64xbf16>, vector<64x64xbf16>, vector<16x64xf32> -> vector<16x64xf32>
    %43 = tpu.reciprocal %42 {approx = true} : vector<16x64xf32> -> vector<16x64xf32>
    %44 = arith.mulf %40, %43 : vector<16x64xf32>
    %45 = arith.truncf %44 : vector<16x64xf32> to vector<16x64xbf16>
    %46 = arith.truncf %31 : vector<64x32xf32> to vector<64x32xbf16>
    %cst_33 = arith.constant dense<0.000000e+00> : vector<16x32xf32>
    %47 = tpu.matmul %45, %46, %cst_33 {dimension_numbers = #tpu.dot_dimension_numbers<[1], [0], [0], [1], [0, 0, 1, 1], [], []>} : vector<16x64xbf16>, vector<64x32xbf16>, vector<16x32xf32> -> vector<16x32xf32>
    %c0_34 = arith.constant 0 : index
    %c0_35 = arith.constant 0 : index
    %c0_36 = arith.constant 0 : index
    %48 = vector.load %arg12[%c0_34, %c0_35, %c0_36] : memref<2x32x32xbf16, #tpu.memory_space<vmem>>, vector<1x32x32xbf16>
    %49 = vector.shape_cast %48 : vector<1x32x32xbf16> to vector<32x32xbf16>
    %50 = arith.truncf %47 : vector<16x32xf32> to vector<16x32xbf16>
    %cst_37 = arith.constant dense<0.000000e+00> : vector<16x32xf32>
    %51 = tpu.matmul %50, %49, %cst_37 {dimension_numbers = #tpu.dot_dimension_numbers<[1], [0], [0], [1], [0, 0, 1, 1], [], []>} : vector<16x32xbf16>, vector<32x32xbf16>, vector<16x32xf32> -> vector<16x32xf32>
    %c0_38 = arith.constant 0 : index
    %c0_39 = arith.constant 0 : index
    %c0_40 = arith.constant 0 : index
    %52 = vector.load %arg13[%c0_38, %c0_39, %c0_40] : memref<2x1x32xf32, #tpu.memory_space<vmem>>, vector<1x1x32xf32>
    %53 = vector.shape_cast %52 : vector<1x1x32xf32> to vector<1x32xf32>
    %54 = vector.broadcast %53 : vector<1x32xf32> to vector<16x32xf32>
    %55 = arith.addf %51, %54 : vector<16x32xf32>
    %56 = arith.addf %0, %55 : vector<16x32xf32>
    %c0_41 = arith.constant 0 : index
    %c0_42 = arith.constant 0 : index
    %c0_43 = arith.constant 0 : index
    %57 = vector.load %arg24[%c0_41, %c0_42, %c0_43] : memref<2x1x32xf32, #tpu.memory_space<vmem>>, vector<1x1x32xf32>
    %58 = vector.shape_cast %57 : vector<1x1x32xf32> to vector<1x32xf32>
    %c0_44 = arith.constant 0 : index
    %c0_45 = arith.constant 0 : index
    %c0_46 = arith.constant 0 : index
    %59 = vector.load %arg25[%c0_44, %c0_45, %c0_46] : memref<2x1x32xf32, #tpu.memory_space<vmem>>, vector<1x1x32xf32>
    %60 = vector.shape_cast %59 : vector<1x1x32xf32> to vector<1x32xf32>
    %cst_47 = arith.constant dense<0.000000e+00> : vector<16xf32>
    %61 = vector.multi_reduction <add>, %56, %cst_47 [1] : vector<16x32xf32> to vector<16xf32>
    %62 = vector.shape_cast %61 : vector<16xf32> to vector<16x1xf32>
    %cst_48 = arith.constant 3.200000e+01 : f32
    %63 = vector.broadcast %cst_48 : f32 to vector<16x1xf32>
    %64 = arith.divf %62, %63 : vector<16x1xf32>
    %65 = vector.broadcast %64 : vector<16x1xf32> to vector<16x32xf32>
    %66 = arith.subf %56, %65 : vector<16x32xf32>
    %67 = arith.mulf %66, %66 : vector<16x32xf32>
    %cst_49 = arith.constant dense<0.000000e+00> : vector<16xf32>
    %68 = vector.multi_reduction <add>, %67, %cst_49 [1] : vector<16x32xf32> to vector<16xf32>
    %69 = vector.shape_cast %68 : vector<16xf32> to vector<16x1xf32>
    %cst_50 = arith.constant 3.200000e+01 : f32
    %70 = vector.broadcast %cst_50 : f32 to vector<16x1xf32>
    %71 = arith.divf %69, %70 : vector<16x1xf32>
    %72 = vector.broadcast %64 : vector<16x1xf32> to vector<16x32xf32>
    %73 = arith.subf %56, %72 : vector<16x32xf32>
    %cst_51 = arith.constant 9.99999974E-6 : f32
    %74 = vector.broadcast %cst_51 : f32 to vector<16x1xf32>
    %75 = arith.addf %71, %74 : vector<16x1xf32>
    %76 = math.rsqrt %75 : vector<16x1xf32>
    %77 = vector.broadcast %76 : vector<16x1xf32> to vector<16x32xf32>
    %78 = arith.mulf %73, %77 : vector<16x32xf32>
    %79 = vector.broadcast %58 : vector<1x32xf32> to vector<16x32xf32>
    %80 = arith.mulf %78, %79 : vector<16x32xf32>
    %81 = vector.broadcast %60 : vector<1x32xf32> to vector<16x32xf32>
    %82 = arith.addf %80, %81 : vector<16x32xf32>
    %c0_52 = arith.constant 0 : index
    %c0_53 = arith.constant 0 : index
    %c0_54 = arith.constant 0 : index
    %83 = vector.load %arg14[%c0_52, %c0_53, %c0_54] : memref<2x32x32xbf16, #tpu.memory_space<vmem>>, vector<1x32x32xbf16>
    %84 = vector.shape_cast %83 : vector<1x32x32xbf16> to vector<32x32xbf16>
    %85 = arith.truncf %82 : vector<16x32xf32> to vector<16x32xbf16>
    %cst_55 = arith.constant dense<0.000000e+00> : vector<16x32xf32>
    %86 = tpu.matmul %85, %84, %cst_55 {dimension_numbers = #tpu.dot_dimension_numbers<[1], [0], [0], [1], [0, 0, 1, 1], [], []>} : vector<16x32xbf16>, vector<32x32xbf16>, vector<16x32xf32> -> vector<16x32xf32>
    %c0_56 = arith.constant 0 : index
    %c0_57 = arith.constant 0 : index
    %c0_58 = arith.constant 0 : index
    %87 = vector.load %arg15[%c0_56, %c0_57, %c0_58] : memref<2x1x32xf32, #tpu.memory_space<vmem>>, vector<1x1x32xf32>
    %88 = vector.shape_cast %87 : vector<1x1x32xf32> to vector<1x32xf32>
    %89 = vector.broadcast %88 : vector<1x32xf32> to vector<16x32xf32>
    %90 = arith.addf %86, %89 : vector<16x32xf32>
    %91 = vector.extract_strided_slice %15 {offsets = [0, 0], sizes = [16, 32], strides = [1, 1]} : vector<16x128xf32> to vector<16x32xf32>
    %92 = vector.extract_strided_slice %15 {offsets = [0, 32], sizes = [16, 32], strides = [1, 1]} : vector<16x128xf32> to vector<16x32xf32>
    %93 = tpu.transpose %91, [1, 0] : vector<16x32xf32> -> vector<32x16xf32>
    %94 = tpu.concatenate %93, %93, %93, %93 in 1 : vector<32x16xf32>, vector<32x16xf32>, vector<32x16xf32>, vector<32x16xf32> -> vector<32x64xf32>
    %95 = arith.mulf %94, %7 : vector<32x64xf32>
    %96 = tpu.concatenate %92, %92, %92, %92 in 0 : vector<16x32xf32>, vector<16x32xf32>, vector<16x32xf32>, vector<16x32xf32> -> vector<64x32xf32>
    %97 = arith.mulf %96, %8 : vector<64x32xf32>
    %98 = arith.truncf %90 : vector<16x32xf32> to vector<16x32xbf16>
    %99 = arith.truncf %95 : vector<32x64xf32> to vector<32x64xbf16>
    %cst_59 = arith.constant dense<0.000000e+00> : vector<16x64xf32>
    %100 = tpu.matmul %98, %99, %cst_59 {dimension_numbers = #tpu.dot_dimension_numbers<[1], [0], [0], [1], [0, 0, 1, 1], [], []>} : vector<16x32xbf16>, vector<32x64xbf16>, vector<16x64xf32> -> vector<16x64xf32>
    %101 = arith.addf %100, %6 : vector<16x64xf32>
    %cst_60 = arith.constant dense<0xFF800000> : vector<16xf32>
    %102 = vector.multi_reduction <maximumf>, %101, %cst_60 [1] : vector<16x64xf32> to vector<16xf32>
    %103 = vector.shape_cast %102 : vector<16xf32> to vector<16x1xf32>
    %104 = vector.broadcast %103 : vector<16x1xf32> to vector<16x64xf32>
    %105 = arith.subf %101, %104 : vector<16x64xf32>
    %106 = math.exp %105 : vector<16x64xf32>
    %107 = arith.truncf %106 : vector<16x64xf32> to vector<16x64xbf16>
    %cst_61 = arith.constant dense<0.000000e+00> : vector<16x64xf32>
    %108 = tpu.matmul %107, %9, %cst_61 {dimension_numbers = #tpu.dot_dimension_numbers<[1], [0], [0], [1], [0, 0, 1, 1], [], []>} : vector<16x64xbf16>, vector<64x64xbf16>, vector<16x64xf32> -> vector<16x64xf32>
    %109 = tpu.reciprocal %108 {approx = true} : vector<16x64xf32> -> vector<16x64xf32>
    %110 = arith.mulf %106, %109 : vector<16x64xf32>
    %111 = arith.truncf %110 : vector<16x64xf32> to vector<16x64xbf16>
    %112 = arith.truncf %97 : vector<64x32xf32> to vector<64x32xbf16>
    %cst_62 = arith.constant dense<0.000000e+00> : vector<16x32xf32>
    %113 = tpu.matmul %111, %112, %cst_62 {dimension_numbers = #tpu.dot_dimension_numbers<[1], [0], [0], [1], [0, 0, 1, 1], [], []>} : vector<16x64xbf16>, vector<64x32xbf16>, vector<16x32xf32> -> vector<16x32xf32>
    %c0_63 = arith.constant 0 : index
    %c0_64 = arith.constant 0 : index
    %c0_65 = arith.constant 0 : index
    %114 = vector.load %arg18[%c0_63, %c0_64, %c0_65] : memref<2x32x32xbf16, #tpu.memory_space<vmem>>, vector<1x32x32xbf16>
    %115 = vector.shape_cast %114 : vector<1x32x32xbf16> to vector<32x32xbf16>
    %116 = arith.truncf %113 : vector<16x32xf32> to vector<16x32xbf16>
    %cst_66 = arith.constant dense<0.000000e+00> : vector<16x32xf32>
    %117 = tpu.matmul %116, %115, %cst_66 {dimension_numbers = #tpu.dot_dimension_numbers<[1], [0], [0], [1], [0, 0, 1, 1], [], []>} : vector<16x32xbf16>, vector<32x32xbf16>, vector<16x32xf32> -> vector<16x32xf32>
    %c0_67 = arith.constant 0 : index
    %c0_68 = arith.constant 0 : index
    %c0_69 = arith.constant 0 : index
    %118 = vector.load %arg19[%c0_67, %c0_68, %c0_69] : memref<2x1x32xf32, #tpu.memory_space<vmem>>, vector<1x1x32xf32>
    %119 = vector.shape_cast %118 : vector<1x1x32xf32> to vector<1x32xf32>
    %120 = vector.broadcast %119 : vector<1x32xf32> to vector<16x32xf32>
    %121 = arith.addf %117, %120 : vector<16x32xf32>
    %122 = arith.addf %82, %121 : vector<16x32xf32>
    %c0_70 = arith.constant 0 : index
    %c0_71 = arith.constant 0 : index
    %c0_72 = arith.constant 0 : index
    %123 = vector.load %arg26[%c0_70, %c0_71, %c0_72] : memref<2x1x32xf32, #tpu.memory_space<vmem>>, vector<1x1x32xf32>
    %124 = vector.shape_cast %123 : vector<1x1x32xf32> to vector<1x32xf32>
    %c0_73 = arith.constant 0 : index
    %c0_74 = arith.constant 0 : index
    %c0_75 = arith.constant 0 : index
    %125 = vector.load %arg27[%c0_73, %c0_74, %c0_75] : memref<2x1x32xf32, #tpu.memory_space<vmem>>, vector<1x1x32xf32>
    %126 = vector.shape_cast %125 : vector<1x1x32xf32> to vector<1x32xf32>
    %cst_76 = arith.constant dense<0.000000e+00> : vector<16xf32>
    %127 = vector.multi_reduction <add>, %122, %cst_76 [1] : vector<16x32xf32> to vector<16xf32>
    %128 = vector.shape_cast %127 : vector<16xf32> to vector<16x1xf32>
    %cst_77 = arith.constant 3.200000e+01 : f32
    %129 = vector.broadcast %cst_77 : f32 to vector<16x1xf32>
    %130 = arith.divf %128, %129 : vector<16x1xf32>
    %131 = vector.broadcast %130 : vector<16x1xf32> to vector<16x32xf32>
    %132 = arith.subf %122, %131 : vector<16x32xf32>
    %133 = arith.mulf %132, %132 : vector<16x32xf32>
    %cst_78 = arith.constant dense<0.000000e+00> : vector<16xf32>
    %134 = vector.multi_reduction <add>, %133, %cst_78 [1] : vector<16x32xf32> to vector<16xf32>
    %135 = vector.shape_cast %134 : vector<16xf32> to vector<16x1xf32>
    %cst_79 = arith.constant 3.200000e+01 : f32
    %136 = vector.broadcast %cst_79 : f32 to vector<16x1xf32>
    %137 = arith.divf %135, %136 : vector<16x1xf32>
    %138 = vector.broadcast %130 : vector<16x1xf32> to vector<16x32xf32>
    %139 = arith.subf %122, %138 : vector<16x32xf32>
    %cst_80 = arith.constant 9.99999974E-6 : f32
    %140 = vector.broadcast %cst_80 : f32 to vector<16x1xf32>
    %141 = arith.addf %137, %140 : vector<16x1xf32>
    %142 = math.rsqrt %141 : vector<16x1xf32>
    %143 = vector.broadcast %142 : vector<16x1xf32> to vector<16x32xf32>
    %144 = arith.mulf %139, %143 : vector<16x32xf32>
    %145 = vector.broadcast %124 : vector<1x32xf32> to vector<16x32xf32>
    %146 = arith.mulf %144, %145 : vector<16x32xf32>
    %147 = vector.broadcast %126 : vector<1x32xf32> to vector<16x32xf32>
    %148 = arith.addf %146, %147 : vector<16x32xf32>
    %c0_81 = arith.constant 0 : index
    %c0_82 = arith.constant 0 : index
    %c0_83 = arith.constant 0 : index
    %149 = vector.load %arg20[%c0_81, %c0_82, %c0_83] : memref<2x32x64xbf16, #tpu.memory_space<vmem>>, vector<1x32x64xbf16>
    %150 = vector.shape_cast %149 : vector<1x32x64xbf16> to vector<32x64xbf16>
    %151 = arith.truncf %148 : vector<16x32xf32> to vector<16x32xbf16>
    %cst_84 = arith.constant dense<0.000000e+00> : vector<16x64xf32>
    %152 = tpu.matmul %151, %150, %cst_84 {dimension_numbers = #tpu.dot_dimension_numbers<[1], [0], [0], [1], [0, 0, 1, 1], [], []>} : vector<16x32xbf16>, vector<32x64xbf16>, vector<16x64xf32> -> vector<16x64xf32>
    %c0_85 = arith.constant 0 : index
    %c0_86 = arith.constant 0 : index
    %c0_87 = arith.constant 0 : index
    %153 = vector.load %arg21[%c0_85, %c0_86, %c0_87] : memref<2x1x64xf32, #tpu.memory_space<vmem>>, vector<1x1x64xf32>
    %154 = vector.shape_cast %153 : vector<1x1x64xf32> to vector<1x64xf32>
    %155 = vector.broadcast %154 : vector<1x64xf32> to vector<16x64xf32>
    %156 = arith.addf %152, %155 : vector<16x64xf32>
    %cst_88 = arith.constant 0.000000e+00 : f32
    %157 = vector.broadcast %cst_88 : f32 to vector<16x64xf32>
    %158 = arith.maximumf %156, %157 : vector<16x64xf32>
    %c0_89 = arith.constant 0 : index
    %c0_90 = arith.constant 0 : index
    %c0_91 = arith.constant 0 : index
    %159 = vector.load %arg22[%c0_89, %c0_90, %c0_91] : memref<2x64x32xbf16, #tpu.memory_space<vmem>>, vector<1x64x32xbf16>
    %160 = vector.shape_cast %159 : vector<1x64x32xbf16> to vector<64x32xbf16>
    %161 = arith.truncf %158 : vector<16x64xf32> to vector<16x64xbf16>
    %cst_92 = arith.constant dense<0.000000e+00> : vector<16x32xf32>
    %162 = tpu.matmul %161, %160, %cst_92 {dimension_numbers = #tpu.dot_dimension_numbers<[1], [0], [0], [1], [0, 0, 1, 1], [], []>} : vector<16x64xbf16>, vector<64x32xbf16>, vector<16x32xf32> -> vector<16x32xf32>
    %c0_93 = arith.constant 0 : index
    %c0_94 = arith.constant 0 : index
    %c0_95 = arith.constant 0 : index
    %163 = vector.load %arg23[%c0_93, %c0_94, %c0_95] : memref<2x1x32xf32, #tpu.memory_space<vmem>>, vector<1x1x32xf32>
    %164 = vector.shape_cast %163 : vector<1x1x32xf32> to vector<1x32xf32>
    %165 = vector.broadcast %164 : vector<1x32xf32> to vector<16x32xf32>
    %166 = arith.addf %162, %165 : vector<16x32xf32>
    %167 = arith.addf %148, %166 : vector<16x32xf32>
    %c0_96 = arith.constant 0 : index
    %c0_97 = arith.constant 0 : index
    %c0_98 = arith.constant 0 : index
    %168 = vector.load %arg28[%c0_96, %c0_97, %c0_98] : memref<2x1x32xf32, #tpu.memory_space<vmem>>, vector<1x1x32xf32>
    %169 = vector.shape_cast %168 : vector<1x1x32xf32> to vector<1x32xf32>
    %c0_99 = arith.constant 0 : index
    %c0_100 = arith.constant 0 : index
    %c0_101 = arith.constant 0 : index
    %170 = vector.load %arg29[%c0_99, %c0_100, %c0_101] : memref<2x1x32xf32, #tpu.memory_space<vmem>>, vector<1x1x32xf32>
    %171 = vector.shape_cast %170 : vector<1x1x32xf32> to vector<1x32xf32>
    %cst_102 = arith.constant dense<0.000000e+00> : vector<16xf32>
    %172 = vector.multi_reduction <add>, %167, %cst_102 [1] : vector<16x32xf32> to vector<16xf32>
    %173 = vector.shape_cast %172 : vector<16xf32> to vector<16x1xf32>
    %cst_103 = arith.constant 3.200000e+01 : f32
    %174 = vector.broadcast %cst_103 : f32 to vector<16x1xf32>
    %175 = arith.divf %173, %174 : vector<16x1xf32>
    %176 = vector.broadcast %175 : vector<16x1xf32> to vector<16x32xf32>
    %177 = arith.subf %167, %176 : vector<16x32xf32>
    %178 = arith.mulf %177, %177 : vector<16x32xf32>
    %cst_104 = arith.constant dense<0.000000e+00> : vector<16xf32>
    %179 = vector.multi_reduction <add>, %178, %cst_104 [1] : vector<16x32xf32> to vector<16xf32>
    %180 = vector.shape_cast %179 : vector<16xf32> to vector<16x1xf32>
    %cst_105 = arith.constant 3.200000e+01 : f32
    %181 = vector.broadcast %cst_105 : f32 to vector<16x1xf32>
    %182 = arith.divf %180, %181 : vector<16x1xf32>
    %183 = vector.broadcast %175 : vector<16x1xf32> to vector<16x32xf32>
    %184 = arith.subf %167, %183 : vector<16x32xf32>
    %cst_106 = arith.constant 9.99999974E-6 : f32
    %185 = vector.broadcast %cst_106 : f32 to vector<16x1xf32>
    %186 = arith.addf %182, %185 : vector<16x1xf32>
    %187 = math.rsqrt %186 : vector<16x1xf32>
    %188 = vector.broadcast %187 : vector<16x1xf32> to vector<16x32xf32>
    %189 = arith.mulf %184, %188 : vector<16x32xf32>
    %190 = vector.broadcast %169 : vector<1x32xf32> to vector<16x32xf32>
    %191 = arith.mulf %189, %190 : vector<16x32xf32>
    %192 = vector.broadcast %171 : vector<1x32xf32> to vector<16x32xf32>
    %193 = arith.addf %191, %192 : vector<16x32xf32>
    %c1 = arith.constant 1 : index
    %c0_107 = arith.constant 0 : index
    %c0_108 = arith.constant 0 : index
    %194 = vector.load %arg10[%c1, %c0_107, %c0_108] : memref<2x32x96xbf16, #tpu.memory_space<vmem>>, vector<1x32x96xbf16>
    %195 = vector.shape_cast %194 : vector<1x32x96xbf16> to vector<32x96xbf16>
    %196 = arith.truncf %193 : vector<16x32xf32> to vector<16x32xbf16>
    %cst_109 = arith.constant dense<0.000000e+00> : vector<16x96xf32>
    %197 = tpu.matmul %196, %195, %cst_109 {dimension_numbers = #tpu.dot_dimension_numbers<[1], [0], [0], [1], [0, 0, 1, 1], [], []>} : vector<16x32xbf16>, vector<32x96xbf16>, vector<16x96xf32> -> vector<16x96xf32>
    %c1_110 = arith.constant 1 : index
    %c0_111 = arith.constant 0 : index
    %c0_112 = arith.constant 0 : index
    %198 = vector.load %arg11[%c1_110, %c0_111, %c0_112] : memref<2x1x96xf32, #tpu.memory_space<vmem>>, vector<1x1x96xf32>
    %199 = vector.shape_cast %198 : vector<1x1x96xf32> to vector<1x96xf32>
    %200 = vector.broadcast %199 : vector<1x96xf32> to vector<16x96xf32>
    %201 = arith.addf %197, %200 : vector<16x96xf32>
    %202 = vector.extract_strided_slice %201 {offsets = [0, 0], sizes = [16, 32], strides = [1, 1]} : vector<16x96xf32> to vector<16x32xf32>
    %203 = vector.extract_strided_slice %201 {offsets = [0, 32], sizes = [16, 32], strides = [1, 1]} : vector<16x96xf32> to vector<16x32xf32>
    %204 = vector.extract_strided_slice %201 {offsets = [0, 64], sizes = [16, 32], strides = [1, 1]} : vector<16x96xf32> to vector<16x32xf32>
    %205 = tpu.transpose %203, [1, 0] : vector<16x32xf32> -> vector<32x16xf32>
    %206 = tpu.concatenate %205, %205, %205, %205 in 1 : vector<32x16xf32>, vector<32x16xf32>, vector<32x16xf32>, vector<32x16xf32> -> vector<32x64xf32>
    %207 = arith.mulf %206, %3 : vector<32x64xf32>
    %208 = tpu.concatenate %204, %204, %204, %204 in 0 : vector<16x32xf32>, vector<16x32xf32>, vector<16x32xf32>, vector<16x32xf32> -> vector<64x32xf32>
    %209 = arith.mulf %208, %4 : vector<64x32xf32>
    %210 = arith.truncf %202 : vector<16x32xf32> to vector<16x32xbf16>
    %211 = arith.truncf %207 : vector<32x64xf32> to vector<32x64xbf16>
    %cst_113 = arith.constant dense<0.000000e+00> : vector<16x64xf32>
    %212 = tpu.matmul %210, %211, %cst_113 {dimension_numbers = #tpu.dot_dimension_numbers<[1], [0], [0], [1], [0, 0, 1, 1], [], []>} : vector<16x32xbf16>, vector<32x64xbf16>, vector<16x64xf32> -> vector<16x64xf32>
    %213 = arith.addf %212, %2 : vector<16x64xf32>
    %cst_114 = arith.constant dense<0xFF800000> : vector<16xf32>
    %214 = vector.multi_reduction <maximumf>, %213, %cst_114 [1] : vector<16x64xf32> to vector<16xf32>
    %215 = vector.shape_cast %214 : vector<16xf32> to vector<16x1xf32>
    %216 = vector.broadcast %215 : vector<16x1xf32> to vector<16x64xf32>
    %217 = arith.subf %213, %216 : vector<16x64xf32>
    %218 = math.exp %217 : vector<16x64xf32>
    %219 = arith.truncf %218 : vector<16x64xf32> to vector<16x64xbf16>
    %cst_115 = arith.constant dense<0.000000e+00> : vector<16x64xf32>
    %220 = tpu.matmul %219, %5, %cst_115 {dimension_numbers = #tpu.dot_dimension_numbers<[1], [0], [0], [1], [0, 0, 1, 1], [], []>} : vector<16x64xbf16>, vector<64x64xbf16>, vector<16x64xf32> -> vector<16x64xf32>
    %221 = tpu.reciprocal %220 {approx = true} : vector<16x64xf32> -> vector<16x64xf32>
    %222 = arith.mulf %218, %221 : vector<16x64xf32>
    %223 = arith.truncf %222 : vector<16x64xf32> to vector<16x64xbf16>
    %224 = arith.truncf %209 : vector<64x32xf32> to vector<64x32xbf16>
    %cst_116 = arith.constant dense<0.000000e+00> : vector<16x32xf32>
    %225 = tpu.matmul %223, %224, %cst_116 {dimension_numbers = #tpu.dot_dimension_numbers<[1], [0], [0], [1], [0, 0, 1, 1], [], []>} : vector<16x64xbf16>, vector<64x32xbf16>, vector<16x32xf32> -> vector<16x32xf32>
    %c1_117 = arith.constant 1 : index
    %c0_118 = arith.constant 0 : index
    %c0_119 = arith.constant 0 : index
    %226 = vector.load %arg12[%c1_117, %c0_118, %c0_119] : memref<2x32x32xbf16, #tpu.memory_space<vmem>>, vector<1x32x32xbf16>
    %227 = vector.shape_cast %226 : vector<1x32x32xbf16> to vector<32x32xbf16>
    %228 = arith.truncf %225 : vector<16x32xf32> to vector<16x32xbf16>
    %cst_120 = arith.constant dense<0.000000e+00> : vector<16x32xf32>
    %229 = tpu.matmul %228, %227, %cst_120 {dimension_numbers = #tpu.dot_dimension_numbers<[1], [0], [0], [1], [0, 0, 1, 1], [], []>} : vector<16x32xbf16>, vector<32x32xbf16>, vector<16x32xf32> -> vector<16x32xf32>
    %c1_121 = arith.constant 1 : index
    %c0_122 = arith.constant 0 : index
    %c0_123 = arith.constant 0 : index
    %230 = vector.load %arg13[%c1_121, %c0_122, %c0_123] : memref<2x1x32xf32, #tpu.memory_space<vmem>>, vector<1x1x32xf32>
    %231 = vector.shape_cast %230 : vector<1x1x32xf32> to vector<1x32xf32>
    %232 = vector.broadcast %231 : vector<1x32xf32> to vector<16x32xf32>
    %233 = arith.addf %229, %232 : vector<16x32xf32>
    %234 = arith.addf %193, %233 : vector<16x32xf32>
    %c1_124 = arith.constant 1 : index
    %c0_125 = arith.constant 0 : index
    %c0_126 = arith.constant 0 : index
    %235 = vector.load %arg24[%c1_124, %c0_125, %c0_126] : memref<2x1x32xf32, #tpu.memory_space<vmem>>, vector<1x1x32xf32>
    %236 = vector.shape_cast %235 : vector<1x1x32xf32> to vector<1x32xf32>
    %c1_127 = arith.constant 1 : index
    %c0_128 = arith.constant 0 : index
    %c0_129 = arith.constant 0 : index
    %237 = vector.load %arg25[%c1_127, %c0_128, %c0_129] : memref<2x1x32xf32, #tpu.memory_space<vmem>>, vector<1x1x32xf32>
    %238 = vector.shape_cast %237 : vector<1x1x32xf32> to vector<1x32xf32>
    %cst_130 = arith.constant dense<0.000000e+00> : vector<16xf32>
    %239 = vector.multi_reduction <add>, %234, %cst_130 [1] : vector<16x32xf32> to vector<16xf32>
    %240 = vector.shape_cast %239 : vector<16xf32> to vector<16x1xf32>
    %cst_131 = arith.constant 3.200000e+01 : f32
    %241 = vector.broadcast %cst_131 : f32 to vector<16x1xf32>
    %242 = arith.divf %240, %241 : vector<16x1xf32>
    %243 = vector.broadcast %242 : vector<16x1xf32> to vector<16x32xf32>
    %244 = arith.subf %234, %243 : vector<16x32xf32>
    %245 = arith.mulf %244, %244 : vector<16x32xf32>
    %cst_132 = arith.constant dense<0.000000e+00> : vector<16xf32>
    %246 = vector.multi_reduction <add>, %245, %cst_132 [1] : vector<16x32xf32> to vector<16xf32>
    %247 = vector.shape_cast %246 : vector<16xf32> to vector<16x1xf32>
    %cst_133 = arith.constant 3.200000e+01 : f32
    %248 = vector.broadcast %cst_133 : f32 to vector<16x1xf32>
    %249 = arith.divf %247, %248 : vector<16x1xf32>
    %250 = vector.broadcast %242 : vector<16x1xf32> to vector<16x32xf32>
    %251 = arith.subf %234, %250 : vector<16x32xf32>
    %cst_134 = arith.constant 9.99999974E-6 : f32
    %252 = vector.broadcast %cst_134 : f32 to vector<16x1xf32>
    %253 = arith.addf %249, %252 : vector<16x1xf32>
    %254 = math.rsqrt %253 : vector<16x1xf32>
    %255 = vector.broadcast %254 : vector<16x1xf32> to vector<16x32xf32>
    %256 = arith.mulf %251, %255 : vector<16x32xf32>
    %257 = vector.broadcast %236 : vector<1x32xf32> to vector<16x32xf32>
    %258 = arith.mulf %256, %257 : vector<16x32xf32>
    %259 = vector.broadcast %238 : vector<1x32xf32> to vector<16x32xf32>
    %260 = arith.addf %258, %259 : vector<16x32xf32>
    %c1_135 = arith.constant 1 : index
    %c0_136 = arith.constant 0 : index
    %c0_137 = arith.constant 0 : index
    %261 = vector.load %arg14[%c1_135, %c0_136, %c0_137] : memref<2x32x32xbf16, #tpu.memory_space<vmem>>, vector<1x32x32xbf16>
    %262 = vector.shape_cast %261 : vector<1x32x32xbf16> to vector<32x32xbf16>
    %263 = arith.truncf %260 : vector<16x32xf32> to vector<16x32xbf16>
    %cst_138 = arith.constant dense<0.000000e+00> : vector<16x32xf32>
    %264 = tpu.matmul %263, %262, %cst_138 {dimension_numbers = #tpu.dot_dimension_numbers<[1], [0], [0], [1], [0, 0, 1, 1], [], []>} : vector<16x32xbf16>, vector<32x32xbf16>, vector<16x32xf32> -> vector<16x32xf32>
    %c1_139 = arith.constant 1 : index
    %c0_140 = arith.constant 0 : index
    %c0_141 = arith.constant 0 : index
    %265 = vector.load %arg15[%c1_139, %c0_140, %c0_141] : memref<2x1x32xf32, #tpu.memory_space<vmem>>, vector<1x1x32xf32>
    %266 = vector.shape_cast %265 : vector<1x1x32xf32> to vector<1x32xf32>
    %267 = vector.broadcast %266 : vector<1x32xf32> to vector<16x32xf32>
    %268 = arith.addf %264, %267 : vector<16x32xf32>
    %269 = vector.extract_strided_slice %15 {offsets = [0, 64], sizes = [16, 32], strides = [1, 1]} : vector<16x128xf32> to vector<16x32xf32>
    %270 = vector.extract_strided_slice %15 {offsets = [0, 96], sizes = [16, 32], strides = [1, 1]} : vector<16x128xf32> to vector<16x32xf32>
    %271 = tpu.transpose %269, [1, 0] : vector<16x32xf32> -> vector<32x16xf32>
    %272 = tpu.concatenate %271, %271, %271, %271 in 1 : vector<32x16xf32>, vector<32x16xf32>, vector<32x16xf32>, vector<32x16xf32> -> vector<32x64xf32>
    %273 = arith.mulf %272, %7 : vector<32x64xf32>
    %274 = tpu.concatenate %270, %270, %270, %270 in 0 : vector<16x32xf32>, vector<16x32xf32>, vector<16x32xf32>, vector<16x32xf32> -> vector<64x32xf32>
    %275 = arith.mulf %274, %8 : vector<64x32xf32>
    %276 = arith.truncf %268 : vector<16x32xf32> to vector<16x32xbf16>
    %277 = arith.truncf %273 : vector<32x64xf32> to vector<32x64xbf16>
    %cst_142 = arith.constant dense<0.000000e+00> : vector<16x64xf32>
    %278 = tpu.matmul %276, %277, %cst_142 {dimension_numbers = #tpu.dot_dimension_numbers<[1], [0], [0], [1], [0, 0, 1, 1], [], []>} : vector<16x32xbf16>, vector<32x64xbf16>, vector<16x64xf32> -> vector<16x64xf32>
    %279 = arith.addf %278, %6 : vector<16x64xf32>
    %cst_143 = arith.constant dense<0xFF800000> : vector<16xf32>
    %280 = vector.multi_reduction <maximumf>, %279, %cst_143 [1] : vector<16x64xf32> to vector<16xf32>
    %281 = vector.shape_cast %280 : vector<16xf32> to vector<16x1xf32>
    %282 = vector.broadcast %281 : vector<16x1xf32> to vector<16x64xf32>
    %283 = arith.subf %279, %282 : vector<16x64xf32>
    %284 = math.exp %283 : vector<16x64xf32>
    %285 = arith.truncf %284 : vector<16x64xf32> to vector<16x64xbf16>
    %cst_144 = arith.constant dense<0.000000e+00> : vector<16x64xf32>
    %286 = tpu.matmul %285, %9, %cst_144 {dimension_numbers = #tpu.dot_dimension_numbers<[1], [0], [0], [1], [0, 0, 1, 1], [], []>} : vector<16x64xbf16>, vector<64x64xbf16>, vector<16x64xf32> -> vector<16x64xf32>
    %287 = tpu.reciprocal %286 {approx = true} : vector<16x64xf32> -> vector<16x64xf32>
    %288 = arith.mulf %284, %287 : vector<16x64xf32>
    %289 = arith.truncf %288 : vector<16x64xf32> to vector<16x64xbf16>
    %290 = arith.truncf %275 : vector<64x32xf32> to vector<64x32xbf16>
    %cst_145 = arith.constant dense<0.000000e+00> : vector<16x32xf32>
    %291 = tpu.matmul %289, %290, %cst_145 {dimension_numbers = #tpu.dot_dimension_numbers<[1], [0], [0], [1], [0, 0, 1, 1], [], []>} : vector<16x64xbf16>, vector<64x32xbf16>, vector<16x32xf32> -> vector<16x32xf32>
    %c1_146 = arith.constant 1 : index
    %c0_147 = arith.constant 0 : index
    %c0_148 = arith.constant 0 : index
    %292 = vector.load %arg18[%c1_146, %c0_147, %c0_148] : memref<2x32x32xbf16, #tpu.memory_space<vmem>>, vector<1x32x32xbf16>
    %293 = vector.shape_cast %292 : vector<1x32x32xbf16> to vector<32x32xbf16>
    %294 = arith.truncf %291 : vector<16x32xf32> to vector<16x32xbf16>
    %cst_149 = arith.constant dense<0.000000e+00> : vector<16x32xf32>
    %295 = tpu.matmul %294, %293, %cst_149 {dimension_numbers = #tpu.dot_dimension_numbers<[1], [0], [0], [1], [0, 0, 1, 1], [], []>} : vector<16x32xbf16>, vector<32x32xbf16>, vector<16x32xf32> -> vector<16x32xf32>
    %c1_150 = arith.constant 1 : index
    %c0_151 = arith.constant 0 : index
    %c0_152 = arith.constant 0 : index
    %296 = vector.load %arg19[%c1_150, %c0_151, %c0_152] : memref<2x1x32xf32, #tpu.memory_space<vmem>>, vector<1x1x32xf32>
    %297 = vector.shape_cast %296 : vector<1x1x32xf32> to vector<1x32xf32>
    %298 = vector.broadcast %297 : vector<1x32xf32> to vector<16x32xf32>
    %299 = arith.addf %295, %298 : vector<16x32xf32>
    %300 = arith.addf %260, %299 : vector<16x32xf32>
    %c1_153 = arith.constant 1 : index
    %c0_154 = arith.constant 0 : index
    %c0_155 = arith.constant 0 : index
    %301 = vector.load %arg26[%c1_153, %c0_154, %c0_155] : memref<2x1x32xf32, #tpu.memory_space<vmem>>, vector<1x1x32xf32>
    %302 = vector.shape_cast %301 : vector<1x1x32xf32> to vector<1x32xf32>
    %c1_156 = arith.constant 1 : index
    %c0_157 = arith.constant 0 : index
    %c0_158 = arith.constant 0 : index
    %303 = vector.load %arg27[%c1_156, %c0_157, %c0_158] : memref<2x1x32xf32, #tpu.memory_space<vmem>>, vector<1x1x32xf32>
    %304 = vector.shape_cast %303 : vector<1x1x32xf32> to vector<1x32xf32>
    %cst_159 = arith.constant dense<0.000000e+00> : vector<16xf32>
    %305 = vector.multi_reduction <add>, %300, %cst_159 [1] : vector<16x32xf32> to vector<16xf32>
    %306 = vector.shape_cast %305 : vector<16xf32> to vector<16x1xf32>
    %cst_160 = arith.constant 3.200000e+01 : f32
    %307 = vector.broadcast %cst_160 : f32 to vector<16x1xf32>
    %308 = arith.divf %306, %307 : vector<16x1xf32>
    %309 = vector.broadcast %308 : vector<16x1xf32> to vector<16x32xf32>
    %310 = arith.subf %300, %309 : vector<16x32xf32>
    %311 = arith.mulf %310, %310 : vector<16x32xf32>
    %cst_161 = arith.constant dense<0.000000e+00> : vector<16xf32>
    %312 = vector.multi_reduction <add>, %311, %cst_161 [1] : vector<16x32xf32> to vector<16xf32>
    %313 = vector.shape_cast %312 : vector<16xf32> to vector<16x1xf32>
    %cst_162 = arith.constant 3.200000e+01 : f32
    %314 = vector.broadcast %cst_162 : f32 to vector<16x1xf32>
    %315 = arith.divf %313, %314 : vector<16x1xf32>
    %316 = vector.broadcast %308 : vector<16x1xf32> to vector<16x32xf32>
    %317 = arith.subf %300, %316 : vector<16x32xf32>
    %cst_163 = arith.constant 9.99999974E-6 : f32
    %318 = vector.broadcast %cst_163 : f32 to vector<16x1xf32>
    %319 = arith.addf %315, %318 : vector<16x1xf32>
    %320 = math.rsqrt %319 : vector<16x1xf32>
    %321 = vector.broadcast %320 : vector<16x1xf32> to vector<16x32xf32>
    %322 = arith.mulf %317, %321 : vector<16x32xf32>
    %323 = vector.broadcast %302 : vector<1x32xf32> to vector<16x32xf32>
    %324 = arith.mulf %322, %323 : vector<16x32xf32>
    %325 = vector.broadcast %304 : vector<1x32xf32> to vector<16x32xf32>
    %326 = arith.addf %324, %325 : vector<16x32xf32>
    %c1_164 = arith.constant 1 : index
    %c0_165 = arith.constant 0 : index
    %c0_166 = arith.constant 0 : index
    %327 = vector.load %arg20[%c1_164, %c0_165, %c0_166] : memref<2x32x64xbf16, #tpu.memory_space<vmem>>, vector<1x32x64xbf16>
    %328 = vector.shape_cast %327 : vector<1x32x64xbf16> to vector<32x64xbf16>
    %329 = arith.truncf %326 : vector<16x32xf32> to vector<16x32xbf16>
    %cst_167 = arith.constant dense<0.000000e+00> : vector<16x64xf32>
    %330 = tpu.matmul %329, %328, %cst_167 {dimension_numbers = #tpu.dot_dimension_numbers<[1], [0], [0], [1], [0, 0, 1, 1], [], []>} : vector<16x32xbf16>, vector<32x64xbf16>, vector<16x64xf32> -> vector<16x64xf32>
    %c1_168 = arith.constant 1 : index
    %c0_169 = arith.constant 0 : index
    %c0_170 = arith.constant 0 : index
    %331 = vector.load %arg21[%c1_168, %c0_169, %c0_170] : memref<2x1x64xf32, #tpu.memory_space<vmem>>, vector<1x1x64xf32>
    %332 = vector.shape_cast %331 : vector<1x1x64xf32> to vector<1x64xf32>
    %333 = vector.broadcast %332 : vector<1x64xf32> to vector<16x64xf32>
    %334 = arith.addf %330, %333 : vector<16x64xf32>
    %cst_171 = arith.constant 0.000000e+00 : f32
    %335 = vector.broadcast %cst_171 : f32 to vector<16x64xf32>
    %336 = arith.maximumf %334, %335 : vector<16x64xf32>
    %c1_172 = arith.constant 1 : index
    %c0_173 = arith.constant 0 : index
    %c0_174 = arith.constant 0 : index
    %337 = vector.load %arg22[%c1_172, %c0_173, %c0_174] : memref<2x64x32xbf16, #tpu.memory_space<vmem>>, vector<1x64x32xbf16>
    %338 = vector.shape_cast %337 : vector<1x64x32xbf16> to vector<64x32xbf16>
    %339 = arith.truncf %336 : vector<16x64xf32> to vector<16x64xbf16>
    %cst_175 = arith.constant dense<0.000000e+00> : vector<16x32xf32>
    %340 = tpu.matmul %339, %338, %cst_175 {dimension_numbers = #tpu.dot_dimension_numbers<[1], [0], [0], [1], [0, 0, 1, 1], [], []>} : vector<16x64xbf16>, vector<64x32xbf16>, vector<16x32xf32> -> vector<16x32xf32>
    %c1_176 = arith.constant 1 : index
    %c0_177 = arith.constant 0 : index
    %c0_178 = arith.constant 0 : index
    %341 = vector.load %arg23[%c1_176, %c0_177, %c0_178] : memref<2x1x32xf32, #tpu.memory_space<vmem>>, vector<1x1x32xf32>
    %342 = vector.shape_cast %341 : vector<1x1x32xf32> to vector<1x32xf32>
    %343 = vector.broadcast %342 : vector<1x32xf32> to vector<16x32xf32>
    %344 = arith.addf %340, %343 : vector<16x32xf32>
    %345 = arith.addf %326, %344 : vector<16x32xf32>
    %c1_179 = arith.constant 1 : index
    %c0_180 = arith.constant 0 : index
    %c0_181 = arith.constant 0 : index
    %346 = vector.load %arg28[%c1_179, %c0_180, %c0_181] : memref<2x1x32xf32, #tpu.memory_space<vmem>>, vector<1x1x32xf32>
    %347 = vector.shape_cast %346 : vector<1x1x32xf32> to vector<1x32xf32>
    %c1_182 = arith.constant 1 : index
    %c0_183 = arith.constant 0 : index
    %c0_184 = arith.constant 0 : index
    %348 = vector.load %arg29[%c1_182, %c0_183, %c0_184] : memref<2x1x32xf32, #tpu.memory_space<vmem>>, vector<1x1x32xf32>
    %349 = vector.shape_cast %348 : vector<1x1x32xf32> to vector<1x32xf32>
    %cst_185 = arith.constant dense<0.000000e+00> : vector<16xf32>
    %350 = vector.multi_reduction <add>, %345, %cst_185 [1] : vector<16x32xf32> to vector<16xf32>
    %351 = vector.shape_cast %350 : vector<16xf32> to vector<16x1xf32>
    %cst_186 = arith.constant 3.200000e+01 : f32
    %352 = vector.broadcast %cst_186 : f32 to vector<16x1xf32>
    %353 = arith.divf %351, %352 : vector<16x1xf32>
    %354 = vector.broadcast %353 : vector<16x1xf32> to vector<16x32xf32>
    %355 = arith.subf %345, %354 : vector<16x32xf32>
    %356 = arith.mulf %355, %355 : vector<16x32xf32>
    %cst_187 = arith.constant dense<0.000000e+00> : vector<16xf32>
    %357 = vector.multi_reduction <add>, %356, %cst_187 [1] : vector<16x32xf32> to vector<16xf32>
    %358 = vector.shape_cast %357 : vector<16xf32> to vector<16x1xf32>
    %cst_188 = arith.constant 3.200000e+01 : f32
    %359 = vector.broadcast %cst_188 : f32 to vector<16x1xf32>
    %360 = arith.divf %358, %359 : vector<16x1xf32>
    %361 = vector.broadcast %353 : vector<16x1xf32> to vector<16x32xf32>
    %362 = arith.subf %345, %361 : vector<16x32xf32>
    %cst_189 = arith.constant 9.99999974E-6 : f32
    %363 = vector.broadcast %cst_189 : f32 to vector<16x1xf32>
    %364 = arith.addf %360, %363 : vector<16x1xf32>
    %365 = math.rsqrt %364 : vector<16x1xf32>
    %366 = vector.broadcast %365 : vector<16x1xf32> to vector<16x32xf32>
    %367 = arith.mulf %362, %366 : vector<16x32xf32>
    %368 = vector.broadcast %347 : vector<1x32xf32> to vector<16x32xf32>
    %369 = arith.mulf %367, %368 : vector<16x32xf32>
    %370 = vector.broadcast %349 : vector<1x32xf32> to vector<16x32xf32>
    %371 = arith.addf %369, %370 : vector<16x32xf32>
    %c0_190 = arith.constant 0 : index
    %c0_191 = arith.constant 0 : index
    %372 = vector.load %arg30[%c0_190, %c0_191] : memref<16x32xf32, #tpu.memory_space<vmem>>, vector<16x32xf32>
    tpu.vector_store %arg30[%c0_190, %c0_191], %371 {strides = array<i32>} : memref<16x32xf32, #tpu.memory_space<vmem>>, vector<16x32xf32>,
    return
  }
}

</mosaic_0001>

<llo_original>
// kernel: decoder_only_forward.1
$region0: #{decoder_only_forward.1}
  #allocation0 [shape = 'u32[]', space=smem, size = 0x4, offset = 0x4, fixed_abs, tag = 'smem constant byte address 0x4 - core index']
  #allocation1 [shape = 'u32[144,128]{1,0:T(1,128)}', space=vmem, size = 0x12000, scoped, tag = 'internal scratch']
  %s0 = inlined_call_operand.smem [shape: u32[31], index: -1, kind: input, shape index: {}]
  %s1 = sld [smem:[%s0]]
  %s2 = scalar_lea.smem %s0, 1
  %s3 = sld [smem:[%s2]]
  %s4 = scalar_lea.smem %s0, 2
  %s5 = sld [smem:[%s4]]
  %s6 = scalar_lea.smem %s0, 3
  %s7 = sld [smem:[%s6]]
  %s8 = scalar_lea.smem %s0, 4
  %s9 = sld [smem:[%s8]]
  %s10 = scalar_lea.smem %s0, 5
  %s11 = sld [smem:[%s10]]
  %s12 = scalar_lea.smem %s0, 6
  %s13 = sld [smem:[%s12]]
  %s14 = scalar_lea.smem %s0, 7
  %s15 = sld [smem:[%s14]]
  %s16 = scalar_lea.smem %s0, 8
  %s17 = sld [smem:[%s16]]
  %s18 = scalar_lea.smem %s0, 9
  %s19 = sld [smem:[%s18]]
  %s20 = scalar_lea.smem %s0, 10
  %s21 = sld [smem:[%s20]]
  %s22 = scalar_lea.smem %s0, 11
  %s23 = sld [smem:[%s22]]
  %s24 = scalar_lea.smem %s0, 12
  %s25 = sld [smem:[%s24]]
  %s26 = scalar_lea.smem %s0, 13
  %s27 = sld [smem:[%s26]]
  %s28 = scalar_lea.smem %s0, 14
  %s29 = sld [smem:[%s28]]
  %s30 = scalar_lea.smem %s0, 15
  %s31 = sld [smem:[%s30]]
  %s32 = scalar_lea.smem %s0, 16
  %s33 = sld [smem:[%s32]]
  %s34 = scalar_lea.smem %s0, 17
  %s35 = sld [smem:[%s34]]
  %s36 = scalar_lea.smem %s0, 18
  %s37 = sld [smem:[%s36]]
  %s38 = scalar_lea.smem %s0, 19
  %s39 = sld [smem:[%s38]]
  %s40 = scalar_lea.smem %s0, 20
  %s41 = sld [smem:[%s40]]
  %s42 = scalar_lea.smem %s0, 21
  %s43 = sld [smem:[%s42]]
  %s44 = scalar_lea.smem %s0, 22
  %s45 = sld [smem:[%s44]]
  %s46 = scalar_lea.smem %s0, 23
  %s47 = sld [smem:[%s46]]
  %s48 = scalar_lea.smem %s0, 24
  %s49 = sld [smem:[%s48]]
  %s50 = scalar_lea.smem %s0, 25
  %s51 = sld [smem:[%s50]]
  %s52 = scalar_lea.smem %s0, 26
  %s53 = sld [smem:[%s52]]
  %s54 = scalar_lea.smem %s0, 27
  %s55 = sld [smem:[%s54]]
  %s56 = scalar_lea.smem %s0, 28
  %s57 = sld [smem:[%s56]]
  %s58 = scalar_lea.smem %s0, 29
  %s59 = sld [smem:[%s58]]
  %s60 = scalar_lea.smem %s0, 30
  %s61 = sld [smem:[%s60]]
  %s62 = sld [smem:[#allocation0]]
  $region130: #{decoder_only_forward.1} parent=0
    _
  %s64 = ssub.s32 1, %s62
  %s65 = scalar_select 0, %s64, %s62
  $region1: #{decoder_only_forward.1} parent=0
    #allocation2 [shape = 'u8[8192]{0}', space=vmem, size = 0x2000, scoped, tag = 'output window, operand 0, single buffered']
    #allocation3 [shape = 's32[1]{0}', space=sflag, size = 0x4, scoped, tag = 'scoped memory for decoder_only_forward.1']
    %66 = vsyncpa [#allocation3], 0
    // Predicated region
    $region2: #{decoder_only_forward.1} parent=1 // pred_check
      _
    $region3: #{decoder_only_forward.1} parent=1 // pred_check_branch
      %68 = sbr.rel (0) target = $region5
    $region4: #{decoder_only_forward.1} parent=1 // pred_region
      _
    $region5: #{decoder_only_forward.1} parent=1 // pred_fallthru
      _
    // Predicated region
    $region6: #{decoder_only_forward.1} parent=1 // pred_check
      _
    $region7: #{decoder_only_forward.1} parent=1 // pred_check_branch
      %70 = sbr.rel (0) target = $region9
    $region8: #{decoder_only_forward.1} parent=1 // pred_region
      _
    $region9: #{decoder_only_forward.1} parent=1 // pred_fallthru
      _
    // Predicated region
    $region10: #{decoder_only_forward.1} parent=1 // pred_check
      _
    $region11: #{decoder_only_forward.1} parent=1 // pred_check_branch
      %72 = sbr.rel (0) target = $region13
    $region12: #{decoder_only_forward.1} parent=1 // pred_region
      _
    $region13: #{decoder_only_forward.1} parent=1 // pred_fallthru
      _
    // Predicated region
    $region14: #{decoder_only_forward.1} parent=1 // pred_check
      _
    $region15: #{decoder_only_forward.1} parent=1 // pred_check_branch
      %74 = sbr.rel (0) target = $region17
    $region16: #{decoder_only_forward.1} parent=1 // pred_region
      _
    $region17: #{decoder_only_forward.1} parent=1 // pred_fallthru
      _
    // Predicated region
    $region18: #{decoder_only_forward.1} parent=1 // pred_check
      _
    $region19: #{decoder_only_forward.1} parent=1 // pred_check_branch
      %76 = sbr.rel (0) target = $region21
    $region20: #{decoder_only_forward.1} parent=1 // pred_region
      _
    $region21: #{decoder_only_forward.1} parent=1 // pred_fallthru
      _
    // Predicated region
    $region22: #{decoder_only_forward.1} parent=1 // pred_check
      _
    $region23: #{decoder_only_forward.1} parent=1 // pred_check_branch
      %78 = sbr.rel (0) target = $region25
    $region24: #{decoder_only_forward.1} parent=1 // pred_region
      _
    $region25: #{decoder_only_forward.1} parent=1 // pred_fallthru
      _
    // Predicated region
    $region26: #{decoder_only_forward.1} parent=1 // pred_check
      _
    $region27: #{decoder_only_forward.1} parent=1 // pred_check_branch
      %80 = sbr.rel (0) target = $region29
    $region28: #{decoder_only_forward.1} parent=1 // pred_region
      _
    $region29: #{decoder_only_forward.1} parent=1 // pred_fallthru
      _
    // Predicated region
    $region30: #{decoder_only_forward.1} parent=1 // pred_check
      _
    $region31: #{decoder_only_forward.1} parent=1 // pred_check_branch
      %82 = sbr.rel (0) target = $region33
    $region32: #{decoder_only_forward.1} parent=1 // pred_region
      _
    $region33: #{decoder_only_forward.1} parent=1 // pred_fallthru
      _
    // Predicated region
    $region34: #{decoder_only_forward.1} parent=1 // pred_check
      _
    $region35: #{decoder_only_forward.1} parent=1 // pred_check_branch
      %84 = sbr.rel (0) target = $region37
    $region36: #{decoder_only_forward.1} parent=1 // pred_region
      _
    $region37: #{decoder_only_forward.1} parent=1 // pred_fallthru
      _
    // Predicated region
    $region38: #{decoder_only_forward.1} parent=1 // pred_check
      _
    $region39: #{decoder_only_forward.1} parent=1 // pred_check_branch
      %86 = sbr.rel (0) target = $region41
    $region40: #{decoder_only_forward.1} parent=1 // pred_region
      _
    $region41: #{decoder_only_forward.1} parent=1 // pred_fallthru
      _
    // Predicated region
    $region42: #{decoder_only_forward.1} parent=1 // pred_check
      _
    $region43: #{decoder_only_forward.1} parent=1 // pred_check_branch
      %88 = sbr.rel (0) target = $region45
    $region44: #{decoder_only_forward.1} parent=1 // pred_region
      _
    $region45: #{decoder_only_forward.1} parent=1 // pred_fallthru
      _
    // Predicated region
    $region46: #{decoder_only_forward.1} parent=1 // pred_check
      _
    $region47: #{decoder_only_forward.1} parent=1 // pred_check_branch
      %90 = sbr.rel (0) target = $region49
    $region48: #{decoder_only_forward.1} parent=1 // pred_region
      _
    $region49: #{decoder_only_forward.1} parent=1 // pred_fallthru
      _
    // Predicated region
    $region50: #{decoder_only_forward.1} parent=1 // pred_check
      _
    $region51: #{decoder_only_forward.1} parent=1 // pred_check_branch
      %92 = sbr.rel (0) target = $region53
    $region52: #{decoder_only_forward.1} parent=1 // pred_region
      _
    $region53: #{decoder_only_forward.1} parent=1 // pred_fallthru
      _
    // Predicated region
    $region54: #{decoder_only_forward.1} parent=1 // pred_check
      _
    $region55: #{decoder_only_forward.1} parent=1 // pred_check_branch
      %94 = sbr.rel (0) target = $region57
    $region56: #{decoder_only_forward.1} parent=1 // pred_region
      _
    $region57: #{decoder_only_forward.1} parent=1 // pred_fallthru
      _
    // Predicated region
    $region58: #{decoder_only_forward.1} parent=1 // pred_check
      _
    $region59: #{decoder_only_forward.1} parent=1 // pred_check_branch
      %96 = sbr.rel (0) target = $region61
    $region60: #{decoder_only_forward.1} parent=1 // pred_region
      _
    $region61: #{decoder_only_forward.1} parent=1 // pred_fallthru
      _
    // Predicated region
    $region62: #{decoder_only_forward.1} parent=1 // pred_check
      _
    $region63: #{decoder_only_forward.1} parent=1 // pred_check_branch
      %98 = sbr.rel (0) target = $region65
    $region64: #{decoder_only_forward.1} parent=1 // pred_region
      _
    $region65: #{decoder_only_forward.1} parent=1 // pred_fallthru
      _
    // Predicated region
    $region66: #{decoder_only_forward.1} parent=1 // pred_check
      _
    $region67: #{decoder_only_forward.1} parent=1 // pred_check_branch
      %100 = sbr.rel (0) target = $region69
    $region68: #{decoder_only_forward.1} parent=1 // pred_region
      _
    $region69: #{decoder_only_forward.1} parent=1 // pred_fallthru
      _
    // Predicated region
    $region70: #{decoder_only_forward.1} parent=1 // pred_check
      _
    $region71: #{decoder_only_forward.1} parent=1 // pred_check_branch
      %102 = sbr.rel (0) target = $region73
    $region72: #{decoder_only_forward.1} parent=1 // pred_region
      _
    $region73: #{decoder_only_forward.1} parent=1 // pred_fallthru
      _
    // Predicated region
    $region74: #{decoder_only_forward.1} parent=1 // pred_check
      _
    $region75: #{decoder_only_forward.1} parent=1 // pred_check_branch
      %104 = sbr.rel (0) target = $region77
    $region76: #{decoder_only_forward.1} parent=1 // pred_region
      _
    $region77: #{decoder_only_forward.1} parent=1 // pred_fallthru
      _
    // Predicated region
    $region78: #{decoder_only_forward.1} parent=1 // pred_check
      _
    $region79: #{decoder_only_forward.1} parent=1 // pred_check_branch
      %106 = sbr.rel (0) target = $region81
    $region80: #{decoder_only_forward.1} parent=1 // pred_region
      _
    $region81: #{decoder_only_forward.1} parent=1 // pred_fallthru
      _
    // Predicated region
    $region82: #{decoder_only_forward.1} parent=1 // pred_check
      _
    $region83: #{decoder_only_forward.1} parent=1 // pred_check_branch
      %108 = sbr.rel (0) target = $region85
    $region84: #{decoder_only_forward.1} parent=1 // pred_region
      _
    $region85: #{decoder_only_forward.1} parent=1 // pred_fallthru
      _
    // Predicated region
    $region86: #{decoder_only_forward.1} parent=1 // pred_check
      _
    $region87: #{decoder_only_forward.1} parent=1 // pred_check_branch
      %110 = sbr.rel (0) target = $region89
    $region88: #{decoder_only_forward.1} parent=1 // pred_region
      _
    $region89: #{decoder_only_forward.1} parent=1 // pred_fallthru
      _
    // Predicated region
    $region90: #{decoder_only_forward.1} parent=1 // pred_check
      _
    $region91: #{decoder_only_forward.1} parent=1 // pred_check_branch
      %112 = sbr.rel (0) target = $region93
    $region92: #{decoder_only_forward.1} parent=1 // pred_region
      _
    $region93: #{decoder_only_forward.1} parent=1 // pred_fallthru
      _
    // Predicated region
    $region94: #{decoder_only_forward.1} parent=1 // pred_check
      _
    $region95: #{decoder_only_forward.1} parent=1 // pred_check_branch
      %114 = sbr.rel (0) target = $region97
    $region96: #{decoder_only_forward.1} parent=1 // pred_region
      _
    $region97: #{decoder_only_forward.1} parent=1 // pred_fallthru
      _
    // Predicated region
    $region98: #{decoder_only_forward.1} parent=1 // pred_check
      _
    $region99: #{decoder_only_forward.1} parent=1 // pred_check_branch
      %116 = sbr.rel (0) target = $region101
    $region100: #{decoder_only_forward.1} parent=1 // pred_region
      _
    $region101: #{decoder_only_forward.1} parent=1 // pred_fallthru
      _
    // Predicated region
    $region102: #{decoder_only_forward.1} parent=1 // pred_check
      _
    $region103: #{decoder_only_forward.1} parent=1 // pred_check_branch
      %118 = sbr.rel (0) target = $region105
    $region104: #{decoder_only_forward.1} parent=1 // pred_region
      _
    $region105: #{decoder_only_forward.1} parent=1 // pred_fallthru
      _
    // Predicated region
    $region106: #{decoder_only_forward.1} parent=1 // pred_check
      _
    $region107: #{decoder_only_forward.1} parent=1 // pred_check_branch
      %120 = sbr.rel (0) target = $region109
    $region108: #{decoder_only_forward.1} parent=1 // pred_region
      _
    $region109: #{decoder_only_forward.1} parent=1 // pred_fallthru
      _
    // Predicated region
    $region110: #{decoder_only_forward.1} parent=1 // pred_check
      _
    $region111: #{decoder_only_forward.1} parent=1 // pred_check_branch
      %122 = sbr.rel (0) target = $region113
    $region112: #{decoder_only_forward.1} parent=1 // pred_region
      _
    $region113: #{decoder_only_forward.1} parent=1 // pred_fallthru
      _
    // Predicated region
    $region114: #{decoder_only_forward.1} parent=1 // pred_check
      _
    $region115: #{decoder_only_forward.1} parent=1 // pred_check_branch
      %124 = sbr.rel (0) target = $region117
    $region116: #{decoder_only_forward.1} parent=1 // pred_region
      _
    $region117: #{decoder_only_forward.1} parent=1 // pred_fallthru
      _
    // Predicated region
    $region118: #{decoder_only_forward.1} parent=1 // pred_check
      _
    $region119: #{decoder_only_forward.1} parent=1 // pred_check_branch
      %126 = sbr.rel (0) target = $region121
    $region120: #{decoder_only_forward.1} parent=1 // pred_region
      _
    $region121: #{decoder_only_forward.1} parent=1 // pred_fallthru
      _
    %v128 = vld [vmem:[%s1] sm:$0xff]
    %v129 = vld [vmem:[%s1 + $0x8] sm:$0xff]
    %v130 = vld [vmem:[%s3] sm:$0xff]
    %v131 = vld [vmem:[%s3 + $0x8] sm:$0xff]
    %v132 = vld [vmem:[%s5] sm:$0xff]
    %v133 = vld [vmem:[%s5 + $0x8] sm:$0xff]
    %v134 = vld [vmem:[%s7] sm:$0xff]
    %v135 = vld [vmem:[%s7 + $0x8] sm:$0xff]
    %v136 = vld [vmem:[%s7 + $0x10] sm:$0xff]
    %v137 = vld [vmem:[%s7 + $0x18] sm:$0xff]
    %v138 = vld [vmem:[%s9] sm:$0xff]
    %v139 = vld [vmem:[%s9 + $0x8] sm:$0xff]
    %v140 = vld [vmem:[%s9 + $0x10] sm:$0xff]
    %v141 = vld [vmem:[%s9 + $0x18] sm:$0xff]
    %v142 = vld [vmem:[%s9 + $0x20] sm:$0xff]
    %v143 = vld [vmem:[%s9 + $0x28] sm:$0xff]
    %v144 = vld [vmem:[%s9 + $0x30] sm:$0xff]
    %v145 = vld [vmem:[%s9 + $0x38] sm:$0xff]
    %v146 = vld [vmem:[%s11] sm:$0xf]
    %v147 = vld [vmem:[%s11 + $0x4] sm:$0xf]
    %v148 = vld [vmem:[%s11 + $0x8] sm:$0xf]
    %v149 = vld [vmem:[%s11 + $0xc] sm:$0xf]
    %v150 = vld [vmem:[%s11 + $0x10] sm:$0xf]
    %v151 = vld [vmem:[%s11 + $0x14] sm:$0xf]
    %v152 = vld [vmem:[%s11 + $0x18] sm:$0xf]
    %v153 = vld [vmem:[%s11 + $0x1c] sm:$0xf]
    %v154 = vld [vmem:[%s13] sm:$0xff]
    %v155 = vld [vmem:[%s13 + $0x8] sm:$0xff]
    %v156 = vld [vmem:[%s15] sm:$0xff]
    %v157 = vld [vmem:[%s15 + $0x8] sm:$0xff]
    %v158 = vld [vmem:[%s15 + $0x10] sm:$0xff]
    %v159 = vld [vmem:[%s15 + $0x18] sm:$0xff]
    %v160 = vld [vmem:[%s17] sm:$0xff]
    %v161 = vld [vmem:[%s17 + $0x8] sm:$0xff]
    %v162 = vld [vmem:[%s17 + $0x10] sm:$0xff]
    %v163 = vld [vmem:[%s17 + $0x18] sm:$0xff]
    %v164 = vld [vmem:[%s17 + $0x20] sm:$0xff]
    %v165 = vld [vmem:[%s17 + $0x28] sm:$0xff]
    %v166 = vld [vmem:[%s17 + $0x30] sm:$0xff]
    %v167 = vld [vmem:[%s17 + $0x38] sm:$0xff]
    %v168 = vld [vmem:[%s19] sm:$0xf]
    %v169 = vld [vmem:[%s19 + $0x4] sm:$0xf]
    %v170 = vld [vmem:[%s19 + $0x8] sm:$0xf]
    %v171 = vld [vmem:[%s19 + $0xc] sm:$0xf]
    %v172 = vld [vmem:[%s19 + $0x10] sm:$0xf]
    %v173 = vld [vmem:[%s19 + $0x14] sm:$0xf]
    %v174 = vld [vmem:[%s19 + $0x18] sm:$0xf]
    %v175 = vld [vmem:[%s19 + $0x1c] sm:$0xf]
    %v176 = vld [vmem:[%s33] sm:$0xf]
    %v177 = vld [vmem:[%s33 + $0x4] sm:$0xf]
    %v178 = vld [vmem:[%s33 + $0x8] sm:$0xf]
    %v179 = vld [vmem:[%s33 + $0xc] sm:$0xf]
    %v180 = vpack.c.bf16 %v131, %v130
    %v181 = vld [vmem:[%s35] sm:$0x1]
    %v183 = vlaneseq
    %v184 = vshrl.u32 %v183, 7
    %v185 = vsub.s32 0, %v184
    %v186 = vrot.slane %v181, %v185
    %v192 = vunpack.c.l.b16 %v176
    %v193 = vunpack.c.l.b16 %v177
    %v194 = vunpack.c.l.b16 %v178
    %v195 = vunpack.c.l.b16 %v179
    %v196 = vpack.c.b16 %v193, %v192
    %v197 = vpack.c.b16 %v195, %v194
    %vm200 = vcmask 261120
    %v202 = vsel %vm200, %v180, 0
    %204 = vmatprep.subr.bf16.mxu0 0
    %205 = vmatpush1.bf16.msra.mxu0 %v196
    %206 = vmatprep.subr.bf16.mxu0 0
    %207 = vmatpush1.bf16.msra.mxu0 %v197
    %208 = vmatprep.subr.bf16.mxu0 0
    %209 = vmatpush1.bf16.msra.mxu0 0
    %210 = vmatprep.subr.bf16.mxu0 0
    %211 = vmatpush1.bf16.msra.mxu0 0
    %212 = vmatprep.subr.bf16.mxu0 0
    %213 = vmatpush1.bf16.msra.mxu0 0
    %214 = vmatprep.subr.bf16.mxu0 0
    %215 = vmatpush1.bf16.msra.mxu0 0
    %216 = vmatprep.subr.bf16.mxu0 0
    %217 = vmatpush1.bf16.msra.mxu0 0
    %218 = vmatprep.subr.bf16.mxu0 0
    %219 = vmatpush1.bf16.msra.mxu0 0
    %220 = vmatprep.subr.bf16.mxu0 0
    %221 = vmatpush1.bf16.msra.mxu0 0
    %222 = vmatprep.subr.bf16.mxu0 0
    %223 = vmatpush1.bf16.msra.mxu0 0
    %224 = vmatprep.subr.bf16.mxu0 0
    %225 = vmatpush1.bf16.msra.mxu0 0
    %226 = vmatprep.subr.bf16.mxu0 0
    %227 = vmatpush1.bf16.msra.mxu0 0
    %228 = vmatprep.subr.bf16.mxu0 0
    %229 = vmatpush1.bf16.msra.mxu0 0
    %230 = vmatprep.subr.bf16.mxu0 0
    %231 = vmatpush1.bf16.msra.mxu0 0
    %232 = vmatprep.subr.bf16.mxu0 0
    %233 = vmatpush1.bf16.msra.mxu0 0
    %234 = vmatprep.subr.bf16.mxu0 0
    %235 = vmatpush1.bf16.msra.mxu0 0
    %236 = vmatprep.mubr.bf16.mxu0 0
    %237 = vmatmul.mubr.bf16.gmra.mrb[0].mxu0 %v202
    %v238 = vpop.f32.mrb[0].mxu0
    %v239 = vadd.f32 %v186, %v238
    %v240 = vpop.f32.mrb[0].mxu0
    %v241 = vpop.f32.mrb[0].mxu0
    %v242 = vadd.f32 %v186, %v241
    %v243 = vpop.f32.mrb[0].mxu0
    %244 = vdwg.mxu0
    %v245 = vld [vmem:[%s21] sm:$0xf]
    %v246 = vld [vmem:[%s21 + $0x4] sm:$0xf]
    %v247 = vld [vmem:[%s21 + $0x8] sm:$0xf]
    %v248 = vld [vmem:[%s21 + $0xc] sm:$0xf]
    %v249 = vpack.c.bf16 %v129, %v128
    %v250 = vld [vmem:[%s23] sm:$0x1]
    %v252 = vlaneseq
    %v253 = vshrl.u32 %v252, 7
    %v254 = vsub.s32 0, %v253
    %v255 = vrot.slane %v250, %v254
    %v261 = vunpack.c.l.b16 %v245
    %v262 = vunpack.c.l.b16 %v246
    %v263 = vunpack.c.l.b16 %v247
    %v264 = vunpack.c.l.b16 %v248
    %v265 = vpack.c.b16 %v262, %v261
    %v266 = vpack.c.b16 %v264, %v263
    %v270 = vsel %vm200, %v249, 0
    %272 = vmatprep.subr.bf16.mxu0 0
    %273 = vmatpush1.bf16.msra.mxu0 %v265
    %274 = vmatprep.subr.bf16.mxu0 0
    %275 = vmatpush1.bf16.msra.mxu0 %v266
    %276 = vmatprep.subr.bf16.mxu0 0
    %277 = vmatpush1.bf16.msra.mxu0 0
    %278 = vmatprep.subr.bf16.mxu0 0
    %279 = vmatpush1.bf16.msra.mxu0 0
    %280 = vmatprep.subr.bf16.mxu0 0
    %281 = vmatpush1.bf16.msra.mxu0 0
    %282 = vmatprep.subr.bf16.mxu0 0
    %283 = vmatpush1.bf16.msra.mxu0 0
    %284 = vmatprep.subr.bf16.mxu0 0
    %285 = vmatpush1.bf16.msra.mxu0 0
    %286 = vmatprep.subr.bf16.mxu0 0
    %287 = vmatpush1.bf16.msra.mxu0 0
    %288 = vmatprep.subr.bf16.mxu0 0
    %289 = vmatpush1.bf16.msra.mxu0 0
    %290 = vmatprep.subr.bf16.mxu0 0
    %291 = vmatpush1.bf16.msra.mxu0 0
    %292 = vmatprep.subr.bf16.mxu0 0
    %293 = vmatpush1.bf16.msra.mxu0 0
    %294 = vmatprep.subr.bf16.mxu0 0
    %295 = vmatpush1.bf16.msra.mxu0 0
    %296 = vmatprep.subr.bf16.mxu0 0
    %297 = vmatpush1.bf16.msra.mxu0 0
    %298 = vmatprep.subr.bf16.mxu0 0
    %299 = vmatpush1.bf16.msra.mxu0 0
    %300 = vmatprep.subr.bf16.mxu0 0
    %301 = vmatpush1.bf16.msra.mxu0 0
    %302 = vmatprep.subr.bf16.mxu0 0
    %303 = vmatpush1.bf16.msra.mxu0 0
    %304 = vmatprep.mubr.bf16.mxu0 0
    %305 = vmatmul.mubr.bf16.gmra.mrb[0].mxu0 %v270
    %v306 = vpop.f32.mrb[0].mxu0
    %v307 = vadd.f32 %v255, %v306
    %v308 = vpop.f32.mrb[0].mxu0
    %v309 = vpop.f32.mrb[0].mxu0
    %v310 = vadd.f32 %v255, %v309
    %v311 = vpop.f32.mrb[0].mxu0
    %312 = vdwg.mxu0
    %315 = vrot.lane.b32.xlu0 %v307, 96
    %v316 = vpop.permute.xlu0 %315
    %317 = vrot.lane.b32.xlu0 %v310, 96
    %v318 = vpop.permute.xlu0 %317
    %321 = vxpose.xlu0.b32.start [1/16] %v316, 128
    %322 = vxpose.xlu0.b32.cont [2/16] %v318, 128
    %323 = vxpose.xlu0.b32.cont [3/16] 0.0, 128
    %324 = vxpose.xlu0.b32.cont [4/16] 0.0, 128
    %325 = vxpose.xlu0.b32.cont [5/16] 0.0, 128
    %326 = vxpose.xlu0.b32.cont [6/16] 0.0, 128
    %327 = vxpose.xlu0.b32.cont [7/16] 0.0, 128
    %328 = vxpose.xlu0.b32.cont [8/16] 0.0, 128
    %329 = vxpose.xlu0.b32.cont [9/16] 0.0, 128
    %330 = vxpose.xlu0.b32.cont [10/16] 0.0, 128
    %331 = vxpose.xlu0.b32.cont [11/16] 0.0, 128
    %332 = vxpose.xlu0.b32.cont [12/16] 0.0, 128
    %333 = vxpose.xlu0.b32.cont [13/16] 0.0, 128
    %334 = vxpose.xlu0.b32.cont [14/16] 0.0, 128
    %335 = vxpose.xlu0.b32.cont [15/16] 0.0, 128
    %336 = vxpose.xlu0.b32.end [16/16] 0.0, 128
    %v337 = vpop.trf.xlu0
    %v338 = vpop.trf.xlu0
    %v339 = vpop.trf.xlu0
    %v340 = vpop.trf.xlu0
    %v341 = vpop.trf.xlu0
    %v342 = vpop.trf.xlu0
    %v343 = vpop.trf.xlu0
    %v344 = vpop.trf.xlu0
    %v345 = vpop.trf.xlu0
    %v346 = vpop.trf.xlu0
    %v347 = vpop.trf.xlu0
    %v348 = vpop.trf.xlu0
    %v349 = vpop.trf.xlu0
    %v350 = vpop.trf.xlu0
    %v351 = vpop.trf.xlu0
    %v352 = vpop.trf.xlu0
    %357 = vrot.lane.b32.xlu0 %v337, 16
    %v358 = vpop.permute.xlu0 %357
    %359 = vrot.lane.b32.xlu0 %v338, 16
    %v360 = vpop.permute.xlu0 %359
    %361 = vrot.lane.b32.xlu0 %v339, 16
    %v362 = vpop.permute.xlu0 %361
    %363 = vrot.lane.b32.xlu0 %v340, 16
    %v364 = vpop.permute.xlu0 %363
    %369 = vrot.lane.b32.xlu0 %v337, 32
    %v370 = vpop.permute.xlu0 %369
    %371 = vrot.lane.b32.xlu0 %v338, 32
    %v372 = vpop.permute.xlu0 %371
    %373 = vrot.lane.b32.xlu0 %v339, 32
    %v374 = vpop.permute.xlu0 %373
    %375 = vrot.lane.b32.xlu0 %v340, 32
    %v376 = vpop.permute.xlu0 %375
    %381 = vrot.lane.b32.xlu0 %v337, 48
    %v382 = vpop.permute.xlu0 %381
    %383 = vrot.lane.b32.xlu0 %v338, 48
    %v384 = vpop.permute.xlu0 %383
    %385 = vrot.lane.b32.xlu0 %v339, 48
    %v386 = vpop.permute.xlu0 %385
    %387 = vrot.lane.b32.xlu0 %v340, 48
    %v388 = vpop.permute.xlu0 %387
    %vm393 = vcmask 130048
    %v394 = vsel %vm393, %v337, %v358
    %v395 = vsel %vm393, %v338, %v360
    %v396 = vsel %vm393, %v339, %v362
    %v397 = vsel %vm393, %v340, %v364
    %v398 = vsel %vm200, %v394, %v370
    %v399 = vsel %vm200, %v395, %v372
    %v400 = vsel %vm200, %v396, %v374
    %v401 = vsel %vm200, %v397, %v376
    %vm402 = vcmask 392192
    %v403 = vsel %vm402, %v398, %v382
    %v404 = vsel %vm402, %v399, %v384
    %v405 = vsel %vm402, %v400, %v386
    %v406 = vsel %vm402, %v401, %v388
    %v407 = vmul.f32 %v403, %v134
    %v408 = vmul.f32 %v404, %v135
    %v409 = vmul.f32 %v405, %v136
    %v410 = vmul.f32 %v406, %v137
    %419 = vrot.lane.b32.xlu0 %v138, 64
    %v420 = vpop.permute.xlu0 %419
    %421 = vrot.lane.b32.xlu0 %v139, 64
    %v422 = vpop.permute.xlu0 %421
    %423 = vrot.lane.b32.xlu0 %v140, 64
    %v424 = vpop.permute.xlu0 %423
    %425 = vrot.lane.b32.xlu0 %v141, 64
    %v426 = vpop.permute.xlu0 %425
    %427 = vrot.lane.b32.xlu0 %v142, 64
    %v428 = vpop.permute.xlu0 %427
    %429 = vrot.lane.b32.xlu0 %v143, 64
    %v430 = vpop.permute.xlu0 %429
    %431 = vrot.lane.b32.xlu0 %v144, 64
    %v432 = vpop.permute.xlu0 %431
    %433 = vrot.lane.b32.xlu0 %v145, 64
    %v434 = vpop.permute.xlu0 %433
    %v443 = vmul.f32 %v307, %v420
    %v444 = vmul.f32 %v310, %v422
    %v445 = vmul.f32 %v307, %v424
    %v446 = vmul.f32 %v310, %v426
    %v447 = vmul.f32 %v307, %v428
    %v448 = vmul.f32 %v310, %v430
    %v449 = vmul.f32 %v307, %v432
    %v450 = vmul.f32 %v310, %v434
    %v451 = vpack.c.bf16 %v310, %v307
    %v452 = vpack.c.bf16 %v408, %v407
    %v453 = vpack.c.bf16 %v410, %v409
    %v455 = vsel %vm200, %v451, 0
    %457 = vmatprep.subr.bf16.mxu0 0
    %458 = vmatpush1.bf16.msra.mxu0 %v452
    %459 = vmatprep.subr.bf16.mxu0 0
    %460 = vmatpush1.bf16.msra.mxu0 %v453
    %461 = vmatprep.subr.bf16.mxu0 0
    %462 = vmatpush1.bf16.msra.mxu0 0
    %463 = vmatprep.subr.bf16.mxu0 0
    %464 = vmatpush1.bf16.msra.mxu0 0
    %465 = vmatprep.subr.bf16.mxu0 0
    %466 = vmatpush1.bf16.msra.mxu0 0
    %467 = vmatprep.subr.bf16.mxu0 0
    %468 = vmatpush1.bf16.msra.mxu0 0
    %469 = vmatprep.subr.bf16.mxu0 0
    %470 = vmatpush1.bf16.msra.mxu0 0
    %471 = vmatprep.subr.bf16.mxu0 0
    %472 = vmatpush1.bf16.msra.mxu0 0
    %473 = vmatprep.subr.bf16.mxu0 0
    %474 = vmatpush1.bf16.msra.mxu0 0
    %475 = vmatprep.subr.bf16.mxu0 0
    %476 = vmatpush1.bf16.msra.mxu0 0
    %477 = vmatprep.subr.bf16.mxu0 0
    %478 = vmatpush1.bf16.msra.mxu0 0
    %479 = vmatprep.subr.bf16.mxu0 0
    %480 = vmatpush1.bf16.msra.mxu0 0
    %481 = vmatprep.subr.bf16.mxu0 0
    %482 = vmatpush1.bf16.msra.mxu0 0
    %483 = vmatprep.subr.bf16.mxu0 0
    %484 = vmatpush1.bf16.msra.mxu0 0
    %485 = vmatprep.subr.bf16.mxu0 0
    %486 = vmatpush1.bf16.msra.mxu0 0
    %487 = vmatprep.subr.bf16.mxu0 0
    %488 = vmatpush1.bf16.msra.mxu0 0
    %489 = vmatprep.mubr.bf16.mxu0 0
    %490 = vmatmul.mubr.bf16.gmra.mrb[0].mxu0 %v455
    %v491 = vpop.f32.mrb[0].mxu0
    %v492 = vadd.f32 %v132, %v491
    %v493 = vpop.f32.mrb[0].mxu0
    %v494 = vpop.f32.mrb[0].mxu0
    %v495 = vadd.f32 %v133, %v494
    %v496 = vpop.f32.mrb[0].mxu0
    %497 = vdwg.mxu0
    %vm498 = vcmask 523264
    %v499 = vsel %vm498, %v492, -inf
    %500 = vmax.xlane.f32.xlu0 %v499
    %v501 = vpop.xlane.xlu0 %500
    %v502 = vsel %vm498, %v495, -inf
    %503 = vmax.xlane.f32.xlu0 %v502
    %v504 = vpop.xlane.xlu0 %503
    %v505 = vsub.f32 %v492, %v501
    %v506 = vsub.f32 %v495, %v504
    %v507 = vmul.f32 %v505, 1.442695
    %v508 = vpow.pop %v507
    %v509 = vmul.f32 %v506, 1.442695
    %v510 = vpow.pop %v509
    %v511 = vpack.c.bf16 %v510, %v508
    %v520 = vunpack.c.l.b16 %v146
    %v521 = vunpack.c.l.b16 %v147
    %v522 = vunpack.c.l.b16 %v148
    %v523 = vunpack.c.l.b16 %v149
    %v524 = vunpack.c.l.b16 %v150
    %v525 = vunpack.c.l.b16 %v151
    %v526 = vunpack.c.l.b16 %v152
    %v527 = vunpack.c.l.b16 %v153
    %v528 = vpack.c.b16 %v521, %v520
    %v529 = vpack.c.b16 %v523, %v522
    %v530 = vpack.c.b16 %v525, %v524
    %v531 = vpack.c.b16 %v527, %v526
    %v537 = vsel %vm498, %v511, 0
    %539 = vmatprep.subr.bf16.mxu0 0
    %540 = vmatpush1.bf16.msra.mxu0 %v528
    %541 = vmatprep.subr.bf16.mxu0 0
    %542 = vmatpush1.bf16.msra.mxu0 %v529
    %543 = vmatprep.subr.bf16.mxu0 0
    %544 = vmatpush1.bf16.msra.mxu0 %v530
    %545 = vmatprep.subr.bf16.mxu0 0
    %546 = vmatpush1.bf16.msra.mxu0 %v531
    %547 = vmatprep.subr.bf16.mxu0 0
    %548 = vmatpush1.bf16.msra.mxu0 0
    %549 = vmatprep.subr.bf16.mxu0 0
    %550 = vmatpush1.bf16.msra.mxu0 0
    %551 = vmatprep.subr.bf16.mxu0 0
    %552 = vmatpush1.bf16.msra.mxu0 0
    %553 = vmatprep.subr.bf16.mxu0 0
    %554 = vmatpush1.bf16.msra.mxu0 0
    %555 = vmatprep.subr.bf16.mxu0 0
    %556 = vmatpush1.bf16.msra.mxu0 0
    %557 = vmatprep.subr.bf16.mxu0 0
    %558 = vmatpush1.bf16.msra.mxu0 0
    %559 = vmatprep.subr.bf16.mxu0 0
    %560 = vmatpush1.bf16.msra.mxu0 0
    %561 = vmatprep.subr.bf16.mxu0 0
    %562 = vmatpush1.bf16.msra.mxu0 0
    %563 = vmatprep.subr.bf16.mxu0 0
    %564 = vmatpush1.bf16.msra.mxu0 0
    %565 = vmatprep.subr.bf16.mxu0 0
    %566 = vmatpush1.bf16.msra.mxu0 0
    %567 = vmatprep.subr.bf16.mxu0 0
    %568 = vmatpush1.bf16.msra.mxu0 0
    %569 = vmatprep.subr.bf16.mxu0 0
    %570 = vmatpush1.bf16.msra.mxu0 0
    %571 = vmatprep.mubr.bf16.mxu0 0
    %572 = vmatmul.mubr.bf16.gmra.mrb[0].mxu0 %v537
    %v573 = vpop.f32.mrb[0].mxu0
    %v574 = vadd.f32 0.0, %v573
    %v575 = vpop.f32.mrb[0].mxu0
    %v576 = vpop.f32.mrb[0].mxu0
    %v577 = vadd.f32 0.0, %v576
    %v578 = vpop.f32.mrb[0].mxu0
    %579 = vdwg.mxu0
    %v580 = vrcp.pop %v574
    %v581 = vrcp.pop %v577
    %v582 = vmul.f32 %v508, %v580
    %v583 = vmul.f32 %v510, %v581
    %v584 = vpack.c.bf16 %v583, %v582
    %v585 = vpack.c.bf16 %v444, %v443
    %v586 = vpack.c.bf16 %v446, %v445
    %v587 = vpack.c.bf16 %v448, %v447
    %v588 = vpack.c.bf16 %v450, %v449
    %593 = vrot.lane.b32.xlu0 %v585, 64
    %v594 = vpop.permute.xlu0 %593
    %595 = vrot.lane.b32.xlu0 %v586, 64
    %v596 = vpop.permute.xlu0 %595
    %597 = vrot.lane.b32.xlu0 %v587, 64
    %v598 = vpop.permute.xlu0 %597
    %599 = vrot.lane.b32.xlu0 %v588, 64
    %v600 = vpop.permute.xlu0 %599
    %v606 = vsel %vm498, %v584, 0
    %608 = vmatprep.subr.bf16.mxu0 0
    %609 = vmatpush1.bf16.msra.mxu0 %v594
    %610 = vmatprep.subr.bf16.mxu0 0
    %611 = vmatpush1.bf16.msra.mxu0 %v596
    %612 = vmatprep.subr.bf16.mxu0 0
    %613 = vmatpush1.bf16.msra.mxu0 %v598
    %614 = vmatprep.subr.bf16.mxu0 0
    %615 = vmatpush1.bf16.msra.mxu0 %v600
    %616 = vmatprep.subr.bf16.mxu0 0
    %617 = vmatpush1.bf16.msra.mxu0 0
    %618 = vmatprep.subr.bf16.mxu0 0
    %619 = vmatpush1.bf16.msra.mxu0 0
    %620 = vmatprep.subr.bf16.mxu0 0
    %621 = vmatpush1.bf16.msra.mxu0 0
    %622 = vmatprep.subr.bf16.mxu0 0
    %623 = vmatpush1.bf16.msra.mxu0 0
    %624 = vmatprep.subr.bf16.mxu0 0
    %625 = vmatpush1.bf16.msra.mxu0 0
    %626 = vmatprep.subr.bf16.mxu0 0
    %627 = vmatpush1.bf16.msra.mxu0 0
    %628 = vmatprep.subr.bf16.mxu0 0
    %629 = vmatpush1.bf16.msra.mxu0 0
    %630 = vmatprep.subr.bf16.mxu0 0
    %631 = vmatpush1.bf16.msra.mxu0 0
    %632 = vmatprep.subr.bf16.mxu0 0
    %633 = vmatpush1.bf16.msra.mxu0 0
    %634 = vmatprep.subr.bf16.mxu0 0
    %635 = vmatpush1.bf16.msra.mxu0 0
    %636 = vmatprep.subr.bf16.mxu0 0
    %637 = vmatpush1.bf16.msra.mxu0 0
    %638 = vmatprep.subr.bf16.mxu0 0
    %639 = vmatpush1.bf16.msra.mxu0 0
    %640 = vmatprep.mubr.bf16.mxu0 0
    %641 = vmatmul.mubr.bf16.gmra.mrb[0].mxu0 %v606
    %v642 = vpop.f32.mrb[0].mxu0
    %v643 = vadd.f32 0.0, %v642
    %v644 = vpop.f32.mrb[0].mxu0
    %v645 = vpop.f32.mrb[0].mxu0
    %v646 = vadd.f32 0.0, %v645
    %v647 = vpop.f32.mrb[0].mxu0
    %648 = vdwg.mxu0
    %v649 = vld [vmem:[%s25] sm:$0xf]
    %v650 = vld [vmem:[%s25 + $0x4] sm:$0xf]
    %v651 = vld [vmem:[%s25 + $0x8] sm:$0xf]
    %v652 = vld [vmem:[%s25 + $0xc] sm:$0xf]
    %v653 = vpack.c.bf16 %v646, %v643
    %v654 = vld [vmem:[%s27] sm:$0x1]
    %v656 = vlaneseq
    %v657 = vshrl.u32 %v656, 7
    %v658 = vsub.s32 0, %v657
    %v659 = vrot.slane %v654, %v658
    %v665 = vunpack.c.l.b16 %v649
    %v666 = vunpack.c.l.b16 %v650
    %v667 = vunpack.c.l.b16 %v651
    %v668 = vunpack.c.l.b16 %v652
    %v669 = vpack.c.b16 %v666, %v665
    %v670 = vpack.c.b16 %v668, %v667
    %v674 = vsel %vm200, %v653, 0
    %676 = vmatprep.subr.bf16.mxu0 0
    %677 = vmatpush1.bf16.msra.mxu0 %v669
    %678 = vmatprep.subr.bf16.mxu0 0
    %679 = vmatpush1.bf16.msra.mxu0 %v670
    %680 = vmatprep.subr.bf16.mxu0 0
    %681 = vmatpush1.bf16.msra.mxu0 0
    %682 = vmatprep.subr.bf16.mxu0 0
    %683 = vmatpush1.bf16.msra.mxu0 0
    %684 = vmatprep.subr.bf16.mxu0 0
    %685 = vmatpush1.bf16.msra.mxu0 0
    %686 = vmatprep.subr.bf16.mxu0 0
    %687 = vmatpush1.bf16.msra.mxu0 0
    %688 = vmatprep.subr.bf16.mxu0 0
    %689 = vmatpush1.bf16.msra.mxu0 0
    %690 = vmatprep.subr.bf16.mxu0 0
    %691 = vmatpush1.bf16.msra.mxu0 0
    %692 = vmatprep.subr.bf16.mxu0 0
    %693 = vmatpush1.bf16.msra.mxu0 0
    %694 = vmatprep.subr.bf16.mxu0 0
    %695 = vmatpush1.bf16.msra.mxu0 0
    %696 = vmatprep.subr.bf16.mxu0 0
    %697 = vmatpush1.bf16.msra.mxu0 0
    %698 = vmatprep.subr.bf16.mxu0 0
    %699 = vmatpush1.bf16.msra.mxu0 0
    %700 = vmatprep.subr.bf16.mxu0 0
    %701 = vmatpush1.bf16.msra.mxu0 0
    %702 = vmatprep.subr.bf16.mxu0 0
    %703 = vmatpush1.bf16.msra.mxu0 0
    %704 = vmatprep.subr.bf16.mxu0 0
    %705 = vmatpush1.bf16.msra.mxu0 0
    %706 = vmatprep.subr.bf16.mxu0 0
    %707 = vmatpush1.bf16.msra.mxu0 0
    %708 = vmatprep.mubr.bf16.mxu0 0
    %709 = vmatmul.mubr.bf16.gmra.mrb[0].mxu0 %v674
    %v710 = vpop.f32.mrb[0].mxu0
    %v711 = vadd.f32 %v659, %v710
    %v712 = vpop.f32.mrb[0].mxu0
    %v713 = vpop.f32.mrb[0].mxu0
    %v714 = vadd.f32 %v659, %v713
    %v715 = vpop.f32.mrb[0].mxu0
    %716 = vdwg.mxu0
    %v717 = vadd.f32 %v128, %v711
    %v718 = vadd.f32 %v129, %v714
    %v719 = vld [vmem:[%s49] sm:$0x1]
    %v720 = vld [vmem:[%s51] sm:$0x1]
    %v721 = vsel %vm200, %v717, 0.0
    %722 = vadd.xlane.f32.xlu0 %v721
    %v723 = vpop.xlane.xlu0 %722
    %v724 = vsel %vm200, %v718, 0.0
    %725 = vadd.xlane.f32.xlu0 %v724
    %v726 = vpop.xlane.xlu0 %725
    %v727 = vrcp.pop 32.0
    %v728 = vmul.f32 %v723, %v727
    %v729 = vmul.f32 %v726, %v727
    %v730 = vsub.f32 %v717, %v728
    %v731 = vsub.f32 %v718, %v729
    %v732 = vmul.f32 %v730, %v730
    %v733 = vmul.f32 %v731, %v731
    %v734 = vsel %vm200, %v732, 0.0
    %735 = vadd.xlane.f32.xlu0 %v734
    %v736 = vpop.xlane.xlu0 %735
    %v737 = vsel %vm200, %v733, 0.0
    %738 = vadd.xlane.f32.xlu0 %v737
    %v739 = vpop.xlane.xlu0 %738
    %v740 = vmul.f32 %v736, %v727
    %v741 = vmul.f32 %v739, %v727
    %v742 = vadd.f32 %v740, 1e-05
    %v743 = vadd.f32 %v741, 1e-05
    %v744 = vrsqrt.pop %v742
    %v745 = vrsqrt.pop %v743
    %v746 = vmul.f32 %v730, %v744
    %v747 = vmul.f32 %v731, %v745
    %v749 = vlaneseq
    %v750 = vshrl.u32 %v749, 7
    %v751 = vsub.s32 0, %v750
    %v752 = vrot.slane %v719, %v751
    %v754 = vmul.f32 %v746, %v752
    %v755 = vmul.f32 %v747, %v752
    %v757 = vlaneseq
    %v758 = vshrl.u32 %v757, 7
    %v759 = vsub.s32 0, %v758
    %v760 = vrot.slane %v720, %v759
    %v762 = vadd.f32 %v754, %v760
    %v763 = vadd.f32 %v755, %v760
    %v764 = vld [vmem:[%s29] sm:$0xf]
    %v765 = vld [vmem:[%s29 + $0x4] sm:$0xf]
    %v766 = vld [vmem:[%s29 + $0x8] sm:$0xf]
    %v767 = vld [vmem:[%s29 + $0xc] sm:$0xf]
    %v768 = vpack.c.bf16 %v763, %v762
    %v769 = vld [vmem:[%s31] sm:$0x1]
    %v771 = vlaneseq
    %v772 = vshrl.u32 %v771, 7
    %v773 = vsub.s32 0, %v772
    %v774 = vrot.slane %v769, %v773
    %v780 = vunpack.c.l.b16 %v764
    %v781 = vunpack.c.l.b16 %v765
    %v782 = vunpack.c.l.b16 %v766
    %v783 = vunpack.c.l.b16 %v767
    %v784 = vpack.c.b16 %v781, %v780
    %v785 = vpack.c.b16 %v783, %v782
    %v789 = vsel %vm200, %v768, 0
    %791 = vmatprep.subr.bf16.mxu0 0
    %792 = vmatpush1.bf16.msra.mxu0 %v784
    %793 = vmatprep.subr.bf16.mxu0 0
    %794 = vmatpush1.bf16.msra.mxu0 %v785
    %795 = vmatprep.subr.bf16.mxu0 0
    %796 = vmatpush1.bf16.msra.mxu0 0
    %797 = vmatprep.subr.bf16.mxu0 0
    %798 = vmatpush1.bf16.msra.mxu0 0
    %799 = vmatprep.subr.bf16.mxu0 0
    %800 = vmatpush1.bf16.msra.mxu0 0
    %801 = vmatprep.subr.bf16.mxu0 0
    %802 = vmatpush1.bf16.msra.mxu0 0
    %803 = vmatprep.subr.bf16.mxu0 0
    %804 = vmatpush1.bf16.msra.mxu0 0
    %805 = vmatprep.subr.bf16.mxu0 0
    %806 = vmatpush1.bf16.msra.mxu0 0
    %807 = vmatprep.subr.bf16.mxu0 0
    %808 = vmatpush1.bf16.msra.mxu0 0
    %809 = vmatprep.subr.bf16.mxu0 0
    %810 = vmatpush1.bf16.msra.mxu0 0
    %811 = vmatprep.subr.bf16.mxu0 0
    %812 = vmatpush1.bf16.msra.mxu0 0
    %813 = vmatprep.subr.bf16.mxu0 0
    %814 = vmatpush1.bf16.msra.mxu0 0
    %815 = vmatprep.subr.bf16.mxu0 0
    %816 = vmatpush1.bf16.msra.mxu0 0
    %817 = vmatprep.subr.bf16.mxu0 0
    %818 = vmatpush1.bf16.msra.mxu0 0
    %819 = vmatprep.subr.bf16.mxu0 0
    %820 = vmatpush1.bf16.msra.mxu0 0
    %821 = vmatprep.subr.bf16.mxu0 0
    %822 = vmatpush1.bf16.msra.mxu0 0
    %823 = vmatprep.mubr.bf16.mxu0 0
    %824 = vmatmul.mubr.bf16.gmra.mrb[0].mxu0 %v789
    %v825 = vpop.f32.mrb[0].mxu0
    %v826 = vadd.f32 %v774, %v825
    %v827 = vpop.f32.mrb[0].mxu0
    %v828 = vpop.f32.mrb[0].mxu0
    %v829 = vadd.f32 %v774, %v828
    %v830 = vpop.f32.mrb[0].mxu0
    %831 = vdwg.mxu0
    %832 = vxpose.xlu0.b32.start [1/16] %v239, 128
    %833 = vxpose.xlu0.b32.cont [2/16] %v242, 128
    %834 = vxpose.xlu0.b32.cont [3/16] 0.0, 128
    %835 = vxpose.xlu0.b32.cont [4/16] 0.0, 128
    %836 = vxpose.xlu0.b32.cont [5/16] 0.0, 128
    %837 = vxpose.xlu0.b32.cont [6/16] 0.0, 128
    %838 = vxpose.xlu0.b32.cont [7/16] 0.0, 128
    %839 = vxpose.xlu0.b32.cont [8/16] 0.0, 128
    %840 = vxpose.xlu0.b32.cont [9/16] 0.0, 128
    %841 = vxpose.xlu0.b32.cont [10/16] 0.0, 128
    %842 = vxpose.xlu0.b32.cont [11/16] 0.0, 128
    %843 = vxpose.xlu0.b32.cont [12/16] 0.0, 128
    %844 = vxpose.xlu0.b32.cont [13/16] 0.0, 128
    %845 = vxpose.xlu0.b32.cont [14/16] 0.0, 128
    %846 = vxpose.xlu0.b32.cont [15/16] 0.0, 128
    %847 = vxpose.xlu0.b32.end [16/16] 0.0, 128
    %v848 = vpop.trf.xlu0
    %v849 = vpop.trf.xlu0
    %v850 = vpop.trf.xlu0
    %v851 = vpop.trf.xlu0
    %v852 = vpop.trf.xlu0
    %v853 = vpop.trf.xlu0
    %v854 = vpop.trf.xlu0
    %v855 = vpop.trf.xlu0
    %v856 = vpop.trf.xlu0
    %v857 = vpop.trf.xlu0
    %v858 = vpop.trf.xlu0
    %v859 = vpop.trf.xlu0
    %v860 = vpop.trf.xlu0
    %v861 = vpop.trf.xlu0
    %v862 = vpop.trf.xlu0
    %v863 = vpop.trf.xlu0
    %868 = vrot.lane.b32.xlu0 %v848, 16
    %v869 = vpop.permute.xlu0 %868
    %870 = vrot.lane.b32.xlu0 %v849, 16
    %v871 = vpop.permute.xlu0 %870
    %872 = vrot.lane.b32.xlu0 %v850, 16
    %v873 = vpop.permute.xlu0 %872
    %874 = vrot.lane.b32.xlu0 %v851, 16
    %v875 = vpop.permute.xlu0 %874
    %880 = vrot.lane.b32.xlu0 %v848, 32
    %v881 = vpop.permute.xlu0 %880
    %882 = vrot.lane.b32.xlu0 %v849, 32
    %v883 = vpop.permute.xlu0 %882
    %884 = vrot.lane.b32.xlu0 %v850, 32
    %v885 = vpop.permute.xlu0 %884
    %886 = vrot.lane.b32.xlu0 %v851, 32
    %v887 = vpop.permute.xlu0 %886
    %892 = vrot.lane.b32.xlu0 %v848, 48
    %v893 = vpop.permute.xlu0 %892
    %894 = vrot.lane.b32.xlu0 %v849, 48
    %v895 = vpop.permute.xlu0 %894
    %896 = vrot.lane.b32.xlu0 %v850, 48
    %v897 = vpop.permute.xlu0 %896
    %898 = vrot.lane.b32.xlu0 %v851, 48
    %v899 = vpop.permute.xlu0 %898
    %v904 = vsel %vm393, %v848, %v869
    %v905 = vsel %vm393, %v849, %v871
    %v906 = vsel %vm393, %v850, %v873
    %v907 = vsel %vm393, %v851, %v875
    %v908 = vsel %vm200, %v904, %v881
    %v909 = vsel %vm200, %v905, %v883
    %v910 = vsel %vm200, %v906, %v885
    %v911 = vsel %vm200, %v907, %v887
    %v912 = vsel %vm402, %v908, %v893
    %v913 = vsel %vm402, %v909, %v895
    %v914 = vsel %vm402, %v910, %v897
    %v915 = vsel %vm402, %v911, %v899
    %v916 = vmul.f32 %v912, %v156
    %v917 = vmul.f32 %v913, %v157
    %v918 = vmul.f32 %v914, %v158
    %v919 = vmul.f32 %v915, %v159
    %928 = vrot.lane.b32.xlu0 %v160, 32
    %v929 = vpop.permute.xlu0 %928
    %930 = vrot.lane.b32.xlu0 %v161, 32
    %v931 = vpop.permute.xlu0 %930
    %932 = vrot.lane.b32.xlu0 %v162, 32
    %v933 = vpop.permute.xlu0 %932
    %934 = vrot.lane.b32.xlu0 %v163, 32
    %v935 = vpop.permute.xlu0 %934
    %936 = vrot.lane.b32.xlu0 %v164, 32
    %v937 = vpop.permute.xlu0 %936
    %938 = vrot.lane.b32.xlu0 %v165, 32
    %v939 = vpop.permute.xlu0 %938
    %940 = vrot.lane.b32.xlu0 %v166, 32
    %v941 = vpop.permute.xlu0 %940
    %942 = vrot.lane.b32.xlu0 %v167, 32
    %v943 = vpop.permute.xlu0 %942
    %v952 = vmul.f32 %v239, %v929
    %v953 = vmul.f32 %v242, %v931
    %v954 = vmul.f32 %v239, %v933
    %v955 = vmul.f32 %v242, %v935
    %v956 = vmul.f32 %v239, %v937
    %v957 = vmul.f32 %v242, %v939
    %v958 = vmul.f32 %v239, %v941
    %v959 = vmul.f32 %v242, %v943
    %v960 = vpack.c.bf16 %v829, %v826
    %v961 = vpack.c.bf16 %v917, %v916
    %v962 = vpack.c.bf16 %v919, %v918
    %v964 = vsel %vm200, %v960, 0
    %966 = vmatprep.subr.bf16.mxu0 0
    %967 = vmatpush1.bf16.msra.mxu0 %v961
    %968 = vmatprep.subr.bf16.mxu0 0
    %969 = vmatpush1.bf16.msra.mxu0 %v962
    %970 = vmatprep.subr.bf16.mxu0 0
    %971 = vmatpush1.bf16.msra.mxu0 0
    %972 = vmatprep.subr.bf16.mxu0 0
    %973 = vmatpush1.bf16.msra.mxu0 0
    %974 = vmatprep.subr.bf16.mxu0 0
    %975 = vmatpush1.bf16.msra.mxu0 0
    %976 = vmatprep.subr.bf16.mxu0 0
    %977 = vmatpush1.bf16.msra.mxu0 0
    %978 = vmatprep.subr.bf16.mxu0 0
    %979 = vmatpush1.bf16.msra.mxu0 0
    %980 = vmatprep.subr.bf16.mxu0 0
    %981 = vmatpush1.bf16.msra.mxu0 0
    %982 = vmatprep.subr.bf16.mxu0 0
    %983 = vmatpush1.bf16.msra.mxu0 0
    %984 = vmatprep.subr.bf16.mxu0 0
    %985 = vmatpush1.bf16.msra.mxu0 0
    %986 = vmatprep.subr.bf16.mxu0 0
    %987 = vmatpush1.bf16.msra.mxu0 0
    %988 = vmatprep.subr.bf16.mxu0 0
    %989 = vmatpush1.bf16.msra.mxu0 0
    %990 = vmatprep.subr.bf16.mxu0 0
    %991 = vmatpush1.bf16.msra.mxu0 0
    %992 = vmatprep.subr.bf16.mxu0 0
    %993 = vmatpush1.bf16.msra.mxu0 0
    %994 = vmatprep.subr.bf16.mxu0 0
    %995 = vmatpush1.bf16.msra.mxu0 0
    %996 = vmatprep.subr.bf16.mxu0 0
    %997 = vmatpush1.bf16.msra.mxu0 0
    %998 = vmatprep.mubr.bf16.mxu0 0
    %999 = vmatmul.mubr.bf16.gmra.mrb[0].mxu0 %v964
    %v1000 = vpop.f32.mrb[0].mxu0
    %v1001 = vadd.f32 %v154, %v1000
    %v1002 = vpop.f32.mrb[0].mxu0
    %v1003 = vpop.f32.mrb[0].mxu0
    %v1004 = vadd.f32 %v155, %v1003
    %v1005 = vpop.f32.mrb[0].mxu0
    %1006 = vdwg.mxu0
    %v1007 = vsel %vm498, %v1001, -inf
    %1008 = vmax.xlane.f32.xlu0 %v1007
    %v1009 = vpop.xlane.xlu0 %1008
    %v1010 = vsel %vm498, %v1004, -inf
    %1011 = vmax.xlane.f32.xlu0 %v1010
    %v1012 = vpop.xlane.xlu0 %1011
    %v1013 = vsub.f32 %v1001, %v1009
    %v1014 = vsub.f32 %v1004, %v1012
    %v1015 = vmul.f32 %v1013, 1.442695
    %v1016 = vpow.pop %v1015
    %v1017 = vmul.f32 %v1014, 1.442695
    %v1018 = vpow.pop %v1017
    %v1019 = vpack.c.bf16 %v1018, %v1016
    %v1028 = vunpack.c.l.b16 %v168
    %v1029 = vunpack.c.l.b16 %v169
    %v1030 = vunpack.c.l.b16 %v170
    %v1031 = vunpack.c.l.b16 %v171
    %v1032 = vunpack.c.l.b16 %v172
    %v1033 = vunpack.c.l.b16 %v173
    %v1034 = vunpack.c.l.b16 %v174
    %v1035 = vunpack.c.l.b16 %v175
    %v1036 = vpack.c.b16 %v1029, %v1028
    %v1037 = vpack.c.b16 %v1031, %v1030
    %v1038 = vpack.c.b16 %v1033, %v1032
    %v1039 = vpack.c.b16 %v1035, %v1034
    %v1045 = vsel %vm498, %v1019, 0
    %1047 = vmatprep.subr.bf16.mxu0 0
    %1048 = vmatpush1.bf16.msra.mxu0 %v1036
    %1049 = vmatprep.subr.bf16.mxu0 0
    %1050 = vmatpush1.bf16.msra.mxu0 %v1037
    %1051 = vmatprep.subr.bf16.mxu0 0
    %1052 = vmatpush1.bf16.msra.mxu0 %v1038
    %1053 = vmatprep.subr.bf16.mxu0 0
    %1054 = vmatpush1.bf16.msra.mxu0 %v1039
    %1055 = vmatprep.subr.bf16.mxu0 0
    %1056 = vmatpush1.bf16.msra.mxu0 0
    %1057 = vmatprep.subr.bf16.mxu0 0
    %1058 = vmatpush1.bf16.msra.mxu0 0
    %1059 = vmatprep.subr.bf16.mxu0 0
    %1060 = vmatpush1.bf16.msra.mxu0 0
    %1061 = vmatprep.subr.bf16.mxu0 0
    %1062 = vmatpush1.bf16.msra.mxu0 0
    %1063 = vmatprep.subr.bf16.mxu0 0
    %1064 = vmatpush1.bf16.msra.mxu0 0
    %1065 = vmatprep.subr.bf16.mxu0 0
    %1066 = vmatpush1.bf16.msra.mxu0 0
    %1067 = vmatprep.subr.bf16.mxu0 0
    %1068 = vmatpush1.bf16.msra.mxu0 0
    %1069 = vmatprep.subr.bf16.mxu0 0
    %1070 = vmatpush1.bf16.msra.mxu0 0
    %1071 = vmatprep.subr.bf16.mxu0 0
    %1072 = vmatpush1.bf16.msra.mxu0 0
    %1073 = vmatprep.subr.bf16.mxu0 0
    %1074 = vmatpush1.bf16.msra.mxu0 0
    %1075 = vmatprep.subr.bf16.mxu0 0
    %1076 = vmatpush1.bf16.msra.mxu0 0
    %1077 = vmatprep.subr.bf16.mxu0 0
    %1078 = vmatpush1.bf16.msra.mxu0 0
    %1079 = vmatprep.mubr.bf16.mxu0 0
    %1080 = vmatmul.mubr.bf16.gmra.mrb[0].mxu0 %v1045
    %v1081 = vpop.f32.mrb[0].mxu0
    %v1082 = vadd.f32 0.0, %v1081
    %v1083 = vpop.f32.mrb[0].mxu0
    %v1084 = vpop.f32.mrb[0].mxu0
    %v1085 = vadd.f32 0.0, %v1084
    %v1086 = vpop.f32.mrb[0].mxu0
    %1087 = vdwg.mxu0
    %v1088 = vrcp.pop %v1082
    %v1089 = vrcp.pop %v1085
    %v1090 = vmul.f32 %v1016, %v1088
    %v1091 = vmul.f32 %v1018, %v1089
    %v1092 = vpack.c.bf16 %v1091, %v1090
    %v1093 = vpack.c.bf16 %v953, %v952
    %v1094 = vpack.c.bf16 %v955, %v954
    %v1095 = vpack.c.bf16 %v957, %v956
    %v1096 = vpack.c.bf16 %v959, %v958
    %1101 = vrot.lane.b32.xlu0 %v1093, 96
    %v1102 = vpop.permute.xlu0 %1101
    %1103 = vrot.lane.b32.xlu0 %v1094, 96
    %v1104 = vpop.permute.xlu0 %1103
    %1105 = vrot.lane.b32.xlu0 %v1095, 96
    %v1106 = vpop.permute.xlu0 %1105
    %1107 = vrot.lane.b32.xlu0 %v1096, 96
    %v1108 = vpop.permute.xlu0 %1107
    %v1114 = vsel %vm498, %v1092, 0
    %1116 = vmatprep.subr.bf16.mxu0 0
    %1117 = vmatpush1.bf16.msra.mxu0 %v1102
    %1118 = vmatprep.subr.bf16.mxu0 0
    %1119 = vmatpush1.bf16.msra.mxu0 %v1104
    %1120 = vmatprep.subr.bf16.mxu0 0
    %1121 = vmatpush1.bf16.msra.mxu0 %v1106
    %1122 = vmatprep.subr.bf16.mxu0 0
    %1123 = vmatpush1.bf16.msra.mxu0 %v1108
    %1124 = vmatprep.subr.bf16.mxu0 0
    %1125 = vmatpush1.bf16.msra.mxu0 0
    %1126 = vmatprep.subr.bf16.mxu0 0
    %1127 = vmatpush1.bf16.msra.mxu0 0
    %1128 = vmatprep.subr.bf16.mxu0 0
    %1129 = vmatpush1.bf16.msra.mxu0 0
    %1130 = vmatprep.subr.bf16.mxu0 0
    %1131 = vmatpush1.bf16.msra.mxu0 0
    %1132 = vmatprep.subr.bf16.mxu0 0
    %1133 = vmatpush1.bf16.msra.mxu0 0
    %1134 = vmatprep.subr.bf16.mxu0 0
    %1135 = vmatpush1.bf16.msra.mxu0 0
    %1136 = vmatprep.subr.bf16.mxu0 0
    %1137 = vmatpush1.bf16.msra.mxu0 0
    %1138 = vmatprep.subr.bf16.mxu0 0
    %1139 = vmatpush1.bf16.msra.mxu0 0
    %1140 = vmatprep.subr.bf16.mxu0 0
    %1141 = vmatpush1.bf16.msra.mxu0 0
    %1142 = vmatprep.subr.bf16.mxu0 0
    %1143 = vmatpush1.bf16.msra.mxu0 0
    %1144 = vmatprep.subr.bf16.mxu0 0
    %1145 = vmatpush1.bf16.msra.mxu0 0
    %1146 = vmatprep.subr.bf16.mxu0 0
    %1147 = vmatpush1.bf16.msra.mxu0 0
    %1148 = vmatprep.mubr.bf16.mxu0 0
    %1149 = vmatmul.mubr.bf16.gmra.mrb[0].mxu0 %v1114
    %v1150 = vpop.f32.mrb[0].mxu0
    %v1151 = vadd.f32 0.0, %v1150
    %v1152 = vpop.f32.mrb[0].mxu0
    %v1153 = vpop.f32.mrb[0].mxu0
    %v1154 = vadd.f32 0.0, %v1153
    %v1155 = vpop.f32.mrb[0].mxu0
    %1156 = vdwg.mxu0
    %v1157 = vld [vmem:[%s37] sm:$0xf]
    %v1158 = vld [vmem:[%s37 + $0x4] sm:$0xf]
    %v1159 = vld [vmem:[%s37 + $0x8] sm:$0xf]
    %v1160 = vld [vmem:[%s37 + $0xc] sm:$0xf]
    %v1161 = vpack.c.bf16 %v1154, %v1151
    %v1162 = vld [vmem:[%s39] sm:$0x1]
    %v1164 = vlaneseq
    %v1165 = vshrl.u32 %v1164, 7
    %v1166 = vsub.s32 0, %v1165
    %v1167 = vrot.slane %v1162, %v1166
    %v1173 = vunpack.c.l.b16 %v1157
    %v1174 = vunpack.c.l.b16 %v1158
    %v1175 = vunpack.c.l.b16 %v1159
    %v1176 = vunpack.c.l.b16 %v1160
    %v1177 = vpack.c.b16 %v1174, %v1173
    %v1178 = vpack.c.b16 %v1176, %v1175
    %v1182 = vsel %vm200, %v1161, 0
    %1184 = vmatprep.subr.bf16.mxu0 0
    %1185 = vmatpush1.bf16.msra.mxu0 %v1177
    %1186 = vmatprep.subr.bf16.mxu0 0
    %1187 = vmatpush1.bf16.msra.mxu0 %v1178
    %1188 = vmatprep.subr.bf16.mxu0 0
    %1189 = vmatpush1.bf16.msra.mxu0 0
    %1190 = vmatprep.subr.bf16.mxu0 0
    %1191 = vmatpush1.bf16.msra.mxu0 0
    %1192 = vmatprep.subr.bf16.mxu0 0
    %1193 = vmatpush1.bf16.msra.mxu0 0
    %1194 = vmatprep.subr.bf16.mxu0 0
    %1195 = vmatpush1.bf16.msra.mxu0 0
    %1196 = vmatprep.subr.bf16.mxu0 0
    %1197 = vmatpush1.bf16.msra.mxu0 0
    %1198 = vmatprep.subr.bf16.mxu0 0
    %1199 = vmatpush1.bf16.msra.mxu0 0
    %1200 = vmatprep.subr.bf16.mxu0 0
    %1201 = vmatpush1.bf16.msra.mxu0 0
    %1202 = vmatprep.subr.bf16.mxu0 0
    %1203 = vmatpush1.bf16.msra.mxu0 0
    %1204 = vmatprep.subr.bf16.mxu0 0
    %1205 = vmatpush1.bf16.msra.mxu0 0
    %1206 = vmatprep.subr.bf16.mxu0 0
    %1207 = vmatpush1.bf16.msra.mxu0 0
    %1208 = vmatprep.subr.bf16.mxu0 0
    %1209 = vmatpush1.bf16.msra.mxu0 0
    %1210 = vmatprep.subr.bf16.mxu0 0
    %1211 = vmatpush1.bf16.msra.mxu0 0
    %1212 = vmatprep.subr.bf16.mxu0 0
    %1213 = vmatpush1.bf16.msra.mxu0 0
    %1214 = vmatprep.subr.bf16.mxu0 0
    %1215 = vmatpush1.bf16.msra.mxu0 0
    %1216 = vmatprep.mubr.bf16.mxu0 0
    %1217 = vmatmul.mubr.bf16.gmra.mrb[0].mxu0 %v1182
    %v1218 = vpop.f32.mrb[0].mxu0
    %v1219 = vadd.f32 %v1167, %v1218
    %v1220 = vpop.f32.mrb[0].mxu0
    %v1221 = vpop.f32.mrb[0].mxu0
    %v1222 = vadd.f32 %v1167, %v1221
    %v1223 = vpop.f32.mrb[0].mxu0
    %1224 = vdwg.mxu0
    %v1225 = vadd.f32 %v762, %v1219
    %v1226 = vadd.f32 %v763, %v1222
    %v1227 = vld [vmem:[%s53] sm:$0x1]
    %v1228 = vld [vmem:[%s55] sm:$0x1]
    %v1229 = vsel %vm200, %v1225, 0.0
    %1230 = vadd.xlane.f32.xlu0 %v1229
    %v1231 = vpop.xlane.xlu0 %1230
    %v1232 = vsel %vm200, %v1226, 0.0
    %1233 = vadd.xlane.f32.xlu0 %v1232
    %v1234 = vpop.xlane.xlu0 %1233
    %v1235 = vmul.f32 %v1231, %v727
    %v1236 = vmul.f32 %v1234, %v727
    %v1237 = vsub.f32 %v1225, %v1235
    %v1238 = vsub.f32 %v1226, %v1236
    %v1239 = vmul.f32 %v1237, %v1237
    %v1240 = vmul.f32 %v1238, %v1238
    %v1241 = vsel %vm200, %v1239, 0.0
    %1242 = vadd.xlane.f32.xlu0 %v1241
    %v1243 = vpop.xlane.xlu0 %1242
    %v1244 = vsel %vm200, %v1240, 0.0
    %1245 = vadd.xlane.f32.xlu0 %v1244
    %v1246 = vpop.xlane.xlu0 %1245
    %v1247 = vmul.f32 %v1243, %v727
    %v1248 = vmul.f32 %v1246, %v727
    %v1249 = vadd.f32 %v1247, 1e-05
    %v1250 = vadd.f32 %v1248, 1e-05
    %v1251 = vrsqrt.pop %v1249
    %v1252 = vrsqrt.pop %v1250
    %v1253 = vmul.f32 %v1237, %v1251
    %v1254 = vmul.f32 %v1238, %v1252
    %v1256 = vlaneseq
    %v1257 = vshrl.u32 %v1256, 7
    %v1258 = vsub.s32 0, %v1257
    %v1259 = vrot.slane %v1227, %v1258
    %v1261 = vmul.f32 %v1253, %v1259
    %v1262 = vmul.f32 %v1254, %v1259
    %v1264 = vlaneseq
    %v1265 = vshrl.u32 %v1264, 7
    %v1266 = vsub.s32 0, %v1265
    %v1267 = vrot.slane %v1228, %v1266
    %v1269 = vadd.f32 %v1261, %v1267
    %v1270 = vadd.f32 %v1262, %v1267
    %v1271 = vld [vmem:[%s41] sm:$0xf]
    %v1272 = vld [vmem:[%s41 + $0x4] sm:$0xf]
    %v1273 = vld [vmem:[%s41 + $0x8] sm:$0xf]
    %v1274 = vld [vmem:[%s41 + $0xc] sm:$0xf]
    %v1275 = vpack.c.bf16 %v1270, %v1269
    %v1276 = vld [vmem:[%s43] sm:$0x1]
    %v1278 = vlaneseq
    %v1279 = vshrl.u32 %v1278, 7
    %v1280 = vsub.s32 0, %v1279
    %v1281 = vrot.slane %v1276, %v1280
    %v1287 = vunpack.c.l.b16 %v1271
    %v1288 = vunpack.c.l.b16 %v1272
    %v1289 = vunpack.c.l.b16 %v1273
    %v1290 = vunpack.c.l.b16 %v1274
    %v1291 = vpack.c.b16 %v1288, %v1287
    %v1292 = vpack.c.b16 %v1290, %v1289
    %v1296 = vsel %vm200, %v1275, 0
    %1298 = vmatprep.subr.bf16.mxu0 0
    %1299 = vmatpush1.bf16.msra.mxu0 %v1291
    %1300 = vmatprep.subr.bf16.mxu0 0
    %1301 = vmatpush1.bf16.msra.mxu0 %v1292
    %1302 = vmatprep.subr.bf16.mxu0 0
    %1303 = vmatpush1.bf16.msra.mxu0 0
    %1304 = vmatprep.subr.bf16.mxu0 0
    %1305 = vmatpush1.bf16.msra.mxu0 0
    %1306 = vmatprep.subr.bf16.mxu0 0
    %1307 = vmatpush1.bf16.msra.mxu0 0
    %1308 = vmatprep.subr.bf16.mxu0 0
    %1309 = vmatpush1.bf16.msra.mxu0 0
    %1310 = vmatprep.subr.bf16.mxu0 0
    %1311 = vmatpush1.bf16.msra.mxu0 0
    %1312 = vmatprep.subr.bf16.mxu0 0
    %1313 = vmatpush1.bf16.msra.mxu0 0
    %1314 = vmatprep.subr.bf16.mxu0 0
    %1315 = vmatpush1.bf16.msra.mxu0 0
    %1316 = vmatprep.subr.bf16.mxu0 0
    %1317 = vmatpush1.bf16.msra.mxu0 0
    %1318 = vmatprep.subr.bf16.mxu0 0
    %1319 = vmatpush1.bf16.msra.mxu0 0
    %1320 = vmatprep.subr.bf16.mxu0 0
    %1321 = vmatpush1.bf16.msra.mxu0 0
    %1322 = vmatprep.subr.bf16.mxu0 0
    %1323 = vmatpush1.bf16.msra.mxu0 0
    %1324 = vmatprep.subr.bf16.mxu0 0
    %1325 = vmatpush1.bf16.msra.mxu0 0
    %1326 = vmatprep.subr.bf16.mxu0 0
    %1327 = vmatpush1.bf16.msra.mxu0 0
    %1328 = vmatprep.subr.bf16.mxu0 0
    %1329 = vmatpush1.bf16.msra.mxu0 0
    %1330 = vmatprep.mubr.bf16.mxu0 0
    %1331 = vmatmul.mubr.bf16.gmra.mrb[0].mxu0 %v1296
    %v1332 = vpop.f32.mrb[0].mxu0
    %v1333 = vadd.f32 %v1281, %v1332
    %v1334 = vpop.f32.mrb[0].mxu0
    %v1335 = vpop.f32.mrb[0].mxu0
    %v1336 = vadd.f32 %v1281, %v1335
    %v1337 = vpop.f32.mrb[0].mxu0
    %1338 = vdwg.mxu0
    %v1339 = vmax.f32 %v1333, 0.0
    %v1340 = vmax.f32 %v1336, 0.0
    %v1341 = vld [vmem:[%s45] sm:$0xf]
    %v1342 = vld [vmem:[%s45 + $0x4] sm:$0xf]
    %v1343 = vld [vmem:[%s45 + $0x8] sm:$0xf]
    %v1344 = vld [vmem:[%s45 + $0xc] sm:$0xf]
    %v1345 = vld [vmem:[%s45 + $0x10] sm:$0xf]
    %v1346 = vld [vmem:[%s45 + $0x14] sm:$0xf]
    %v1347 = vld [vmem:[%s45 + $0x18] sm:$0xf]
    %v1348 = vld [vmem:[%s45 + $0x1c] sm:$0xf]
    %v1349 = vpack.c.bf16 %v1340, %v1339
    %v1350 = vld [vmem:[%s47] sm:$0x1]
    %v1352 = vlaneseq
    %v1353 = vshrl.u32 %v1352, 7
    %v1354 = vsub.s32 0, %v1353
    %v1355 = vrot.slane %v1350, %v1354
    %v1365 = vunpack.c.l.b16 %v1341
    %v1366 = vunpack.c.l.b16 %v1342
    %v1367 = vunpack.c.l.b16 %v1343
    %v1368 = vunpack.c.l.b16 %v1344
    %v1369 = vunpack.c.l.b16 %v1345
    %v1370 = vunpack.c.l.b16 %v1346
    %v1371 = vunpack.c.l.b16 %v1347
    %v1372 = vunpack.c.l.b16 %v1348
    %v1373 = vpack.c.b16 %v1366, %v1365
    %v1374 = vpack.c.b16 %v1368, %v1367
    %v1375 = vpack.c.b16 %v1370, %v1369
    %v1376 = vpack.c.b16 %v1372, %v1371
    %v1382 = vsel %vm498, %v1349, 0
    %1384 = vmatprep.subr.bf16.mxu0 0
    %1385 = vmatpush1.bf16.msra.mxu0 %v1373
    %1386 = vmatprep.subr.bf16.mxu0 0
    %1387 = vmatpush1.bf16.msra.mxu0 %v1374
    %1388 = vmatprep.subr.bf16.mxu0 0
    %1389 = vmatpush1.bf16.msra.mxu0 %v1375
    %1390 = vmatprep.subr.bf16.mxu0 0
    %1391 = vmatpush1.bf16.msra.mxu0 %v1376
    %1392 = vmatprep.subr.bf16.mxu0 0
    %1393 = vmatpush1.bf16.msra.mxu0 0
    %1394 = vmatprep.subr.bf16.mxu0 0
    %1395 = vmatpush1.bf16.msra.mxu0 0
    %1396 = vmatprep.subr.bf16.mxu0 0
    %1397 = vmatpush1.bf16.msra.mxu0 0
    %1398 = vmatprep.subr.bf16.mxu0 0
    %1399 = vmatpush1.bf16.msra.mxu0 0
    %1400 = vmatprep.subr.bf16.mxu0 0
    %1401 = vmatpush1.bf16.msra.mxu0 0
    %1402 = vmatprep.subr.bf16.mxu0 0
    %1403 = vmatpush1.bf16.msra.mxu0 0
    %1404 = vmatprep.subr.bf16.mxu0 0
    %1405 = vmatpush1.bf16.msra.mxu0 0
    %1406 = vmatprep.subr.bf16.mxu0 0
    %1407 = vmatpush1.bf16.msra.mxu0 0
    %1408 = vmatprep.subr.bf16.mxu0 0
    %1409 = vmatpush1.bf16.msra.mxu0 0
    %1410 = vmatprep.subr.bf16.mxu0 0
    %1411 = vmatpush1.bf16.msra.mxu0 0
    %1412 = vmatprep.subr.bf16.mxu0 0
    %1413 = vmatpush1.bf16.msra.mxu0 0
    %1414 = vmatprep.subr.bf16.mxu0 0
    %1415 = vmatpush1.bf16.msra.mxu0 0
    %1416 = vmatprep.mubr.bf16.mxu0 0
    %1417 = vmatmul.mubr.bf16.gmra.mrb[0].mxu0 %v1382
    %v1418 = vpop.f32.mrb[0].mxu0
    %v1419 = vadd.f32 %v1355, %v1418
    %v1420 = vpop.f32.mrb[0].mxu0
    %v1421 = vpop.f32.mrb[0].mxu0
    %v1422 = vadd.f32 %v1355, %v1421
    %v1423 = vpop.f32.mrb[0].mxu0
    %1424 = vdwg.mxu0
    %v1425 = vadd.f32 %v1269, %v1419
    %v1426 = vadd.f32 %v1270, %v1422
    %v1427 = vld [vmem:[%s57] sm:$0x1]
    %v1428 = vld [vmem:[%s59] sm:$0x1]
    %v1429 = vsel %vm200, %v1425, 0.0
    %1430 = vadd.xlane.f32.xlu0 %v1429
    %v1431 = vpop.xlane.xlu0 %1430
    %v1432 = vsel %vm200, %v1426, 0.0
    %1433 = vadd.xlane.f32.xlu0 %v1432
    %v1434 = vpop.xlane.xlu0 %1433
    %v1435 = vmul.f32 %v1431, %v727
    %v1436 = vmul.f32 %v1434, %v727
    %v1437 = vsub.f32 %v1425, %v1435
    %v1438 = vsub.f32 %v1426, %v1436
    %v1439 = vmul.f32 %v1437, %v1437
    %v1440 = vmul.f32 %v1438, %v1438
    %v1441 = vsel %vm200, %v1439, 0.0
    %1442 = vadd.xlane.f32.xlu0 %v1441
    %v1443 = vpop.xlane.xlu0 %1442
    %v1444 = vsel %vm200, %v1440, 0.0
    %1445 = vadd.xlane.f32.xlu0 %v1444
    %v1446 = vpop.xlane.xlu0 %1445
    %v1447 = vmul.f32 %v1443, %v727
    %v1448 = vmul.f32 %v1446, %v727
    %v1449 = vadd.f32 %v1447, 1e-05
    %v1450 = vadd.f32 %v1448, 1e-05
    %v1451 = vrsqrt.pop %v1449
    %v1452 = vrsqrt.pop %v1450
    %v1453 = vmul.f32 %v1437, %v1451
    %v1454 = vmul.f32 %v1438, %v1452
    %v1456 = vlaneseq
    %v1457 = vshrl.u32 %v1456, 7
    %v1458 = vsub.s32 0, %v1457
    %v1459 = vrot.slane %v1427, %v1458
    %v1461 = vmul.f32 %v1453, %v1459
    %v1462 = vmul.f32 %v1454, %v1459
    %v1464 = vlaneseq
    %v1465 = vshrl.u32 %v1464, 7
    %v1466 = vsub.s32 0, %v1465
    %v1467 = vrot.slane %v1428, %v1466
    %v1469 = vadd.f32 %v1461, %v1467
    %v1470 = vadd.f32 %v1462, %v1467
    %s1471 = scalar_lea.vmem %s21, 16
    %v1472 = vld [vmem:[%s1471] sm:$0xf]
    %v1473 = vld [vmem:[%s1471 + $0x4] sm:$0xf]
    %v1474 = vld [vmem:[%s1471 + $0x8] sm:$0xf]
    %v1475 = vld [vmem:[%s1471 + $0xc] sm:$0xf]
    %v1476 = vpack.c.bf16 %v1470, %v1469
    %s1477 = scalar_lea.vmem %s23, 1
    %v1478 = vld [vmem:[%s1477] sm:$0x1]
    %v1480 = vlaneseq
    %v1481 = vshrl.u32 %v1480, 7
    %v1482 = vsub.s32 0, %v1481
    %v1483 = vrot.slane %v1478, %v1482
    %v1489 = vunpack.c.l.b16 %v1472
    %v1490 = vunpack.c.l.b16 %v1473
    %v1491 = vunpack.c.l.b16 %v1474
    %v1492 = vunpack.c.l.b16 %v1475
    %v1493 = vpack.c.b16 %v1490, %v1489
    %v1494 = vpack.c.b16 %v1492, %v1491
    %v1498 = vsel %vm200, %v1476, 0
    %1500 = vmatprep.subr.bf16.mxu0 0
    %1501 = vmatpush1.bf16.msra.mxu0 %v1493
    %1502 = vmatprep.subr.bf16.mxu0 0
    %1503 = vmatpush1.bf16.msra.mxu0 %v1494
    %1504 = vmatprep.subr.bf16.mxu0 0
    %1505 = vmatpush1.bf16.msra.mxu0 0
    %1506 = vmatprep.subr.bf16.mxu0 0
    %1507 = vmatpush1.bf16.msra.mxu0 0
    %1508 = vmatprep.subr.bf16.mxu0 0
    %1509 = vmatpush1.bf16.msra.mxu0 0
    %1510 = vmatprep.subr.bf16.mxu0 0
    %1511 = vmatpush1.bf16.msra.mxu0 0
    %1512 = vmatprep.subr.bf16.mxu0 0
    %1513 = vmatpush1.bf16.msra.mxu0 0
    %1514 = vmatprep.subr.bf16.mxu0 0
    %1515 = vmatpush1.bf16.msra.mxu0 0
    %1516 = vmatprep.subr.bf16.mxu0 0
    %1517 = vmatpush1.bf16.msra.mxu0 0
    %1518 = vmatprep.subr.bf16.mxu0 0
    %1519 = vmatpush1.bf16.msra.mxu0 0
    %1520 = vmatprep.subr.bf16.mxu0 0
    %1521 = vmatpush1.bf16.msra.mxu0 0
    %1522 = vmatprep.subr.bf16.mxu0 0
    %1523 = vmatpush1.bf16.msra.mxu0 0
    %1524 = vmatprep.subr.bf16.mxu0 0
    %1525 = vmatpush1.bf16.msra.mxu0 0
    %1526 = vmatprep.subr.bf16.mxu0 0
    %1527 = vmatpush1.bf16.msra.mxu0 0
    %1528 = vmatprep.subr.bf16.mxu0 0
    %1529 = vmatpush1.bf16.msra.mxu0 0
    %1530 = vmatprep.subr.bf16.mxu0 0
    %1531 = vmatpush1.bf16.msra.mxu0 0
    %1532 = vmatprep.mubr.bf16.mxu0 0
    %1533 = vmatmul.mubr.bf16.gmra.mrb[0].mxu0 %v1498
    %v1534 = vpop.f32.mrb[0].mxu0
    %v1535 = vadd.f32 %v1483, %v1534
    %v1536 = vpop.f32.mrb[0].mxu0
    %v1537 = vpop.f32.mrb[0].mxu0
    %v1538 = vadd.f32 %v1483, %v1537
    %v1539 = vpop.f32.mrb[0].mxu0
    %1540 = vdwg.mxu0
    %1543 = vrot.lane.b32.xlu0 %v1535, 96
    %v1544 = vpop.permute.xlu0 %1543
    %1545 = vrot.lane.b32.xlu0 %v1538, 96
    %v1546 = vpop.permute.xlu0 %1545
    %1549 = vxpose.xlu0.b32.start [1/16] %v1544, 128
    %1550 = vxpose.xlu0.b32.cont [2/16] %v1546, 128
    %1551 = vxpose.xlu0.b32.cont [3/16] 0.0, 128
    %1552 = vxpose.xlu0.b32.cont [4/16] 0.0, 128
    %1553 = vxpose.xlu0.b32.cont [5/16] 0.0, 128
    %1554 = vxpose.xlu0.b32.cont [6/16] 0.0, 128
    %1555 = vxpose.xlu0.b32.cont [7/16] 0.0, 128
    %1556 = vxpose.xlu0.b32.cont [8/16] 0.0, 128
    %1557 = vxpose.xlu0.b32.cont [9/16] 0.0, 128
    %1558 = vxpose.xlu0.b32.cont [10/16] 0.0, 128
    %1559 = vxpose.xlu0.b32.cont [11/16] 0.0, 128
    %1560 = vxpose.xlu0.b32.cont [12/16] 0.0, 128
    %1561 = vxpose.xlu0.b32.cont [13/16] 0.0, 128
    %1562 = vxpose.xlu0.b32.cont [14/16] 0.0, 128
    %1563 = vxpose.xlu0.b32.cont [15/16] 0.0, 128
    %1564 = vxpose.xlu0.b32.end [16/16] 0.0, 128
    %v1565 = vpop.trf.xlu0
    %v1566 = vpop.trf.xlu0
    %v1567 = vpop.trf.xlu0
    %v1568 = vpop.trf.xlu0
    %v1569 = vpop.trf.xlu0
    %v1570 = vpop.trf.xlu0
    %v1571 = vpop.trf.xlu0
    %v1572 = vpop.trf.xlu0
    %v1573 = vpop.trf.xlu0
    %v1574 = vpop.trf.xlu0
    %v1575 = vpop.trf.xlu0
    %v1576 = vpop.trf.xlu0
    %v1577 = vpop.trf.xlu0
    %v1578 = vpop.trf.xlu0
    %v1579 = vpop.trf.xlu0
    %v1580 = vpop.trf.xlu0
    %1585 = vrot.lane.b32.xlu0 %v1565, 16
    %v1586 = vpop.permute.xlu0 %1585
    %1587 = vrot.lane.b32.xlu0 %v1566, 16
    %v1588 = vpop.permute.xlu0 %1587
    %1589 = vrot.lane.b32.xlu0 %v1567, 16
    %v1590 = vpop.permute.xlu0 %1589
    %1591 = vrot.lane.b32.xlu0 %v1568, 16
    %v1592 = vpop.permute.xlu0 %1591
    %1597 = vrot.lane.b32.xlu0 %v1565, 32
    %v1598 = vpop.permute.xlu0 %1597
    %1599 = vrot.lane.b32.xlu0 %v1566, 32
    %v1600 = vpop.permute.xlu0 %1599
    %1601 = vrot.lane.b32.xlu0 %v1567, 32
    %v1602 = vpop.permute.xlu0 %1601
    %1603 = vrot.lane.b32.xlu0 %v1568, 32
    %v1604 = vpop.permute.xlu0 %1603
    %1609 = vrot.lane.b32.xlu0 %v1565, 48
    %v1610 = vpop.permute.xlu0 %1609
    %1611 = vrot.lane.b32.xlu0 %v1566, 48
    %v1612 = vpop.permute.xlu0 %1611
    %1613 = vrot.lane.b32.xlu0 %v1567, 48
    %v1614 = vpop.permute.xlu0 %1613
    %1615 = vrot.lane.b32.xlu0 %v1568, 48
    %v1616 = vpop.permute.xlu0 %1615
    %v1621 = vsel %vm393, %v1565, %v1586
    %v1622 = vsel %vm393, %v1566, %v1588
    %v1623 = vsel %vm393, %v1567, %v1590
    %v1624 = vsel %vm393, %v1568, %v1592
    %v1625 = vsel %vm200, %v1621, %v1598
    %v1626 = vsel %vm200, %v1622, %v1600
    %v1627 = vsel %vm200, %v1623, %v1602
    %v1628 = vsel %vm200, %v1624, %v1604
    %v1629 = vsel %vm402, %v1625, %v1610
    %v1630 = vsel %vm402, %v1626, %v1612
    %v1631 = vsel %vm402, %v1627, %v1614
    %v1632 = vsel %vm402, %v1628, %v1616
    %v1633 = vmul.f32 %v1629, %v134
    %v1634 = vmul.f32 %v1630, %v135
    %v1635 = vmul.f32 %v1631, %v136
    %v1636 = vmul.f32 %v1632, %v137
    %v1637 = vmul.f32 %v1535, %v420
    %v1638 = vmul.f32 %v1538, %v422
    %v1639 = vmul.f32 %v1535, %v424
    %v1640 = vmul.f32 %v1538, %v426
    %v1641 = vmul.f32 %v1535, %v428
    %v1642 = vmul.f32 %v1538, %v430
    %v1643 = vmul.f32 %v1535, %v432
    %v1644 = vmul.f32 %v1538, %v434
    %v1645 = vpack.c.bf16 %v1538, %v1535
    %v1646 = vpack.c.bf16 %v1634, %v1633
    %v1647 = vpack.c.bf16 %v1636, %v1635
    %v1649 = vsel %vm200, %v1645, 0
    %1651 = vmatprep.subr.bf16.mxu0 0
    %1652 = vmatpush1.bf16.msra.mxu0 %v1646
    %1653 = vmatprep.subr.bf16.mxu0 0
    %1654 = vmatpush1.bf16.msra.mxu0 %v1647
    %1655 = vmatprep.subr.bf16.mxu0 0
    %1656 = vmatpush1.bf16.msra.mxu0 0
    %1657 = vmatprep.subr.bf16.mxu0 0
    %1658 = vmatpush1.bf16.msra.mxu0 0
    %1659 = vmatprep.subr.bf16.mxu0 0
    %1660 = vmatpush1.bf16.msra.mxu0 0
    %1661 = vmatprep.subr.bf16.mxu0 0
    %1662 = vmatpush1.bf16.msra.mxu0 0
    %1663 = vmatprep.subr.bf16.mxu0 0
    %1664 = vmatpush1.bf16.msra.mxu0 0
    %1665 = vmatprep.subr.bf16.mxu0 0
    %1666 = vmatpush1.bf16.msra.mxu0 0
    %1667 = vmatprep.subr.bf16.mxu0 0
    %1668 = vmatpush1.bf16.msra.mxu0 0
    %1669 = vmatprep.subr.bf16.mxu0 0
    %1670 = vmatpush1.bf16.msra.mxu0 0
    %1671 = vmatprep.subr.bf16.mxu0 0
    %1672 = vmatpush1.bf16.msra.mxu0 0
    %1673 = vmatprep.subr.bf16.mxu0 0
    %1674 = vmatpush1.bf16.msra.mxu0 0
    %1675 = vmatprep.subr.bf16.mxu0 0
    %1676 = vmatpush1.bf16.msra.mxu0 0
    %1677 = vmatprep.subr.bf16.mxu0 0
    %1678 = vmatpush1.bf16.msra.mxu0 0
    %1679 = vmatprep.subr.bf16.mxu0 0
    %1680 = vmatpush1.bf16.msra.mxu0 0
    %1681 = vmatprep.subr.bf16.mxu0 0
    %1682 = vmatpush1.bf16.msra.mxu0 0
    %1683 = vmatprep.mubr.bf16.mxu0 0
    %1684 = vmatmul.mubr.bf16.gmra.mrb[0].mxu0 %v1649
    %v1685 = vpop.f32.mrb[0].mxu0
    %v1686 = vadd.f32 %v132, %v1685
    %v1687 = vpop.f32.mrb[0].mxu0
    %v1688 = vpop.f32.mrb[0].mxu0
    %v1689 = vadd.f32 %v133, %v1688
    %v1690 = vpop.f32.mrb[0].mxu0
    %1691 = vdwg.mxu0
    %v1692 = vsel %vm498, %v1686, -inf
    %1693 = vmax.xlane.f32.xlu0 %v1692
    %v1694 = vpop.xlane.xlu0 %1693
    %v1695 = vsel %vm498, %v1689, -inf
    %1696 = vmax.xlane.f32.xlu0 %v1695
    %v1697 = vpop.xlane.xlu0 %1696
    %v1698 = vsub.f32 %v1686, %v1694
    %v1699 = vsub.f32 %v1689, %v1697
    %v1700 = vmul.f32 %v1698, 1.442695
    %v1701 = vpow.pop %v1700
    %v1702 = vmul.f32 %v1699, 1.442695
    %v1703 = vpow.pop %v1702
    %v1704 = vpack.c.bf16 %v1703, %v1701
    %v1706 = vsel %vm498, %v1704, 0
    %1708 = vmatprep.subr.bf16.mxu0 0
    %1709 = vmatpush1.bf16.msra.mxu0 %v528
    %1710 = vmatprep.subr.bf16.mxu0 0
    %1711 = vmatpush1.bf16.msra.mxu0 %v529
    %1712 = vmatprep.subr.bf16.mxu0 0
    %1713 = vmatpush1.bf16.msra.mxu0 %v530
    %1714 = vmatprep.subr.bf16.mxu0 0
    %1715 = vmatpush1.bf16.msra.mxu0 %v531
    %1716 = vmatprep.subr.bf16.mxu0 0
    %1717 = vmatpush1.bf16.msra.mxu0 0
    %1718 = vmatprep.subr.bf16.mxu0 0
    %1719 = vmatpush1.bf16.msra.mxu0 0
    %1720 = vmatprep.subr.bf16.mxu0 0
    %1721 = vmatpush1.bf16.msra.mxu0 0
    %1722 = vmatprep.subr.bf16.mxu0 0
    %1723 = vmatpush1.bf16.msra.mxu0 0
    %1724 = vmatprep.subr.bf16.mxu0 0
    %1725 = vmatpush1.bf16.msra.mxu0 0
    %1726 = vmatprep.subr.bf16.mxu0 0
    %1727 = vmatpush1.bf16.msra.mxu0 0
    %1728 = vmatprep.subr.bf16.mxu0 0
    %1729 = vmatpush1.bf16.msra.mxu0 0
    %1730 = vmatprep.subr.bf16.mxu0 0
    %1731 = vmatpush1.bf16.msra.mxu0 0
    %1732 = vmatprep.subr.bf16.mxu0 0
    %1733 = vmatpush1.bf16.msra.mxu0 0
    %1734 = vmatprep.subr.bf16.mxu0 0
    %1735 = vmatpush1.bf16.msra.mxu0 0
    %1736 = vmatprep.subr.bf16.mxu0 0
    %1737 = vmatpush1.bf16.msra.mxu0 0
    %1738 = vmatprep.subr.bf16.mxu0 0
    %1739 = vmatpush1.bf16.msra.mxu0 0
    %1740 = vmatprep.mubr.bf16.mxu0 0
    %1741 = vmatmul.mubr.bf16.gmra.mrb[0].mxu0 %v1706
    %v1742 = vpop.f32.mrb[0].mxu0
    %v1743 = vadd.f32 0.0, %v1742
    %v1744 = vpop.f32.mrb[0].mxu0
    %v1745 = vpop.f32.mrb[0].mxu0
    %v1746 = vadd.f32 0.0, %v1745
    %v1747 = vpop.f32.mrb[0].mxu0
    %1748 = vdwg.mxu0
    %v1749 = vrcp.pop %v1743
    %v1750 = vrcp.pop %v1746
    %v1751 = vmul.f32 %v1701, %v1749
    %v1752 = vmul.f32 %v1703, %v1750
    %v1753 = vpack.c.bf16 %v1752, %v1751
    %v1754 = vpack.c.bf16 %v1638, %v1637
    %v1755 = vpack.c.bf16 %v1640, %v1639
    %v1756 = vpack.c.bf16 %v1642, %v1641
    %v1757 = vpack.c.bf16 %v1644, %v1643
    %1762 = vrot.lane.b32.xlu0 %v1754, 64
    %v1763 = vpop.permute.xlu0 %1762
    %1764 = vrot.lane.b32.xlu0 %v1755, 64
    %v1765 = vpop.permute.xlu0 %1764
    %1766 = vrot.lane.b32.xlu0 %v1756, 64
    %v1767 = vpop.permute.xlu0 %1766
    %1768 = vrot.lane.b32.xlu0 %v1757, 64
    %v1769 = vpop.permute.xlu0 %1768
    %v1775 = vsel %vm498, %v1753, 0
    %1777 = vmatprep.subr.bf16.mxu0 0
    %1778 = vmatpush1.bf16.msra.mxu0 %v1763
    %1779 = vmatprep.subr.bf16.mxu0 0
    %1780 = vmatpush1.bf16.msra.mxu0 %v1765
    %1781 = vmatprep.subr.bf16.mxu0 0
    %1782 = vmatpush1.bf16.msra.mxu0 %v1767
    %1783 = vmatprep.subr.bf16.mxu0 0
    %1784 = vmatpush1.bf16.msra.mxu0 %v1769
    %1785 = vmatprep.subr.bf16.mxu0 0
    %1786 = vmatpush1.bf16.msra.mxu0 0
    %1787 = vmatprep.subr.bf16.mxu0 0
    %1788 = vmatpush1.bf16.msra.mxu0 0
    %1789 = vmatprep.subr.bf16.mxu0 0
    %1790 = vmatpush1.bf16.msra.mxu0 0
    %1791 = vmatprep.subr.bf16.mxu0 0
    %1792 = vmatpush1.bf16.msra.mxu0 0
    %1793 = vmatprep.subr.bf16.mxu0 0
    %1794 = vmatpush1.bf16.msra.mxu0 0
    %1795 = vmatprep.subr.bf16.mxu0 0
    %1796 = vmatpush1.bf16.msra.mxu0 0
    %1797 = vmatprep.subr.bf16.mxu0 0
    %1798 = vmatpush1.bf16.msra.mxu0 0
    %1799 = vmatprep.subr.bf16.mxu0 0
    %1800 = vmatpush1.bf16.msra.mxu0 0
    %1801 = vmatprep.subr.bf16.mxu0 0
    %1802 = vmatpush1.bf16.msra.mxu0 0
    %1803 = vmatprep.subr.bf16.mxu0 0
    %1804 = vmatpush1.bf16.msra.mxu0 0
    %1805 = vmatprep.subr.bf16.mxu0 0
    %1806 = vmatpush1.bf16.msra.mxu0 0
    %1807 = vmatprep.subr.bf16.mxu0 0
    %1808 = vmatpush1.bf16.msra.mxu0 0
    %1809 = vmatprep.mubr.bf16.mxu0 0
    %1810 = vmatmul.mubr.bf16.gmra.mrb[0].mxu0 %v1775
    %v1811 = vpop.f32.mrb[0].mxu0
    %v1812 = vadd.f32 0.0, %v1811
    %v1813 = vpop.f32.mrb[0].mxu0
    %v1814 = vpop.f32.mrb[0].mxu0
    %v1815 = vadd.f32 0.0, %v1814
    %v1816 = vpop.f32.mrb[0].mxu0
    %1817 = vdwg.mxu0
    %s1818 = scalar_lea.vmem %s25, 16
    %v1819 = vld [vmem:[%s1818] sm:$0xf]
    %v1820 = vld [vmem:[%s1818 + $0x4] sm:$0xf]
    %v1821 = vld [vmem:[%s1818 + $0x8] sm:$0xf]
    %v1822 = vld [vmem:[%s1818 + $0xc] sm:$0xf]
    %v1823 = vpack.c.bf16 %v1815, %v1812
    %s1824 = scalar_lea.vmem %s27, 1
    %v1825 = vld [vmem:[%s1824] sm:$0x1]
    %v1827 = vlaneseq
    %v1828 = vshrl.u32 %v1827, 7
    %v1829 = vsub.s32 0, %v1828
    %v1830 = vrot.slane %v1825, %v1829
    %v1836 = vunpack.c.l.b16 %v1819
    %v1837 = vunpack.c.l.b16 %v1820
    %v1838 = vunpack.c.l.b16 %v1821
    %v1839 = vunpack.c.l.b16 %v1822
    %v1840 = vpack.c.b16 %v1837, %v1836
    %v1841 = vpack.c.b16 %v1839, %v1838
    %v1845 = vsel %vm200, %v1823, 0
    %1847 = vmatprep.subr.bf16.mxu0 0
    %1848 = vmatpush1.bf16.msra.mxu0 %v1840
    %1849 = vmatprep.subr.bf16.mxu0 0
    %1850 = vmatpush1.bf16.msra.mxu0 %v1841
    %1851 = vmatprep.subr.bf16.mxu0 0
    %1852 = vmatpush1.bf16.msra.mxu0 0
    %1853 = vmatprep.subr.bf16.mxu0 0
    %1854 = vmatpush1.bf16.msra.mxu0 0
    %1855 = vmatprep.subr.bf16.mxu0 0
    %1856 = vmatpush1.bf16.msra.mxu0 0
    %1857 = vmatprep.subr.bf16.mxu0 0
    %1858 = vmatpush1.bf16.msra.mxu0 0
    %1859 = vmatprep.subr.bf16.mxu0 0
    %1860 = vmatpush1.bf16.msra.mxu0 0
    %1861 = vmatprep.subr.bf16.mxu0 0
    %1862 = vmatpush1.bf16.msra.mxu0 0
    %1863 = vmatprep.subr.bf16.mxu0 0
    %1864 = vmatpush1.bf16.msra.mxu0 0
    %1865 = vmatprep.subr.bf16.mxu0 0
    %1866 = vmatpush1.bf16.msra.mxu0 0
    %1867 = vmatprep.subr.bf16.mxu0 0
    %1868 = vmatpush1.bf16.msra.mxu0 0
    %1869 = vmatprep.subr.bf16.mxu0 0
    %1870 = vmatpush1.bf16.msra.mxu0 0
    %1871 = vmatprep.subr.bf16.mxu0 0
    %1872 = vmatpush1.bf16.msra.mxu0 0
    %1873 = vmatprep.subr.bf16.mxu0 0
    %1874 = vmatpush1.bf16.msra.mxu0 0
    %1875 = vmatprep.subr.bf16.mxu0 0
    %1876 = vmatpush1.bf16.msra.mxu0 0
    %1877 = vmatprep.subr.bf16.mxu0 0
    %1878 = vmatpush1.bf16.msra.mxu0 0
    %1879 = vmatprep.mubr.bf16.mxu0 0
    %1880 = vmatmul.mubr.bf16.gmra.mrb[0].mxu0 %v1845
    %v1881 = vpop.f32.mrb[0].mxu0
    %v1882 = vadd.f32 %v1830, %v1881
    %v1883 = vpop.f32.mrb[0].mxu0
    %v1884 = vpop.f32.mrb[0].mxu0
    %v1885 = vadd.f32 %v1830, %v1884
    %v1886 = vpop.f32.mrb[0].mxu0
    %1887 = vdwg.mxu0
    %v1888 = vadd.f32 %v1469, %v1882
    %v1889 = vadd.f32 %v1470, %v1885
    %s1890 = scalar_lea.vmem %s49, 1
    %v1891 = vld [vmem:[%s1890] sm:$0x1]
    %s1892 = scalar_lea.vmem %s51, 1
    %v1893 = vld [vmem:[%s1892] sm:$0x1]
    %v1894 = vsel %vm200, %v1888, 0.0
    %1895 = vadd.xlane.f32.xlu0 %v1894
    %v1896 = vpop.xlane.xlu0 %1895
    %v1897 = vsel %vm200, %v1889, 0.0
    %1898 = vadd.xlane.f32.xlu0 %v1897
    %v1899 = vpop.xlane.xlu0 %1898
    %v1900 = vmul.f32 %v1896, %v727
    %v1901 = vmul.f32 %v1899, %v727
    %v1902 = vsub.f32 %v1888, %v1900
    %v1903 = vsub.f32 %v1889, %v1901
    %v1904 = vmul.f32 %v1902, %v1902
    %v1905 = vmul.f32 %v1903, %v1903
    %v1906 = vsel %vm200, %v1904, 0.0
    %1907 = vadd.xlane.f32.xlu0 %v1906
    %v1908 = vpop.xlane.xlu0 %1907
    %v1909 = vsel %vm200, %v1905, 0.0
    %1910 = vadd.xlane.f32.xlu0 %v1909
    %v1911 = vpop.xlane.xlu0 %1910
    %v1912 = vmul.f32 %v1908, %v727
    %v1913 = vmul.f32 %v1911, %v727
    %v1914 = vadd.f32 %v1912, 1e-05
    %v1915 = vadd.f32 %v1913, 1e-05
    %v1916 = vrsqrt.pop %v1914
    %v1917 = vrsqrt.pop %v1915
    %v1918 = vmul.f32 %v1902, %v1916
    %v1919 = vmul.f32 %v1903, %v1917
    %v1921 = vlaneseq
    %v1922 = vshrl.u32 %v1921, 7
    %v1923 = vsub.s32 0, %v1922
    %v1924 = vrot.slane %v1891, %v1923
    %v1926 = vmul.f32 %v1918, %v1924
    %v1927 = vmul.f32 %v1919, %v1924
    %v1929 = vlaneseq
    %v1930 = vshrl.u32 %v1929, 7
    %v1931 = vsub.s32 0, %v1930
    %v1932 = vrot.slane %v1893, %v1931
    %v1934 = vadd.f32 %v1926, %v1932
    %v1935 = vadd.f32 %v1927, %v1932
    %s1936 = scalar_lea.vmem %s29, 16
    %v1937 = vld [vmem:[%s1936] sm:$0xf]
    %v1938 = vld [vmem:[%s1936 + $0x4] sm:$0xf]
    %v1939 = vld [vmem:[%s1936 + $0x8] sm:$0xf]
    %v1940 = vld [vmem:[%s1936 + $0xc] sm:$0xf]
    %v1941 = vpack.c.bf16 %v1935, %v1934
    %s1942 = scalar_lea.vmem %s31, 1
    %v1943 = vld [vmem:[%s1942] sm:$0x1]
    %v1945 = vlaneseq
    %v1946 = vshrl.u32 %v1945, 7
    %v1947 = vsub.s32 0, %v1946
    %v1948 = vrot.slane %v1943, %v1947
    %v1954 = vunpack.c.l.b16 %v1937
    %v1955 = vunpack.c.l.b16 %v1938
    %v1956 = vunpack.c.l.b16 %v1939
    %v1957 = vunpack.c.l.b16 %v1940
    %v1958 = vpack.c.b16 %v1955, %v1954
    %v1959 = vpack.c.b16 %v1957, %v1956
    %v1963 = vsel %vm200, %v1941, 0
    %1965 = vmatprep.subr.bf16.mxu0 0
    %1966 = vmatpush1.bf16.msra.mxu0 %v1958
    %1967 = vmatprep.subr.bf16.mxu0 0
    %1968 = vmatpush1.bf16.msra.mxu0 %v1959
    %1969 = vmatprep.subr.bf16.mxu0 0
    %1970 = vmatpush1.bf16.msra.mxu0 0
    %1971 = vmatprep.subr.bf16.mxu0 0
    %1972 = vmatpush1.bf16.msra.mxu0 0
    %1973 = vmatprep.subr.bf16.mxu0 0
    %1974 = vmatpush1.bf16.msra.mxu0 0
    %1975 = vmatprep.subr.bf16.mxu0 0
    %1976 = vmatpush1.bf16.msra.mxu0 0
    %1977 = vmatprep.subr.bf16.mxu0 0
    %1978 = vmatpush1.bf16.msra.mxu0 0
    %1979 = vmatprep.subr.bf16.mxu0 0
    %1980 = vmatpush1.bf16.msra.mxu0 0
    %1981 = vmatprep.subr.bf16.mxu0 0
    %1982 = vmatpush1.bf16.msra.mxu0 0
    %1983 = vmatprep.subr.bf16.mxu0 0
    %1984 = vmatpush1.bf16.msra.mxu0 0
    %1985 = vmatprep.subr.bf16.mxu0 0
    %1986 = vmatpush1.bf16.msra.mxu0 0
    %1987 = vmatprep.subr.bf16.mxu0 0
    %1988 = vmatpush1.bf16.msra.mxu0 0
    %1989 = vmatprep.subr.bf16.mxu0 0
    %1990 = vmatpush1.bf16.msra.mxu0 0
    %1991 = vmatprep.subr.bf16.mxu0 0
    %1992 = vmatpush1.bf16.msra.mxu0 0
    %1993 = vmatprep.subr.bf16.mxu0 0
    %1994 = vmatpush1.bf16.msra.mxu0 0
    %1995 = vmatprep.subr.bf16.mxu0 0
    %1996 = vmatpush1.bf16.msra.mxu0 0
    %1997 = vmatprep.mubr.bf16.mxu0 0
    %1998 = vmatmul.mubr.bf16.gmra.mrb[0].mxu0 %v1963
    %v1999 = vpop.f32.mrb[0].mxu0
    %v2000 = vadd.f32 %v1948, %v1999
    %v2001 = vpop.f32.mrb[0].mxu0
    %v2002 = vpop.f32.mrb[0].mxu0
    %v2003 = vadd.f32 %v1948, %v2002
    %v2004 = vpop.f32.mrb[0].mxu0
    %2005 = vdwg.mxu0
    %2008 = vrot.lane.b32.xlu0 %v239, 64
    %v2009 = vpop.permute.xlu0 %2008
    %2010 = vrot.lane.b32.xlu0 %v242, 64
    %v2011 = vpop.permute.xlu0 %2010
    %2014 = vxpose.xlu0.b32.start [1/16] %v2009, 128
    %2015 = vxpose.xlu0.b32.cont [2/16] %v2011, 128
    %2016 = vxpose.xlu0.b32.cont [3/16] 0.0, 128
    %2017 = vxpose.xlu0.b32.cont [4/16] 0.0, 128
    %2018 = vxpose.xlu0.b32.cont [5/16] 0.0, 128
    %2019 = vxpose.xlu0.b32.cont [6/16] 0.0, 128
    %2020 = vxpose.xlu0.b32.cont [7/16] 0.0, 128
    %2021 = vxpose.xlu0.b32.cont [8/16] 0.0, 128
    %2022 = vxpose.xlu0.b32.cont [9/16] 0.0, 128
    %2023 = vxpose.xlu0.b32.cont [10/16] 0.0, 128
    %2024 = vxpose.xlu0.b32.cont [11/16] 0.0, 128
    %2025 = vxpose.xlu0.b32.cont [12/16] 0.0, 128
    %2026 = vxpose.xlu0.b32.cont [13/16] 0.0, 128
    %2027 = vxpose.xlu0.b32.cont [14/16] 0.0, 128
    %2028 = vxpose.xlu0.b32.cont [15/16] 0.0, 128
    %2029 = vxpose.xlu0.b32.end [16/16] 0.0, 128
    %v2030 = vpop.trf.xlu0
    %v2031 = vpop.trf.xlu0
    %v2032 = vpop.trf.xlu0
    %v2033 = vpop.trf.xlu0
    %v2034 = vpop.trf.xlu0
    %v2035 = vpop.trf.xlu0
    %v2036 = vpop.trf.xlu0
    %v2037 = vpop.trf.xlu0
    %v2038 = vpop.trf.xlu0
    %v2039 = vpop.trf.xlu0
    %v2040 = vpop.trf.xlu0
    %v2041 = vpop.trf.xlu0
    %v2042 = vpop.trf.xlu0
    %v2043 = vpop.trf.xlu0
    %v2044 = vpop.trf.xlu0
    %v2045 = vpop.trf.xlu0
    %2050 = vrot.lane.b32.xlu0 %v2030, 16
    %v2051 = vpop.permute.xlu0 %2050
    %2052 = vrot.lane.b32.xlu0 %v2031, 16
    %v2053 = vpop.permute.xlu0 %2052
    %2054 = vrot.lane.b32.xlu0 %v2032, 16
    %v2055 = vpop.permute.xlu0 %2054
    %2056 = vrot.lane.b32.xlu0 %v2033, 16
    %v2057 = vpop.permute.xlu0 %2056
    %2062 = vrot.lane.b32.xlu0 %v2030, 32
    %v2063 = vpop.permute.xlu0 %2062
    %2064 = vrot.lane.b32.xlu0 %v2031, 32
    %v2065 = vpop.permute.xlu0 %2064
    %2066 = vrot.lane.b32.xlu0 %v2032, 32
    %v2067 = vpop.permute.xlu0 %2066
    %2068 = vrot.lane.b32.xlu0 %v2033, 32
    %v2069 = vpop.permute.xlu0 %2068
    %2074 = vrot.lane.b32.xlu0 %v2030, 48
    %v2075 = vpop.permute.xlu0 %2074
    %2076 = vrot.lane.b32.xlu0 %v2031, 48
    %v2077 = vpop.permute.xlu0 %2076
    %2078 = vrot.lane.b32.xlu0 %v2032, 48
    %v2079 = vpop.permute.xlu0 %2078
    %2080 = vrot.lane.b32.xlu0 %v2033, 48
    %v2081 = vpop.permute.xlu0 %2080
    %v2086 = vsel %vm393, %v2030, %v2051
    %v2087 = vsel %vm393, %v2031, %v2053
    %v2088 = vsel %vm393, %v2032, %v2055
    %v2089 = vsel %vm393, %v2033, %v2057
    %v2090 = vsel %vm200, %v2086, %v2063
    %v2091 = vsel %vm200, %v2087, %v2065
    %v2092 = vsel %vm200, %v2088, %v2067
    %v2093 = vsel %vm200, %v2089, %v2069
    %v2094 = vsel %vm402, %v2090, %v2075
    %v2095 = vsel %vm402, %v2091, %v2077
    %v2096 = vsel %vm402, %v2092, %v2079
    %v2097 = vsel %vm402, %v2093, %v2081
    %v2098 = vmul.f32 %v2094, %v156
    %v2099 = vmul.f32 %v2095, %v157
    %v2100 = vmul.f32 %v2096, %v158
    %v2101 = vmul.f32 %v2097, %v159
    %2102 = vrot.lane.b32.xlu0 %v160, 96
    %v2103 = vpop.permute.xlu0 %2102
    %2104 = vrot.lane.b32.xlu0 %v161, 96
    %v2105 = vpop.permute.xlu0 %2104
    %2106 = vrot.lane.b32.xlu0 %v162, 96
    %v2107 = vpop.permute.xlu0 %2106
    %2108 = vrot.lane.b32.xlu0 %v163, 96
    %v2109 = vpop.permute.xlu0 %2108
    %2110 = vrot.lane.b32.xlu0 %v164, 96
    %v2111 = vpop.permute.xlu0 %2110
    %2112 = vrot.lane.b32.xlu0 %v165, 96
    %v2113 = vpop.permute.xlu0 %2112
    %2114 = vrot.lane.b32.xlu0 %v166, 96
    %v2115 = vpop.permute.xlu0 %2114
    %2116 = vrot.lane.b32.xlu0 %v167, 96
    %v2117 = vpop.permute.xlu0 %2116
    %v2126 = vmul.f32 %v239, %v2103
    %v2127 = vmul.f32 %v242, %v2105
    %v2128 = vmul.f32 %v239, %v2107
    %v2129 = vmul.f32 %v242, %v2109
    %v2130 = vmul.f32 %v239, %v2111
    %v2131 = vmul.f32 %v242, %v2113
    %v2132 = vmul.f32 %v239, %v2115
    %v2133 = vmul.f32 %v242, %v2117
    %v2134 = vpack.c.bf16 %v2003, %v2000
    %v2135 = vpack.c.bf16 %v2099, %v2098
    %v2136 = vpack.c.bf16 %v2101, %v2100
    %v2138 = vsel %vm200, %v2134, 0
    %2140 = vmatprep.subr.bf16.mxu0 0
    %2141 = vmatpush1.bf16.msra.mxu0 %v2135
    %2142 = vmatprep.subr.bf16.mxu0 0
    %2143 = vmatpush1.bf16.msra.mxu0 %v2136
    %2144 = vmatprep.subr.bf16.mxu0 0
    %2145 = vmatpush1.bf16.msra.mxu0 0
    %2146 = vmatprep.subr.bf16.mxu0 0
    %2147 = vmatpush1.bf16.msra.mxu0 0
    %2148 = vmatprep.subr.bf16.mxu0 0
    %2149 = vmatpush1.bf16.msra.mxu0 0
    %2150 = vmatprep.subr.bf16.mxu0 0
    %2151 = vmatpush1.bf16.msra.mxu0 0
    %2152 = vmatprep.subr.bf16.mxu0 0
    %2153 = vmatpush1.bf16.msra.mxu0 0
    %2154 = vmatprep.subr.bf16.mxu0 0
    %2155 = vmatpush1.bf16.msra.mxu0 0
    %2156 = vmatprep.subr.bf16.mxu0 0
    %2157 = vmatpush1.bf16.msra.mxu0 0
    %2158 = vmatprep.subr.bf16.mxu0 0
    %2159 = vmatpush1.bf16.msra.mxu0 0
    %2160 = vmatprep.subr.bf16.mxu0 0
    %2161 = vmatpush1.bf16.msra.mxu0 0
    %2162 = vmatprep.subr.bf16.mxu0 0
    %2163 = vmatpush1.bf16.msra.mxu0 0
    %2164 = vmatprep.subr.bf16.mxu0 0
    %2165 = vmatpush1.bf16.msra.mxu0 0
    %2166 = vmatprep.subr.bf16.mxu0 0
    %2167 = vmatpush1.bf16.msra.mxu0 0
    %2168 = vmatprep.subr.bf16.mxu0 0
    %2169 = vmatpush1.bf16.msra.mxu0 0
    %2170 = vmatprep.subr.bf16.mxu0 0
    %2171 = vmatpush1.bf16.msra.mxu0 0
    %2172 = vmatprep.mubr.bf16.mxu0 0
    %2173 = vmatmul.mubr.bf16.gmra.mrb[0].mxu0 %v2138
    %v2174 = vpop.f32.mrb[0].mxu0
    %v2175 = vadd.f32 %v154, %v2174
    %v2176 = vpop.f32.mrb[0].mxu0
    %v2177 = vpop.f32.mrb[0].mxu0
    %v2178 = vadd.f32 %v155, %v2177
    %v2179 = vpop.f32.mrb[0].mxu0
    %2180 = vdwg.mxu0
    %v2181 = vsel %vm498, %v2175, -inf
    %2182 = vmax.xlane.f32.xlu0 %v2181
    %v2183 = vpop.xlane.xlu0 %2182
    %v2184 = vsel %vm498, %v2178, -inf
    %2185 = vmax.xlane.f32.xlu0 %v2184
    %v2186 = vpop.xlane.xlu0 %2185
    %v2187 = vsub.f32 %v2175, %v2183
    %v2188 = vsub.f32 %v2178, %v2186
    %v2189 = vmul.f32 %v2187, 1.442695
    %v2190 = vpow.pop %v2189
    %v2191 = vmul.f32 %v2188, 1.442695
    %v2192 = vpow.pop %v2191
    %v2193 = vpack.c.bf16 %v2192, %v2190
    %v2195 = vsel %vm498, %v2193, 0
    %2197 = vmatprep.subr.bf16.mxu0 0
    %2198 = vmatpush1.bf16.msra.mxu0 %v1036
    %2199 = vmatprep.subr.bf16.mxu0 0
    %2200 = vmatpush1.bf16.msra.mxu0 %v1037
    %2201 = vmatprep.subr.bf16.mxu0 0
    %2202 = vmatpush1.bf16.msra.mxu0 %v1038
    %2203 = vmatprep.subr.bf16.mxu0 0
    %2204 = vmatpush1.bf16.msra.mxu0 %v1039
    %2205 = vmatprep.subr.bf16.mxu0 0
    %2206 = vmatpush1.bf16.msra.mxu0 0
    %2207 = vmatprep.subr.bf16.mxu0 0
    %2208 = vmatpush1.bf16.msra.mxu0 0
    %2209 = vmatprep.subr.bf16.mxu0 0
    %2210 = vmatpush1.bf16.msra.mxu0 0
    %2211 = vmatprep.subr.bf16.mxu0 0
    %2212 = vmatpush1.bf16.msra.mxu0 0
    %2213 = vmatprep.subr.bf16.mxu0 0
    %2214 = vmatpush1.bf16.msra.mxu0 0
    %2215 = vmatprep.subr.bf16.mxu0 0
    %2216 = vmatpush1.bf16.msra.mxu0 0
    %2217 = vmatprep.subr.bf16.mxu0 0
    %2218 = vmatpush1.bf16.msra.mxu0 0
    %2219 = vmatprep.subr.bf16.mxu0 0
    %2220 = vmatpush1.bf16.msra.mxu0 0
    %2221 = vmatprep.subr.bf16.mxu0 0
    %2222 = vmatpush1.bf16.msra.mxu0 0
    %2223 = vmatprep.subr.bf16.mxu0 0
    %2224 = vmatpush1.bf16.msra.mxu0 0
    %2225 = vmatprep.subr.bf16.mxu0 0
    %2226 = vmatpush1.bf16.msra.mxu0 0
    %2227 = vmatprep.subr.bf16.mxu0 0
    %2228 = vmatpush1.bf16.msra.mxu0 0
    %2229 = vmatprep.mubr.bf16.mxu0 0
    %2230 = vmatmul.mubr.bf16.gmra.mrb[0].mxu0 %v2195
    %v2231 = vpop.f32.mrb[0].mxu0
    %v2232 = vadd.f32 0.0, %v2231
    %v2233 = vpop.f32.mrb[0].mxu0
    %v2234 = vpop.f32.mrb[0].mxu0
    %v2235 = vadd.f32 0.0, %v2234
    %v2236 = vpop.f32.mrb[0].mxu0
    %2237 = vdwg.mxu0
    %v2238 = vrcp.pop %v2232
    %v2239 = vrcp.pop %v2235
    %v2240 = vmul.f32 %v2190, %v2238
    %v2241 = vmul.f32 %v2192, %v2239
    %v2242 = vpack.c.bf16 %v2241, %v2240
    %v2243 = vpack.c.bf16 %v2127, %v2126
    %v2244 = vpack.c.bf16 %v2129, %v2128
    %v2245 = vpack.c.bf16 %v2131, %v2130
    %v2246 = vpack.c.bf16 %v2133, %v2132
    %2251 = vrot.lane.b32.xlu0 %v2243, 32
    %v2252 = vpop.permute.xlu0 %2251
    %2253 = vrot.lane.b32.xlu0 %v2244, 32
    %v2254 = vpop.permute.xlu0 %2253
    %2255 = vrot.lane.b32.xlu0 %v2245, 32
    %v2256 = vpop.permute.xlu0 %2255
    %2257 = vrot.lane.b32.xlu0 %v2246, 32
    %v2258 = vpop.permute.xlu0 %2257
    %v2264 = vsel %vm498, %v2242, 0
    %2266 = vmatprep.subr.bf16.mxu0 0
    %2267 = vmatpush1.bf16.msra.mxu0 %v2252
    %2268 = vmatprep.subr.bf16.mxu0 0
    %2269 = vmatpush1.bf16.msra.mxu0 %v2254
    %2270 = vmatprep.subr.bf16.mxu0 0
    %2271 = vmatpush1.bf16.msra.mxu0 %v2256
    %2272 = vmatprep.subr.bf16.mxu0 0
    %2273 = vmatpush1.bf16.msra.mxu0 %v2258
    %2274 = vmatprep.subr.bf16.mxu0 0
    %2275 = vmatpush1.bf16.msra.mxu0 0
    %2276 = vmatprep.subr.bf16.mxu0 0
    %2277 = vmatpush1.bf16.msra.mxu0 0
    %2278 = vmatprep.subr.bf16.mxu0 0
    %2279 = vmatpush1.bf16.msra.mxu0 0
    %2280 = vmatprep.subr.bf16.mxu0 0
    %2281 = vmatpush1.bf16.msra.mxu0 0
    %2282 = vmatprep.subr.bf16.mxu0 0
    %2283 = vmatpush1.bf16.msra.mxu0 0
    %2284 = vmatprep.subr.bf16.mxu0 0
    %2285 = vmatpush1.bf16.msra.mxu0 0
    %2286 = vmatprep.subr.bf16.mxu0 0
    %2287 = vmatpush1.bf16.msra.mxu0 0
    %2288 = vmatprep.subr.bf16.mxu0 0
    %2289 = vmatpush1.bf16.msra.mxu0 0
    %2290 = vmatprep.subr.bf16.mxu0 0
    %2291 = vmatpush1.bf16.msra.mxu0 0
    %2292 = vmatprep.subr.bf16.mxu0 0
    %2293 = vmatpush1.bf16.msra.mxu0 0
    %2294 = vmatprep.subr.bf16.mxu0 0
    %2295 = vmatpush1.bf16.msra.mxu0 0
    %2296 = vmatprep.subr.bf16.mxu0 0
    %2297 = vmatpush1.bf16.msra.mxu0 0
    %2298 = vmatprep.mubr.bf16.mxu0 0
    %2299 = vmatmul.mubr.bf16.gmra.mrb[0].mxu0 %v2264
    %v2300 = vpop.f32.mrb[0].mxu0
    %v2301 = vadd.f32 0.0, %v2300
    %v2302 = vpop.f32.mrb[0].mxu0
    %v2303 = vpop.f32.mrb[0].mxu0
    %v2304 = vadd.f32 0.0, %v2303
    %v2305 = vpop.f32.mrb[0].mxu0
    %2306 = vdwg.mxu0
    %s2307 = scalar_lea.vmem %s37, 16
    %v2308 = vld [vmem:[%s2307] sm:$0xf]
    %v2309 = vld [vmem:[%s2307 + $0x4] sm:$0xf]
    %v2310 = vld [vmem:[%s2307 + $0x8] sm:$0xf]
    %v2311 = vld [vmem:[%s2307 + $0xc] sm:$0xf]
    %v2312 = vpack.c.bf16 %v2304, %v2301
    %s2313 = scalar_lea.vmem %s39, 1
    %v2314 = vld [vmem:[%s2313] sm:$0x1]
    %v2316 = vlaneseq
    %v2317 = vshrl.u32 %v2316, 7
    %v2318 = vsub.s32 0, %v2317
    %v2319 = vrot.slane %v2314, %v2318
    %v2325 = vunpack.c.l.b16 %v2308
    %v2326 = vunpack.c.l.b16 %v2309
    %v2327 = vunpack.c.l.b16 %v2310
    %v2328 = vunpack.c.l.b16 %v2311
    %v2329 = vpack.c.b16 %v2326, %v2325
    %v2330 = vpack.c.b16 %v2328, %v2327
    %v2334 = vsel %vm200, %v2312, 0
    %2336 = vmatprep.subr.bf16.mxu0 0
    %2337 = vmatpush1.bf16.msra.mxu0 %v2329
    %2338 = vmatprep.subr.bf16.mxu0 0
    %2339 = vmatpush1.bf16.msra.mxu0 %v2330
    %2340 = vmatprep.subr.bf16.mxu0 0
    %2341 = vmatpush1.bf16.msra.mxu0 0
    %2342 = vmatprep.subr.bf16.mxu0 0
    %2343 = vmatpush1.bf16.msra.mxu0 0
    %2344 = vmatprep.subr.bf16.mxu0 0
    %2345 = vmatpush1.bf16.msra.mxu0 0
    %2346 = vmatprep.subr.bf16.mxu0 0
    %2347 = vmatpush1.bf16.msra.mxu0 0
    %2348 = vmatprep.subr.bf16.mxu0 0
    %2349 = vmatpush1.bf16.msra.mxu0 0
    %2350 = vmatprep.subr.bf16.mxu0 0
    %2351 = vmatpush1.bf16.msra.mxu0 0
    %2352 = vmatprep.subr.bf16.mxu0 0
    %2353 = vmatpush1.bf16.msra.mxu0 0
    %2354 = vmatprep.subr.bf16.mxu0 0
    %2355 = vmatpush1.bf16.msra.mxu0 0
    %2356 = vmatprep.subr.bf16.mxu0 0
    %2357 = vmatpush1.bf16.msra.mxu0 0
    %2358 = vmatprep.subr.bf16.mxu0 0
    %2359 = vmatpush1.bf16.msra.mxu0 0
    %2360 = vmatprep.subr.bf16.mxu0 0
    %2361 = vmatpush1.bf16.msra.mxu0 0
    %2362 = vmatprep.subr.bf16.mxu0 0
    %2363 = vmatpush1.bf16.msra.mxu0 0
    %2364 = vmatprep.subr.bf16.mxu0 0
    %2365 = vmatpush1.bf16.msra.mxu0 0
    %2366 = vmatprep.subr.bf16.mxu0 0
    %2367 = vmatpush1.bf16.msra.mxu0 0
    %2368 = vmatprep.mubr.bf16.mxu0 0
    %2369 = vmatmul.mubr.bf16.gmra.mrb[0].mxu0 %v2334
    %v2370 = vpop.f32.mrb[0].mxu0
    %v2371 = vadd.f32 %v2319, %v2370
    %v2372 = vpop.f32.mrb[0].mxu0
    %v2373 = vpop.f32.mrb[0].mxu0
    %v2374 = vadd.f32 %v2319, %v2373
    %v2375 = vpop.f32.mrb[0].mxu0
    %2376 = vdwg.mxu0
    %v2377 = vadd.f32 %v1934, %v2371
    %v2378 = vadd.f32 %v1935, %v2374
    %s2379 = scalar_lea.vmem %s53, 1
    %v2380 = vld [vmem:[%s2379] sm:$0x1]
    %s2381 = scalar_lea.vmem %s55, 1
    %v2382 = vld [vmem:[%s2381] sm:$0x1]
    %v2383 = vsel %vm200, %v2377, 0.0
    %2384 = vadd.xlane.f32.xlu0 %v2383
    %v2385 = vpop.xlane.xlu0 %2384
    %v2386 = vsel %vm200, %v2378, 0.0
    %2387 = vadd.xlane.f32.xlu0 %v2386
    %v2388 = vpop.xlane.xlu0 %2387
    %v2389 = vmul.f32 %v2385, %v727
    %v2390 = vmul.f32 %v2388, %v727
    %v2391 = vsub.f32 %v2377, %v2389
    %v2392 = vsub.f32 %v2378, %v2390
    %v2393 = vmul.f32 %v2391, %v2391
    %v2394 = vmul.f32 %v2392, %v2392
    %v2395 = vsel %vm200, %v2393, 0.0
    %2396 = vadd.xlane.f32.xlu0 %v2395
    %v2397 = vpop.xlane.xlu0 %2396
    %v2398 = vsel %vm200, %v2394, 0.0
    %2399 = vadd.xlane.f32.xlu0 %v2398
    %v2400 = vpop.xlane.xlu0 %2399
    %v2401 = vmul.f32 %v2397, %v727
    %v2402 = vmul.f32 %v2400, %v727
    %v2403 = vadd.f32 %v2401, 1e-05
    %v2404 = vadd.f32 %v2402, 1e-05
    %v2405 = vrsqrt.pop %v2403
    %v2406 = vrsqrt.pop %v2404
    %v2407 = vmul.f32 %v2391, %v2405
    %v2408 = vmul.f32 %v2392, %v2406
    %v2410 = vlaneseq
    %v2411 = vshrl.u32 %v2410, 7
    %v2412 = vsub.s32 0, %v2411
    %v2413 = vrot.slane %v2380, %v2412
    %v2415 = vmul.f32 %v2407, %v2413
    %v2416 = vmul.f32 %v2408, %v2413
    %v2418 = vlaneseq
    %v2419 = vshrl.u32 %v2418, 7
    %v2420 = vsub.s32 0, %v2419
    %v2421 = vrot.slane %v2382, %v2420
    %v2423 = vadd.f32 %v2415, %v2421
    %v2424 = vadd.f32 %v2416, %v2421
    %s2425 = scalar_lea.vmem %s41, 16
    %v2426 = vld [vmem:[%s2425] sm:$0xf]
    %v2427 = vld [vmem:[%s2425 + $0x4] sm:$0xf]
    %v2428 = vld [vmem:[%s2425 + $0x8] sm:$0xf]
    %v2429 = vld [vmem:[%s2425 + $0xc] sm:$0xf]
    %v2430 = vpack.c.bf16 %v2424, %v2423
    %s2431 = scalar_lea.vmem %s43, 1
    %v2432 = vld [vmem:[%s2431] sm:$0x1]
    %v2434 = vlaneseq
    %v2435 = vshrl.u32 %v2434, 7
    %v2436 = vsub.s32 0, %v2435
    %v2437 = vrot.slane %v2432, %v2436
    %v2443 = vunpack.c.l.b16 %v2426
    %v2444 = vunpack.c.l.b16 %v2427
    %v2445 = vunpack.c.l.b16 %v2428
    %v2446 = vunpack.c.l.b16 %v2429
    %v2447 = vpack.c.b16 %v2444, %v2443
    %v2448 = vpack.c.b16 %v2446, %v2445
    %v2452 = vsel %vm200, %v2430, 0
    %2454 = vmatprep.subr.bf16.mxu0 0
    %2455 = vmatpush1.bf16.msra.mxu0 %v2447
    %2456 = vmatprep.subr.bf16.mxu0 0
    %2457 = vmatpush1.bf16.msra.mxu0 %v2448
    %2458 = vmatprep.subr.bf16.mxu0 0
    %2459 = vmatpush1.bf16.msra.mxu0 0
    %2460 = vmatprep.subr.bf16.mxu0 0
    %2461 = vmatpush1.bf16.msra.mxu0 0
    %2462 = vmatprep.subr.bf16.mxu0 0
    %2463 = vmatpush1.bf16.msra.mxu0 0
    %2464 = vmatprep.subr.bf16.mxu0 0
    %2465 = vmatpush1.bf16.msra.mxu0 0
    %2466 = vmatprep.subr.bf16.mxu0 0
    %2467 = vmatpush1.bf16.msra.mxu0 0
    %2468 = vmatprep.subr.bf16.mxu0 0
    %2469 = vmatpush1.bf16.msra.mxu0 0
    %2470 = vmatprep.subr.bf16.mxu0 0
    %2471 = vmatpush1.bf16.msra.mxu0 0
    %2472 = vmatprep.subr.bf16.mxu0 0
    %2473 = vmatpush1.bf16.msra.mxu0 0
    %2474 = vmatprep.subr.bf16.mxu0 0
    %2475 = vmatpush1.bf16.msra.mxu0 0
    %2476 = vmatprep.subr.bf16.mxu0 0
    %2477 = vmatpush1.bf16.msra.mxu0 0
    %2478 = vmatprep.subr.bf16.mxu0 0
    %2479 = vmatpush1.bf16.msra.mxu0 0
    %2480 = vmatprep.subr.bf16.mxu0 0
    %2481 = vmatpush1.bf16.msra.mxu0 0
    %2482 = vmatprep.subr.bf16.mxu0 0
    %2483 = vmatpush1.bf16.msra.mxu0 0
    %2484 = vmatprep.subr.bf16.mxu0 0
    %2485 = vmatpush1.bf16.msra.mxu0 0
    %2486 = vmatprep.mubr.bf16.mxu0 0
    %2487 = vmatmul.mubr.bf16.gmra.mrb[0].mxu0 %v2452
    %v2488 = vpop.f32.mrb[0].mxu0
    %v2489 = vadd.f32 %v2437, %v2488
    %v2490 = vpop.f32.mrb[0].mxu0
    %v2491 = vpop.f32.mrb[0].mxu0
    %v2492 = vadd.f32 %v2437, %v2491
    %v2493 = vpop.f32.mrb[0].mxu0
    %2494 = vdwg.mxu0
    %v2495 = vmax.f32 %v2489, 0.0
    %v2496 = vmax.f32 %v2492, 0.0
    %s2497 = scalar_lea.vmem %s45, 32
    %v2498 = vld [vmem:[%s2497] sm:$0xf]
    %v2499 = vld [vmem:[%s2497 + $0x4] sm:$0xf]
    %v2500 = vld [vmem:[%s2497 + $0x8] sm:$0xf]
    %v2501 = vld [vmem:[%s2497 + $0xc] sm:$0xf]
    %v2502 = vld [vmem:[%s2497 + $0x10] sm:$0xf]
    %v2503 = vld [vmem:[%s2497 + $0x14] sm:$0xf]
    %v2504 = vld [vmem:[%s2497 + $0x18] sm:$0xf]
    %v2505 = vld [vmem:[%s2497 + $0x1c] sm:$0xf]
    %v2506 = vpack.c.bf16 %v2496, %v2495
    %s2507 = scalar_lea.vmem %s47, 1
    %v2508 = vld [vmem:[%s2507] sm:$0x1]
    %v2510 = vlaneseq
    %v2511 = vshrl.u32 %v2510, 7
    %v2512 = vsub.s32 0, %v2511
    %v2513 = vrot.slane %v2508, %v2512
    %v2523 = vunpack.c.l.b16 %v2498
    %v2524 = vunpack.c.l.b16 %v2499
    %v2525 = vunpack.c.l.b16 %v2500
    %v2526 = vunpack.c.l.b16 %v2501
    %v2527 = vunpack.c.l.b16 %v2502
    %v2528 = vunpack.c.l.b16 %v2503
    %v2529 = vunpack.c.l.b16 %v2504
    %v2530 = vunpack.c.l.b16 %v2505
    %v2531 = vpack.c.b16 %v2524, %v2523
    %v2532 = vpack.c.b16 %v2526, %v2525
    %v2533 = vpack.c.b16 %v2528, %v2527
    %v2534 = vpack.c.b16 %v2530, %v2529
    %v2540 = vsel %vm498, %v2506, 0
    %2542 = vmatprep.subr.bf16.mxu0 0
    %2543 = vmatpush1.bf16.msra.mxu0 %v2531
    %2544 = vmatprep.subr.bf16.mxu0 0
    %2545 = vmatpush1.bf16.msra.mxu0 %v2532
    %2546 = vmatprep.subr.bf16.mxu0 0
    %2547 = vmatpush1.bf16.msra.mxu0 %v2533
    %2548 = vmatprep.subr.bf16.mxu0 0
    %2549 = vmatpush1.bf16.msra.mxu0 %v2534
    %2550 = vmatprep.subr.bf16.mxu0 0
    %2551 = vmatpush1.bf16.msra.mxu0 0
    %2552 = vmatprep.subr.bf16.mxu0 0
    %2553 = vmatpush1.bf16.msra.mxu0 0
    %2554 = vmatprep.subr.bf16.mxu0 0
    %2555 = vmatpush1.bf16.msra.mxu0 0
    %2556 = vmatprep.subr.bf16.mxu0 0
    %2557 = vmatpush1.bf16.msra.mxu0 0
    %2558 = vmatprep.subr.bf16.mxu0 0
    %2559 = vmatpush1.bf16.msra.mxu0 0
    %2560 = vmatprep.subr.bf16.mxu0 0
    %2561 = vmatpush1.bf16.msra.mxu0 0
    %2562 = vmatprep.subr.bf16.mxu0 0
    %2563 = vmatpush1.bf16.msra.mxu0 0
    %2564 = vmatprep.subr.bf16.mxu0 0
    %2565 = vmatpush1.bf16.msra.mxu0 0
    %2566 = vmatprep.subr.bf16.mxu0 0
    %2567 = vmatpush1.bf16.msra.mxu0 0
    %2568 = vmatprep.subr.bf16.mxu0 0
    %2569 = vmatpush1.bf16.msra.mxu0 0
    %2570 = vmatprep.subr.bf16.mxu0 0
    %2571 = vmatpush1.bf16.msra.mxu0 0
    %2572 = vmatprep.subr.bf16.mxu0 0
    %2573 = vmatpush1.bf16.msra.mxu0 0
    %2574 = vmatprep.mubr.bf16.mxu0 0
    %2575 = vmatmul.mubr.bf16.gmra.mrb[0].mxu0 %v2540
    %v2576 = vpop.f32.mrb[0].mxu0
    %v2577 = vadd.f32 %v2513, %v2576
    %v2578 = vpop.f32.mrb[0].mxu0
    %v2579 = vpop.f32.mrb[0].mxu0
    %v2580 = vadd.f32 %v2513, %v2579
    %v2581 = vpop.f32.mrb[0].mxu0
    %2582 = vdwg.mxu0
    %v2583 = vadd.f32 %v2423, %v2577
    %v2584 = vadd.f32 %v2424, %v2580
    %s2585 = scalar_lea.vmem %s57, 1
    %v2586 = vld [vmem:[%s2585] sm:$0x1]
    %s2587 = scalar_lea.vmem %s59, 1
    %v2588 = vld [vmem:[%s2587] sm:$0x1]
    %v2589 = vsel %vm200, %v2583, 0.0
    %2590 = vadd.xlane.f32.xlu0 %v2589
    %v2591 = vpop.xlane.xlu0 %2590
    %v2592 = vsel %vm200, %v2584, 0.0
    %2593 = vadd.xlane.f32.xlu0 %v2592
    %v2594 = vpop.xlane.xlu0 %2593
    %v2595 = vmul.f32 %v2591, %v727
    %v2596 = vmul.f32 %v2594, %v727
    %v2597 = vsub.f32 %v2583, %v2595
    %v2598 = vsub.f32 %v2584, %v2596
    %v2599 = vmul.f32 %v2597, %v2597
    %v2600 = vmul.f32 %v2598, %v2598
    %v2601 = vsel %vm200, %v2599, 0.0
    %2602 = vadd.xlane.f32.xlu0 %v2601
    %v2603 = vpop.xlane.xlu0 %2602
    %v2604 = vsel %vm200, %v2600, 0.0
    %2605 = vadd.xlane.f32.xlu0 %v2604
    %v2606 = vpop.xlane.xlu0 %2605
    %v2607 = vmul.f32 %v2603, %v727
    %v2608 = vmul.f32 %v2606, %v727
    %v2609 = vadd.f32 %v2607, 1e-05
    %v2610 = vadd.f32 %v2608, 1e-05
    %v2611 = vrsqrt.pop %v2609
    %v2612 = vrsqrt.pop %v2610
    %v2613 = vmul.f32 %v2597, %v2611
    %v2614 = vmul.f32 %v2598, %v2612
    %v2616 = vlaneseq
    %v2617 = vshrl.u32 %v2616, 7
    %v2618 = vsub.s32 0, %v2617
    %v2619 = vrot.slane %v2586, %v2618
    %v2621 = vmul.f32 %v2613, %v2619
    %v2622 = vmul.f32 %v2614, %v2619
    %v2624 = vlaneseq
    %v2625 = vshrl.u32 %v2624, 7
    %v2626 = vsub.s32 0, %v2625
    %v2627 = vrot.slane %v2588, %v2626
    %v2629 = vadd.f32 %v2621, %v2627
    %v2630 = vadd.f32 %v2622, %v2627
    %2631 = vst.msk [vmem:[#allocation2] sm:$0xff] %vm200, %v2629
    %2632 = vst.msk [vmem:[#allocation2 + $0x8] sm:$0xff] %vm200, %v2630
    // Predicated region
    $region122: #{decoder_only_forward.1} parent=1 // pred_check
      _
    $region123: #{decoder_only_forward.1} parent=1 // pred_check_branch
      %2634 = sbr.rel (0) target = $region125
    $region124: #{decoder_only_forward.1} parent=1 // pred_region
      %s2636 = ssub.s32 256, 256
      %2637 = vsyncadd [#allocation3], %s2636
      %s2638 = sshll.u32 [#allocation2], 4
      %s2639 = int_to_ptr.vmem [resolvable:$true] %s2638
      %2644 = dma.vmem_to_hbm [thread:$0]  %s2639, 256, %s61, [#allocation3], 128, 128, 8
    $region125: #{decoder_only_forward.1} parent=1 // pred_fallthru
      _
    // Predicated region
    $region126: #{decoder_only_forward.1} parent=1 // pred_check
      _
    $region127: #{decoder_only_forward.1} parent=1 // pred_check_branch
      %2646 = sbr.rel (0) target = $region129
    $region128: #{decoder_only_forward.1} parent=1 // pred_region
      %2647 = dma.done [#allocation3], 256
    $region129: #{decoder_only_forward.1} parent=1 // pred_fallthru
      _
    %2648 = vsyncpa [#allocation3], 1

</llo_original>
